<compile_context>
chip_gen: v6e
topology: v6e:2x2x1
jax: 0.10.0
libtpu: 0.0.40
codegen_flags: <defaults>
</compile_context>

<pallas_src>
import functools

import jax
import jax.numpy as jnp
from jax.experimental import pallas as pl
from jax.experimental.pallas import tpu as pltpu


# ------------------------------------------------------------------ kernel ---

def _make_encoder_kernel(*, batch_block, seq_len, embed, heads, vocab,
                         num_layers, eps: float = 1e-5):
    B, L, E, H, V, NL = batch_block, seq_len, embed, heads, vocab, num_layers
    hd = E // H
    BL = B * L
    scale = 1.0 / (hd ** 0.5)

    def kernel(ids_ref, mask_ref, wtab_ref, ptab_ref,
               wfc_ref, bfc_ref, g1_ref, be1_ref,
               wff1_ref, bff1_ref, wff2_ref, bff2_ref, g2_ref, be2_ref,
               out_ref):
        f32, bf16 = jnp.float32, jnp.bfloat16

        # ---------------- embeddings: one-hot @ table (MXU gather) ------------
        ids = ids_ref[...]                                        # (BL, 1) int32
        iota = jax.lax.broadcasted_iota(jnp.int32, (BL, V), 1)
        onehot = (iota == ids).astype(f32).astype(bf16)           # exact 0/1
        x = jnp.dot(onehot, wtab_ref[...], preferred_element_type=f32)  # (BL, E)
        pos = ptab_ref[0:L, :]                                    # (L, E) f32
        x = x + jnp.concatenate([pos] * B, axis=0)
        # nn.Dropout == identity (eval mode).

        # ------- additive mask, tiled to (B*H*L, L) once, reused per layer ----
        add_mask = jnp.concatenate(
            [mask_ref[b] for b in range(B) for _ in range(H)], axis=0
        ).astype(f32)                                             # (B*H*L, L)

        def layernorm(v, g, b):
            mu = jnp.mean(v, axis=-1, keepdims=True)
            d = v - mu
            var = jnp.mean(d * d, axis=-1, keepdims=True)
            return d * jax.lax.rsqrt(var + eps) * g + b

        def attention(xin, w_fc, b_fc):
            # Per the reference, no Q/K/V projections — only fc_out.
            xbf = xin.astype(bf16)                  # keys / values (bf16 MXU path)
            qbf = (xin * scale).astype(bf16)        # queries pre-scaled in f32
            # per-(batch, head) energies stacked along sublanes
            e_tiles = []
            for b in range(B):
                r0 = b * L
                for h in range(H):
                    c0 = h * hd
                    e_tiles.append(jax.lax.dot_general(
                        qbf[r0:r0 + L, c0:c0 + hd],
                        xbf[r0:r0 + L, c0:c0 + hd],
                        (((1,), (1,)), ((), ())),               # q @ k^T
                        preferred_element_type=f32))
            z = jnp.concatenate(e_tiles, axis=0) + add_mask      # (B*H*L, L)
            # one batched softmax over all (batch, head) tiles, f32
            m = jnp.max(z, axis=-1, keepdims=True)
            p = jnp.exp(z - m)
            s = jnp.sum(p, axis=-1, keepdims=True)
            attn = (p * pl.reciprocal(s, approx=True)).astype(bf16)
            # attention-weighted values; concat heads -> ONE fused fc_out matmul
            o_rows = []
            for b in range(B):
                r0 = b * L
                o_heads = []
                for h in range(H):
                    c0 = h * hd
                    a_bh = attn[(b * H + h) * L:(b * H + h + 1) * L, :]
                    o_heads.append(jnp.dot(a_bh, xbf[r0:r0 + L, c0:c0 + hd],
                                           preferred_element_type=f32))
                o_rows.append(jnp.concatenate(o_heads, axis=1))  # (L, E)
            o = jnp.concatenate(o_rows, axis=0).astype(bf16)     # (BL, E)
            return jnp.dot(o, w_fc, preferred_element_type=f32) + b_fc

        # --------------------------- transformer layers -----------------------
        for l in range(NL):
            a = attention(x, wfc_ref[l], bfc_ref[l])
            x1 = layernorm(a + x, g1_ref[l], be1_ref[l])
            h = jnp.dot(x1.astype(bf16), wff1_ref[l],
                        preferred_element_type=f32) + bff1_ref[l]
            h = jnp.maximum(h, 0.0)
            ff = jnp.dot(h.astype(bf16), wff2_ref[l],
                         preferred_element_type=f32) + bff2_ref[l]
            x = layernorm(ff + x1, g2_ref[l], be2_ref[l])

        # TODO(synk): at E=32 this store fills only 32/128 lanes; a lane-dense
        # (1, B*L*E) output would need a sublane->lane relayout that is not
        # worth it at demo sizes (keep E a multiple of 128 for real shapes).
        out_ref[...] = x

    return kernel


# ----------------------------------------------------------------- wrapper ---

def _default_batch_block(n):
    """Collapse the batch grid on single-TC chips; keep a parallel axis on v7x."""
    kind = ""
    try:
        kind = jax.devices()[0].device_kind.lower()
    except Exception:
        pass
    if "v7" in kind or "tpu7" in kind:       # 2 TensorCores/chip -> keep >=2 steps
        return max(1, n // 2)
    return n                                  # v5e/v6e: 1 TC -> one fat grid step


@functools.partial(jax.jit, static_argnames=("heads", "batch_block"))
def encoder_forward(ids, mask, params, *, heads, batch_block):
    N, L = ids.shape
    V, E = params["word_tab"].shape
    NL = params["w_fc"].shape[0]
    assert E % heads == 0 and N % batch_block == 0
    B = batch_block
    grid = (N // B,)

    # bf16 weights for the MXU; biases / LayerNorm params stay f32.
    wtab = params["word_tab"].astype(jnp.bfloat16)
    ptab = params["pos_tab"].astype(jnp.float32)
    wfc = params["w_fc"].astype(jnp.bfloat16)
    wff1 = params["w_ff1"].astype(jnp.bfloat16)
    wff2 = params["w_ff2"].astype(jnp.bfloat16)
    layer_params = [wfc, params["b_fc"], params["g1"], params["be1"],
                    wff1, params["b_ff1"], wff2, params["b_ff2"],
                    params["g2"], params["be2"]]

    ids_col = ids.reshape(N * L, 1).astype(jnp.int32)
    # additive mask precomputed here (0 = keep, -1e20 = masked), bf16 halves DMA.
    add_mask = ((mask.astype(jnp.float32) - 1.0) * 1e20).astype(jnp.bfloat16)

    kernel = _make_encoder_kernel(batch_block=B, seq_len=L, embed=E,
                                  heads=heads, vocab=V, num_layers=NL)

    in_specs = [
        pl.BlockSpec((B * L, 1), lambda i: (i, 0)),        # token ids (flat)
        pl.BlockSpec((B, L, L), lambda i: (i, 0, 0)),      # additive mask
        pl.BlockSpec(wtab.shape, lambda i: (0, 0)),        # word-embedding table
        pl.BlockSpec(ptab.shape, lambda i: (0, 0)),        # position table
    ] + [pl.BlockSpec(p.shape, lambda i, nd=p.ndim: (0,) * nd)
         for p in layer_params]

    out = pl.pallas_call(
        kernel,
        out_shape=jax.ShapeDtypeStruct((N * L, E), jnp.float32),
        grid=grid,
        in_specs=in_specs,
        out_specs=pl.BlockSpec((B * L, E), lambda i: (i, 0)),
        compiler_params=pltpu.CompilerParams(dimension_semantics=("parallel",)),
    )(ids_col, add_mask, wtab, ptab, *layer_params)
    return out.reshape(N, L, E)


# -------------------------------------------------------- pure-JAX reference ---

def encoder_ref(ids, mask, params, heads):
    wtab, ptab = params["word_tab"], params["pos_tab"]
    V, E = wtab.shape
    hd = E // heads
    N, L = ids.shape
    x = wtab[ids] + ptab[:L][None, :, :]
    NL = params["w_fc"].shape[0]

    def ln(v, g, b):
        mu = v.mean(-1, keepdims=True)
        var = ((v - mu) ** 2).mean(-1, keepdims=True)
        return (v - mu) / jnp.sqrt(var + 1e-5) * g + b

    for l in range(NL):
        q = x.reshape(N, L, heads, hd)
        e = jnp.einsum("nqhd,nkhd->nhqk", q, q)
        e = jnp.where(mask[:, None] == 0.0, -1e20, e)
        a = jax.nn.softmax(e / hd ** 0.5, axis=-1)
        o = jnp.einsum("nhql,nlhd->nqhd", a, q).reshape(N, L, E)
        att = o @ params["w_fc"][l] + params["b_fc"][l]
        x1 = ln(att + x, params["g1"][l], params["be1"][l])
        h = jax.nn.relu(x1 @ params["w_ff1"][l] + params["b_ff1"][l])
        ff = h @ params["w_ff2"][l] + params["b_ff2"][l]
        x = ln(ff + x1, params["g2"][l], params["be2"][l])
    return x


# -------------------------------------------------------------------- main ---

if __name__ == "__main__":
    N, L = 2, 8
    V, E, heads, num_layers, forward_expansion, max_len = 64, 32, 4, 2, 4, 16
    Hf = forward_expansion * E

    key = jax.random.PRNGKey(0)
    ks = jax.random.split(key, 16)
    nrm = lambda k, shp, s=0.1: s * jax.random.normal(k, shp, jnp.float32)

    params = {
        "word_tab": jax.random.normal(ks[0], (V, E), jnp.float32),
        "pos_tab": jax.random.normal(ks[1], (max_len, E), jnp.float32),
        "w_fc":  nrm(ks[2], (num_layers, E, E)),
        "b_fc":  nrm(ks[3], (num_layers, 1, E)),
        "g1":    1.0 + nrm(ks[4], (num_layers, 1, E), 0.05),
        "be1":   nrm(ks[5], (num_layers, 1, E), 0.05),
        "w_ff1": nrm(ks[6], (num_layers, E, Hf)),
        "b_ff1": nrm(ks[7], (num_layers, 1, Hf)),
        "w_ff2": nrm(ks[8], (num_layers, Hf, E)),
        "b_ff2": nrm(ks[9], (num_layers, 1, E)),
        "g2":    1.0 + nrm(ks[10], (num_layers, 1, E), 0.05),
        "be2":   nrm(ks[11], (num_layers, 1, E), 0.05),
    }

    ids = jax.random.randint(ks[12], (N, L), 0, V)
    # padding-style mask: last two key positions hidden for batch element 1
    mask = jnp.ones((N, L, L), jnp.float32).at[1, :, L - 2:].set(0.0)

    bb = _default_batch_block(N)
    out = encoder_forward(ids, mask, params, heads=heads, batch_block=bb)
    out = jax.block_until_ready(out)

    ref = encoder_ref(ids, mask, params, heads)
    assert out.shape == (N, L, E)
    err = float(jnp.max(jnp.abs(out - ref)))
    # kernel uses bf16 MXU operands; reference is pure f32 -> moderate tolerance
    assert jnp.allclose(out, ref, rtol=5e-2, atol=5e-2), f"max|diff|={err}"

    print("KERNEL_OK")
</pallas_src>

<mosaic_0001>
module attributes {stable_mosaic.version = 11 : i64} {
  func.func @kernel(%arg0: i32, %arg1: memref<16x1xi32, #tpu.memory_space<vmem>>, %arg2: memref<2x8x8xbf16, #tpu.memory_space<vmem>>, %arg3: memref<64x32xbf16, #tpu.memory_space<vmem>>, %arg4: memref<16x32xf32, #tpu.memory_space<vmem>>, %arg5: memref<2x32x32xbf16, #tpu.memory_space<vmem>>, %arg6: memref<2x1x32xf32, #tpu.memory_space<vmem>>, %arg7: memref<2x1x32xf32, #tpu.memory_space<vmem>>, %arg8: memref<2x1x32xf32, #tpu.memory_space<vmem>>, %arg9: memref<2x32x128xbf16, #tpu.memory_space<vmem>>, %arg10: memref<2x1x128xf32, #tpu.memory_space<vmem>>, %arg11: memref<2x128x32xbf16, #tpu.memory_space<vmem>>, %arg12: memref<2x1x32xf32, #tpu.memory_space<vmem>>, %arg13: memref<2x1x32xf32, #tpu.memory_space<vmem>>, %arg14: memref<2x1x32xf32, #tpu.memory_space<vmem>>, %arg15: memref<16x32xf32, #tpu.memory_space<vmem>>) attributes {dimension_semantics = [#tpu.dimension_semantics<parallel>], iteration_bounds = array<i64: 1>, scalar_prefetch = 0 : i64, scratch_operands = 0 : i64, tpu.core_type = #tpu.core_type<tc>, window_params = [{transform_indices = @transform_0, window_bounds = array<i64: 16, 1>}, {transform_indices = @transform_1, window_bounds = array<i64: 2, 8, 8>}, {pipeline_mode = #tpu.pipeline_mode<synchronous>, transform_indices = @transform_2, window_bounds = array<i64: 64, 32>}, {pipeline_mode = #tpu.pipeline_mode<synchronous>, transform_indices = @transform_3, window_bounds = array<i64: 16, 32>}, {pipeline_mode = #tpu.pipeline_mode<synchronous>, transform_indices = @transform_4, window_bounds = array<i64: 2, 32, 32>}, {pipeline_mode = #tpu.pipeline_mode<synchronous>, transform_indices = @transform_5, window_bounds = array<i64: 2, 1, 32>}, {pipeline_mode = #tpu.pipeline_mode<synchronous>, transform_indices = @transform_6, window_bounds = array<i64: 2, 1, 32>}, {pipeline_mode = #tpu.pipeline_mode<synchronous>, transform_indices = @transform_7, window_bounds = array<i64: 2, 1, 32>}, {pipeline_mode = #tpu.pipeline_mode<synchronous>, transform_indices = @transform_8, window_bounds = array<i64: 2, 32, 128>}, {pipeline_mode = #tpu.pipeline_mode<synchronous>, transform_indices = @transform_9, window_bounds = array<i64: 2, 1, 128>}, {pipeline_mode = #tpu.pipeline_mode<synchronous>, transform_indices = @transform_10, window_bounds = array<i64: 2, 128, 32>}, {pipeline_mode = #tpu.pipeline_mode<synchronous>, transform_indices = @transform_11, window_bounds = array<i64: 2, 1, 32>}, {pipeline_mode = #tpu.pipeline_mode<synchronous>, transform_indices = @transform_12, window_bounds = array<i64: 2, 1, 32>}, {pipeline_mode = #tpu.pipeline_mode<synchronous>, transform_indices = @transform_13, window_bounds = array<i64: 2, 1, 32>}, {transform_indices = @transform_14, window_bounds = array<i64: 16, 32>}]} {
    %c0 = arith.constant 0 : index
    %c0_0 = arith.constant 0 : index
    %0 = vector.load %arg1[%c0, %c0_0] : memref<16x1xi32, #tpu.memory_space<vmem>>, vector<16x1xi32>
    %1 = tpu.iota {dimensions = array<i32: 1>} : vector<16x64xi32>
    %2 = vector.broadcast %0 : vector<16x1xi32> to vector<16x64xi32>
    %3 = arith.cmpi eq, %1, %2 : vector<16x64xi32>
    %4 = arith.extui %3 : vector<16x64xi1> to vector<16x64xi32>
    %5 = arith.sitofp %4 : vector<16x64xi32> to vector<16x64xf32>
    %6 = arith.truncf %5 : vector<16x64xf32> to vector<16x64xbf16>
    %c0_1 = arith.constant 0 : index
    %c0_2 = arith.constant 0 : index
    %7 = vector.load %arg3[%c0_1, %c0_2] : memref<64x32xbf16, #tpu.memory_space<vmem>>, vector<64x32xbf16>
    %cst = arith.constant dense<0.000000e+00> : vector<16x32xf32>
    %8 = tpu.matmul %6, %7, %cst {dimension_numbers = #tpu.dot_dimension_numbers<[1], [0], [0], [1], [0, 0, 1, 1], [], []>} : vector<16x64xbf16>, vector<64x32xbf16>, vector<16x32xf32> -> vector<16x32xf32>
    %c0_3 = arith.constant 0 : index
    %c0_4 = arith.constant 0 : index
    %9 = vector.load %arg4[%c0_3, %c0_4] : memref<16x32xf32, #tpu.memory_space<vmem>>, vector<8x32xf32>
    %10 = tpu.concatenate %9, %9 in 0 : vector<8x32xf32>, vector<8x32xf32> -> vector<16x32xf32>
    %11 = arith.addf %8, %10 : vector<16x32xf32>
    %c0_5 = arith.constant 0 : index
    %c0_6 = arith.constant 0 : index
    %c0_7 = arith.constant 0 : index
    %12 = vector.load %arg2[%c0_5, %c0_6, %c0_7] : memref<2x8x8xbf16, #tpu.memory_space<vmem>>, vector<1x8x8xbf16>
    %13 = vector.shape_cast %12 : vector<1x8x8xbf16> to vector<8x8xbf16>
    %c0_8 = arith.constant 0 : index
    %c0_9 = arith.constant 0 : index
    %c0_10 = arith.constant 0 : index
    %14 = vector.load %arg2[%c0_8, %c0_9, %c0_10] : memref<2x8x8xbf16, #tpu.memory_space<vmem>>, vector<1x8x8xbf16>
    %15 = vector.shape_cast %14 : vector<1x8x8xbf16> to vector<8x8xbf16>
    %c0_11 = arith.constant 0 : index
    %c0_12 = arith.constant 0 : index
    %c0_13 = arith.constant 0 : index
    %16 = vector.load %arg2[%c0_11, %c0_12, %c0_13] : memref<2x8x8xbf16, #tpu.memory_space<vmem>>, vector<1x8x8xbf16>
    %17 = vector.shape_cast %16 : vector<1x8x8xbf16> to vector<8x8xbf16>
    %c0_14 = arith.constant 0 : index
    %c0_15 = arith.constant 0 : index
    %c0_16 = arith.constant 0 : index
    %18 = vector.load %arg2[%c0_14, %c0_15, %c0_16] : memref<2x8x8xbf16, #tpu.memory_space<vmem>>, vector<1x8x8xbf16>
    %19 = vector.shape_cast %18 : vector<1x8x8xbf16> to vector<8x8xbf16>
    %c1 = arith.constant 1 : index
    %c0_17 = arith.constant 0 : index
    %c0_18 = arith.constant 0 : index
    %20 = vector.load %arg2[%c1, %c0_17, %c0_18] : memref<2x8x8xbf16, #tpu.memory_space<vmem>>, vector<1x8x8xbf16>
    %21 = vector.shape_cast %20 : vector<1x8x8xbf16> to vector<8x8xbf16>
    %c1_19 = arith.constant 1 : index
    %c0_20 = arith.constant 0 : index
    %c0_21 = arith.constant 0 : index
    %22 = vector.load %arg2[%c1_19, %c0_20, %c0_21] : memref<2x8x8xbf16, #tpu.memory_space<vmem>>, vector<1x8x8xbf16>
    %23 = vector.shape_cast %22 : vector<1x8x8xbf16> to vector<8x8xbf16>
    %c1_22 = arith.constant 1 : index
    %c0_23 = arith.constant 0 : index
    %c0_24 = arith.constant 0 : index
    %24 = vector.load %arg2[%c1_22, %c0_23, %c0_24] : memref<2x8x8xbf16, #tpu.memory_space<vmem>>, vector<1x8x8xbf16>
    %25 = vector.shape_cast %24 : vector<1x8x8xbf16> to vector<8x8xbf16>
    %c1_25 = arith.constant 1 : index
    %c0_26 = arith.constant 0 : index
    %c0_27 = arith.constant 0 : index
    %26 = vector.load %arg2[%c1_25, %c0_26, %c0_27] : memref<2x8x8xbf16, #tpu.memory_space<vmem>>, vector<1x8x8xbf16>
    %27 = vector.shape_cast %26 : vector<1x8x8xbf16> to vector<8x8xbf16>
    %28 = tpu.concatenate %13, %15, %17, %19, %21, %23, %25, %27 in 0 : vector<8x8xbf16>, vector<8x8xbf16>, vector<8x8xbf16>, vector<8x8xbf16>, vector<8x8xbf16>, vector<8x8xbf16>, vector<8x8xbf16>, vector<8x8xbf16> -> vector<64x8xbf16>
    %29 = arith.extf %28 : vector<64x8xbf16> to vector<64x8xf32>
    %c0_28 = arith.constant 0 : index
    %c0_29 = arith.constant 0 : index
    %c0_30 = arith.constant 0 : index
    %30 = vector.load %arg5[%c0_28, %c0_29, %c0_30] : memref<2x32x32xbf16, #tpu.memory_space<vmem>>, vector<1x32x32xbf16>
    %31 = vector.shape_cast %30 : vector<1x32x32xbf16> to vector<32x32xbf16>
    %c0_31 = arith.constant 0 : index
    %c0_32 = arith.constant 0 : index
    %c0_33 = arith.constant 0 : index
    %32 = vector.load %arg6[%c0_31, %c0_32, %c0_33] : memref<2x1x32xf32, #tpu.memory_space<vmem>>, vector<1x1x32xf32>
    %33 = vector.shape_cast %32 : vector<1x1x32xf32> to vector<1x32xf32>
    %34 = arith.truncf %11 : vector<16x32xf32> to vector<16x32xbf16>
    %cst_34 = arith.constant 0.353553385 : f32
    %35 = vector.broadcast %cst_34 : f32 to vector<16x32xf32>
    %36 = arith.mulf %11, %35 : vector<16x32xf32>
    %37 = arith.truncf %36 : vector<16x32xf32> to vector<16x32xbf16>
    %38 = vector.extract_strided_slice %37 {offsets = [0, 0], sizes = [8, 8], strides = [1, 1]} : vector<16x32xbf16> to vector<8x8xbf16>
    %39 = vector.extract_strided_slice %34 {offsets = [0, 0], sizes = [8, 8], strides = [1, 1]} : vector<16x32xbf16> to vector<8x8xbf16>
    %cst_35 = arith.constant dense<0.000000e+00> : vector<8x8xf32>
    %40 = tpu.matmul %38, %39, %cst_35 {dimension_numbers = #tpu.dot_dimension_numbers<[1], [1], [0], [0], [0, 0, 1, 0], [], []>} : vector<8x8xbf16>, vector<8x8xbf16>, vector<8x8xf32> -> vector<8x8xf32>
    %41 = vector.extract_strided_slice %37 {offsets = [0, 8], sizes = [8, 8], strides = [1, 1]} : vector<16x32xbf16> to vector<8x8xbf16>
    %42 = vector.extract_strided_slice %34 {offsets = [0, 8], sizes = [8, 8], strides = [1, 1]} : vector<16x32xbf16> to vector<8x8xbf16>
    %cst_36 = arith.constant dense<0.000000e+00> : vector<8x8xf32>
    %43 = tpu.matmul %41, %42, %cst_36 {dimension_numbers = #tpu.dot_dimension_numbers<[1], [1], [0], [0], [0, 0, 1, 0], [], []>} : vector<8x8xbf16>, vector<8x8xbf16>, vector<8x8xf32> -> vector<8x8xf32>
    %44 = vector.extract_strided_slice %37 {offsets = [0, 16], sizes = [8, 8], strides = [1, 1]} : vector<16x32xbf16> to vector<8x8xbf16>
    %45 = vector.extract_strided_slice %34 {offsets = [0, 16], sizes = [8, 8], strides = [1, 1]} : vector<16x32xbf16> to vector<8x8xbf16>
    %cst_37 = arith.constant dense<0.000000e+00> : vector<8x8xf32>
    %46 = tpu.matmul %44, %45, %cst_37 {dimension_numbers = #tpu.dot_dimension_numbers<[1], [1], [0], [0], [0, 0, 1, 0], [], []>} : vector<8x8xbf16>, vector<8x8xbf16>, vector<8x8xf32> -> vector<8x8xf32>
    %47 = vector.extract_strided_slice %37 {offsets = [0, 24], sizes = [8, 8], strides = [1, 1]} : vector<16x32xbf16> to vector<8x8xbf16>
    %48 = vector.extract_strided_slice %34 {offsets = [0, 24], sizes = [8, 8], strides = [1, 1]} : vector<16x32xbf16> to vector<8x8xbf16>
    %cst_38 = arith.constant dense<0.000000e+00> : vector<8x8xf32>
    %49 = tpu.matmul %47, %48, %cst_38 {dimension_numbers = #tpu.dot_dimension_numbers<[1], [1], [0], [0], [0, 0, 1, 0], [], []>} : vector<8x8xbf16>, vector<8x8xbf16>, vector<8x8xf32> -> vector<8x8xf32>
    %50 = vector.extract_strided_slice %37 {offsets = [8, 0], sizes = [8, 8], strides = [1, 1]} : vector<16x32xbf16> to vector<8x8xbf16>
    %51 = vector.extract_strided_slice %34 {offsets = [8, 0], sizes = [8, 8], strides = [1, 1]} : vector<16x32xbf16> to vector<8x8xbf16>
    %cst_39 = arith.constant dense<0.000000e+00> : vector<8x8xf32>
    %52 = tpu.matmul %50, %51, %cst_39 {dimension_numbers = #tpu.dot_dimension_numbers<[1], [1], [0], [0], [0, 0, 1, 0], [], []>} : vector<8x8xbf16>, vector<8x8xbf16>, vector<8x8xf32> -> vector<8x8xf32>
    %53 = vector.extract_strided_slice %37 {offsets = [8, 8], sizes = [8, 8], strides = [1, 1]} : vector<16x32xbf16> to vector<8x8xbf16>
    %54 = vector.extract_strided_slice %34 {offsets = [8, 8], sizes = [8, 8], strides = [1, 1]} : vector<16x32xbf16> to vector<8x8xbf16>
    %cst_40 = arith.constant dense<0.000000e+00> : vector<8x8xf32>
    %55 = tpu.matmul %53, %54, %cst_40 {dimension_numbers = #tpu.dot_dimension_numbers<[1], [1], [0], [0], [0, 0, 1, 0], [], []>} : vector<8x8xbf16>, vector<8x8xbf16>, vector<8x8xf32> -> vector<8x8xf32>
    %56 = vector.extract_strided_slice %37 {offsets = [8, 16], sizes = [8, 8], strides = [1, 1]} : vector<16x32xbf16> to vector<8x8xbf16>
    %57 = vector.extract_strided_slice %34 {offsets = [8, 16], sizes = [8, 8], strides = [1, 1]} : vector<16x32xbf16> to vector<8x8xbf16>
    %cst_41 = arith.constant dense<0.000000e+00> : vector<8x8xf32>
    %58 = tpu.matmul %56, %57, %cst_41 {dimension_numbers = #tpu.dot_dimension_numbers<[1], [1], [0], [0], [0, 0, 1, 0], [], []>} : vector<8x8xbf16>, vector<8x8xbf16>, vector<8x8xf32> -> vector<8x8xf32>
    %59 = vector.extract_strided_slice %37 {offsets = [8, 24], sizes = [8, 8], strides = [1, 1]} : vector<16x32xbf16> to vector<8x8xbf16>
    %60 = vector.extract_strided_slice %34 {offsets = [8, 24], sizes = [8, 8], strides = [1, 1]} : vector<16x32xbf16> to vector<8x8xbf16>
    %cst_42 = arith.constant dense<0.000000e+00> : vector<8x8xf32>
    %61 = tpu.matmul %59, %60, %cst_42 {dimension_numbers = #tpu.dot_dimension_numbers<[1], [1], [0], [0], [0, 0, 1, 0], [], []>} : vector<8x8xbf16>, vector<8x8xbf16>, vector<8x8xf32> -> vector<8x8xf32>
    %62 = tpu.concatenate %40, %43, %46, %49, %52, %55, %58, %61 in 0 : vector<8x8xf32>, vector<8x8xf32>, vector<8x8xf32>, vector<8x8xf32>, vector<8x8xf32>, vector<8x8xf32>, vector<8x8xf32>, vector<8x8xf32> -> vector<64x8xf32>
    %63 = arith.addf %62, %29 : vector<64x8xf32>
    %cst_43 = arith.constant dense<0xFF800000> : vector<64xf32>
    %64 = vector.multi_reduction <maximumf>, %63, %cst_43 [1] : vector<64x8xf32> to vector<64xf32>
    %65 = vector.shape_cast %64 : vector<64xf32> to vector<64x1xf32>
    %66 = vector.broadcast %65 : vector<64x1xf32> to vector<64x8xf32>
    %67 = arith.subf %63, %66 : vector<64x8xf32>
    %68 = math.exp %67 : vector<64x8xf32>
    %cst_44 = arith.constant dense<0.000000e+00> : vector<64xf32>
    %69 = vector.multi_reduction <add>, %68, %cst_44 [1] : vector<64x8xf32> to vector<64xf32>
    %70 = vector.shape_cast %69 : vector<64xf32> to vector<64x1xf32>
    %71 = tpu.reciprocal %70 {approx = true} : vector<64x1xf32> -> vector<64x1xf32>
    %72 = vector.broadcast %71 : vector<64x1xf32> to vector<64x8xf32>
    %73 = arith.mulf %68, %72 : vector<64x8xf32>
    %74 = arith.truncf %73 : vector<64x8xf32> to vector<64x8xbf16>
    %75 = vector.extract_strided_slice %74 {offsets = [0, 0], sizes = [8, 8], strides = [1, 1]} : vector<64x8xbf16> to vector<8x8xbf16>
    %76 = vector.extract_strided_slice %34 {offsets = [0, 0], sizes = [8, 8], strides = [1, 1]} : vector<16x32xbf16> to vector<8x8xbf16>
    %cst_45 = arith.constant dense<0.000000e+00> : vector<8x8xf32>
    %77 = tpu.matmul %75, %76, %cst_45 {dimension_numbers = #tpu.dot_dimension_numbers<[1], [0], [0], [1], [0, 0, 1, 1], [], []>} : vector<8x8xbf16>, vector<8x8xbf16>, vector<8x8xf32> -> vector<8x8xf32>
    %78 = vector.extract_strided_slice %74 {offsets = [8, 0], sizes = [8, 8], strides = [1, 1]} : vector<64x8xbf16> to vector<8x8xbf16>
    %79 = vector.extract_strided_slice %34 {offsets = [0, 8], sizes = [8, 8], strides = [1, 1]} : vector<16x32xbf16> to vector<8x8xbf16>
    %cst_46 = arith.constant dense<0.000000e+00> : vector<8x8xf32>
    %80 = tpu.matmul %78, %79, %cst_46 {dimension_numbers = #tpu.dot_dimension_numbers<[1], [0], [0], [1], [0, 0, 1, 1], [], []>} : vector<8x8xbf16>, vector<8x8xbf16>, vector<8x8xf32> -> vector<8x8xf32>
    %81 = vector.extract_strided_slice %74 {offsets = [16, 0], sizes = [8, 8], strides = [1, 1]} : vector<64x8xbf16> to vector<8x8xbf16>
    %82 = vector.extract_strided_slice %34 {offsets = [0, 16], sizes = [8, 8], strides = [1, 1]} : vector<16x32xbf16> to vector<8x8xbf16>
    %cst_47 = arith.constant dense<0.000000e+00> : vector<8x8xf32>
    %83 = tpu.matmul %81, %82, %cst_47 {dimension_numbers = #tpu.dot_dimension_numbers<[1], [0], [0], [1], [0, 0, 1, 1], [], []>} : vector<8x8xbf16>, vector<8x8xbf16>, vector<8x8xf32> -> vector<8x8xf32>
    %84 = vector.extract_strided_slice %74 {offsets = [24, 0], sizes = [8, 8], strides = [1, 1]} : vector<64x8xbf16> to vector<8x8xbf16>
    %85 = vector.extract_strided_slice %34 {offsets = [0, 24], sizes = [8, 8], strides = [1, 1]} : vector<16x32xbf16> to vector<8x8xbf16>
    %cst_48 = arith.constant dense<0.000000e+00> : vector<8x8xf32>
    %86 = tpu.matmul %84, %85, %cst_48 {dimension_numbers = #tpu.dot_dimension_numbers<[1], [0], [0], [1], [0, 0, 1, 1], [], []>} : vector<8x8xbf16>, vector<8x8xbf16>, vector<8x8xf32> -> vector<8x8xf32>
    %87 = tpu.concatenate %77, %80, %83, %86 in 1 : vector<8x8xf32>, vector<8x8xf32>, vector<8x8xf32>, vector<8x8xf32> -> vector<8x32xf32>
    %88 = vector.extract_strided_slice %74 {offsets = [32, 0], sizes = [8, 8], strides = [1, 1]} : vector<64x8xbf16> to vector<8x8xbf16>
    %89 = vector.extract_strided_slice %34 {offsets = [8, 0], sizes = [8, 8], strides = [1, 1]} : vector<16x32xbf16> to vector<8x8xbf16>
    %cst_49 = arith.constant dense<0.000000e+00> : vector<8x8xf32>
    %90 = tpu.matmul %88, %89, %cst_49 {dimension_numbers = #tpu.dot_dimension_numbers<[1], [0], [0], [1], [0, 0, 1, 1], [], []>} : vector<8x8xbf16>, vector<8x8xbf16>, vector<8x8xf32> -> vector<8x8xf32>
    %91 = vector.extract_strided_slice %74 {offsets = [40, 0], sizes = [8, 8], strides = [1, 1]} : vector<64x8xbf16> to vector<8x8xbf16>
    %92 = vector.extract_strided_slice %34 {offsets = [8, 8], sizes = [8, 8], strides = [1, 1]} : vector<16x32xbf16> to vector<8x8xbf16>
    %cst_50 = arith.constant dense<0.000000e+00> : vector<8x8xf32>
    %93 = tpu.matmul %91, %92, %cst_50 {dimension_numbers = #tpu.dot_dimension_numbers<[1], [0], [0], [1], [0, 0, 1, 1], [], []>} : vector<8x8xbf16>, vector<8x8xbf16>, vector<8x8xf32> -> vector<8x8xf32>
    %94 = vector.extract_strided_slice %74 {offsets = [48, 0], sizes = [8, 8], strides = [1, 1]} : vector<64x8xbf16> to vector<8x8xbf16>
    %95 = vector.extract_strided_slice %34 {offsets = [8, 16], sizes = [8, 8], strides = [1, 1]} : vector<16x32xbf16> to vector<8x8xbf16>
    %cst_51 = arith.constant dense<0.000000e+00> : vector<8x8xf32>
    %96 = tpu.matmul %94, %95, %cst_51 {dimension_numbers = #tpu.dot_dimension_numbers<[1], [0], [0], [1], [0, 0, 1, 1], [], []>} : vector<8x8xbf16>, vector<8x8xbf16>, vector<8x8xf32> -> vector<8x8xf32>
    %97 = vector.extract_strided_slice %74 {offsets = [56, 0], sizes = [8, 8], strides = [1, 1]} : vector<64x8xbf16> to vector<8x8xbf16>
    %98 = vector.extract_strided_slice %34 {offsets = [8, 24], sizes = [8, 8], strides = [1, 1]} : vector<16x32xbf16> to vector<8x8xbf16>
    %cst_52 = arith.constant dense<0.000000e+00> : vector<8x8xf32>
    %99 = tpu.matmul %97, %98, %cst_52 {dimension_numbers = #tpu.dot_dimension_numbers<[1], [0], [0], [1], [0, 0, 1, 1], [], []>} : vector<8x8xbf16>, vector<8x8xbf16>, vector<8x8xf32> -> vector<8x8xf32>
    %100 = tpu.concatenate %90, %93, %96, %99 in 1 : vector<8x8xf32>, vector<8x8xf32>, vector<8x8xf32>, vector<8x8xf32> -> vector<8x32xf32>
    %101 = tpu.concatenate %87, %100 in 0 : vector<8x32xf32>, vector<8x32xf32> -> vector<16x32xf32>
    %102 = arith.truncf %101 : vector<16x32xf32> to vector<16x32xbf16>
    %cst_53 = arith.constant dense<0.000000e+00> : vector<16x32xf32>
    %103 = tpu.matmul %102, %31, %cst_53 {dimension_numbers = #tpu.dot_dimension_numbers<[1], [0], [0], [1], [0, 0, 1, 1], [], []>} : vector<16x32xbf16>, vector<32x32xbf16>, vector<16x32xf32> -> vector<16x32xf32>
    %104 = vector.broadcast %33 : vector<1x32xf32> to vector<16x32xf32>
    %105 = arith.addf %103, %104 : vector<16x32xf32>
    %106 = arith.addf %105, %11 : vector<16x32xf32>
    %c0_54 = arith.constant 0 : index
    %c0_55 = arith.constant 0 : index
    %c0_56 = arith.constant 0 : index
    %107 = vector.load %arg7[%c0_54, %c0_55, %c0_56] : memref<2x1x32xf32, #tpu.memory_space<vmem>>, vector<1x1x32xf32>
    %108 = vector.shape_cast %107 : vector<1x1x32xf32> to vector<1x32xf32>
    %c0_57 = arith.constant 0 : index
    %c0_58 = arith.constant 0 : index
    %c0_59 = arith.constant 0 : index
    %109 = vector.load %arg8[%c0_57, %c0_58, %c0_59] : memref<2x1x32xf32, #tpu.memory_space<vmem>>, vector<1x1x32xf32>
    %110 = vector.shape_cast %109 : vector<1x1x32xf32> to vector<1x32xf32>
    %cst_60 = arith.constant dense<0.000000e+00> : vector<16xf32>
    %111 = vector.multi_reduction <add>, %106, %cst_60 [1] : vector<16x32xf32> to vector<16xf32>
    %112 = vector.shape_cast %111 : vector<16xf32> to vector<16x1xf32>
    %cst_61 = arith.constant 3.200000e+01 : f32
    %113 = vector.broadcast %cst_61 : f32 to vector<16x1xf32>
    %114 = arith.divf %112, %113 : vector<16x1xf32>
    %115 = vector.broadcast %114 : vector<16x1xf32> to vector<16x32xf32>
    %116 = arith.subf %106, %115 : vector<16x32xf32>
    %117 = arith.mulf %116, %116 : vector<16x32xf32>
    %cst_62 = arith.constant dense<0.000000e+00> : vector<16xf32>
    %118 = vector.multi_reduction <add>, %117, %cst_62 [1] : vector<16x32xf32> to vector<16xf32>
    %119 = vector.shape_cast %118 : vector<16xf32> to vector<16x1xf32>
    %cst_63 = arith.constant 3.200000e+01 : f32
    %120 = vector.broadcast %cst_63 : f32 to vector<16x1xf32>
    %121 = arith.divf %119, %120 : vector<16x1xf32>
    %cst_64 = arith.constant 9.99999974E-6 : f32
    %122 = vector.broadcast %cst_64 : f32 to vector<16x1xf32>
    %123 = arith.addf %121, %122 : vector<16x1xf32>
    %124 = math.rsqrt %123 : vector<16x1xf32>
    %125 = vector.broadcast %124 : vector<16x1xf32> to vector<16x32xf32>
    %126 = arith.mulf %116, %125 : vector<16x32xf32>
    %127 = vector.broadcast %108 : vector<1x32xf32> to vector<16x32xf32>
    %128 = arith.mulf %126, %127 : vector<16x32xf32>
    %129 = vector.broadcast %110 : vector<1x32xf32> to vector<16x32xf32>
    %130 = arith.addf %128, %129 : vector<16x32xf32>
    %131 = arith.truncf %130 : vector<16x32xf32> to vector<16x32xbf16>
    %c0_65 = arith.constant 0 : index
    %c0_66 = arith.constant 0 : index
    %c0_67 = arith.constant 0 : index
    %132 = vector.load %arg9[%c0_65, %c0_66, %c0_67] : memref<2x32x128xbf16, #tpu.memory_space<vmem>>, vector<1x32x128xbf16>
    %133 = vector.shape_cast %132 : vector<1x32x128xbf16> to vector<32x128xbf16>
    %cst_68 = arith.constant dense<0.000000e+00> : vector<16x128xf32>
    %134 = tpu.matmul %131, %133, %cst_68 {dimension_numbers = #tpu.dot_dimension_numbers<[1], [0], [0], [1], [0, 0, 1, 1], [], []>} : vector<16x32xbf16>, vector<32x128xbf16>, vector<16x128xf32> -> vector<16x128xf32>
    %c0_69 = arith.constant 0 : index
    %c0_70 = arith.constant 0 : index
    %c0_71 = arith.constant 0 : index
    %135 = vector.load %arg10[%c0_69, %c0_70, %c0_71] : memref<2x1x128xf32, #tpu.memory_space<vmem>>, vector<1x1x128xf32>
    %136 = vector.shape_cast %135 : vector<1x1x128xf32> to vector<1x128xf32>
    %137 = vector.broadcast %136 : vector<1x128xf32> to vector<16x128xf32>
    %138 = arith.addf %134, %137 : vector<16x128xf32>
    %cst_72 = arith.constant 0.000000e+00 : f32
    %139 = vector.broadcast %cst_72 : f32 to vector<16x128xf32>
    %140 = arith.maximumf %138, %139 : vector<16x128xf32>
    %141 = arith.truncf %140 : vector<16x128xf32> to vector<16x128xbf16>
    %c0_73 = arith.constant 0 : index
    %c0_74 = arith.constant 0 : index
    %c0_75 = arith.constant 0 : index
    %142 = vector.load %arg11[%c0_73, %c0_74, %c0_75] : memref<2x128x32xbf16, #tpu.memory_space<vmem>>, vector<1x128x32xbf16>
    %143 = vector.shape_cast %142 : vector<1x128x32xbf16> to vector<128x32xbf16>
    %cst_76 = arith.constant dense<0.000000e+00> : vector<16x32xf32>
    %144 = tpu.matmul %141, %143, %cst_76 {dimension_numbers = #tpu.dot_dimension_numbers<[1], [0], [0], [1], [0, 0, 1, 1], [], []>} : vector<16x128xbf16>, vector<128x32xbf16>, vector<16x32xf32> -> vector<16x32xf32>
    %c0_77 = arith.constant 0 : index
    %c0_78 = arith.constant 0 : index
    %c0_79 = arith.constant 0 : index
    %145 = vector.load %arg12[%c0_77, %c0_78, %c0_79] : memref<2x1x32xf32, #tpu.memory_space<vmem>>, vector<1x1x32xf32>
    %146 = vector.shape_cast %145 : vector<1x1x32xf32> to vector<1x32xf32>
    %147 = vector.broadcast %146 : vector<1x32xf32> to vector<16x32xf32>
    %148 = arith.addf %144, %147 : vector<16x32xf32>
    %149 = arith.addf %148, %130 : vector<16x32xf32>
    %c0_80 = arith.constant 0 : index
    %c0_81 = arith.constant 0 : index
    %c0_82 = arith.constant 0 : index
    %150 = vector.load %arg13[%c0_80, %c0_81, %c0_82] : memref<2x1x32xf32, #tpu.memory_space<vmem>>, vector<1x1x32xf32>
    %151 = vector.shape_cast %150 : vector<1x1x32xf32> to vector<1x32xf32>
    %c0_83 = arith.constant 0 : index
    %c0_84 = arith.constant 0 : index
    %c0_85 = arith.constant 0 : index
    %152 = vector.load %arg14[%c0_83, %c0_84, %c0_85] : memref<2x1x32xf32, #tpu.memory_space<vmem>>, vector<1x1x32xf32>
    %153 = vector.shape_cast %152 : vector<1x1x32xf32> to vector<1x32xf32>
    %cst_86 = arith.constant dense<0.000000e+00> : vector<16xf32>
    %154 = vector.multi_reduction <add>, %149, %cst_86 [1] : vector<16x32xf32> to vector<16xf32>
    %155 = vector.shape_cast %154 : vector<16xf32> to vector<16x1xf32>
    %cst_87 = arith.constant 3.200000e+01 : f32
    %156 = vector.broadcast %cst_87 : f32 to vector<16x1xf32>
    %157 = arith.divf %155, %156 : vector<16x1xf32>
    %158 = vector.broadcast %157 : vector<16x1xf32> to vector<16x32xf32>
    %159 = arith.subf %149, %158 : vector<16x32xf32>
    %160 = arith.mulf %159, %159 : vector<16x32xf32>
    %cst_88 = arith.constant dense<0.000000e+00> : vector<16xf32>
    %161 = vector.multi_reduction <add>, %160, %cst_88 [1] : vector<16x32xf32> to vector<16xf32>
    %162 = vector.shape_cast %161 : vector<16xf32> to vector<16x1xf32>
    %cst_89 = arith.constant 3.200000e+01 : f32
    %163 = vector.broadcast %cst_89 : f32 to vector<16x1xf32>
    %164 = arith.divf %162, %163 : vector<16x1xf32>
    %cst_90 = arith.constant 9.99999974E-6 : f32
    %165 = vector.broadcast %cst_90 : f32 to vector<16x1xf32>
    %166 = arith.addf %164, %165 : vector<16x1xf32>
    %167 = math.rsqrt %166 : vector<16x1xf32>
    %168 = vector.broadcast %167 : vector<16x1xf32> to vector<16x32xf32>
    %169 = arith.mulf %159, %168 : vector<16x32xf32>
    %170 = vector.broadcast %151 : vector<1x32xf32> to vector<16x32xf32>
    %171 = arith.mulf %169, %170 : vector<16x32xf32>
    %172 = vector.broadcast %153 : vector<1x32xf32> to vector<16x32xf32>
    %173 = arith.addf %171, %172 : vector<16x32xf32>
    %c1_91 = arith.constant 1 : index
    %c0_92 = arith.constant 0 : index
    %c0_93 = arith.constant 0 : index
    %174 = vector.load %arg5[%c1_91, %c0_92, %c0_93] : memref<2x32x32xbf16, #tpu.memory_space<vmem>>, vector<1x32x32xbf16>
    %175 = vector.shape_cast %174 : vector<1x32x32xbf16> to vector<32x32xbf16>
    %c1_94 = arith.constant 1 : index
    %c0_95 = arith.constant 0 : index
    %c0_96 = arith.constant 0 : index
    %176 = vector.load %arg6[%c1_94, %c0_95, %c0_96] : memref<2x1x32xf32, #tpu.memory_space<vmem>>, vector<1x1x32xf32>
    %177 = vector.shape_cast %176 : vector<1x1x32xf32> to vector<1x32xf32>
    %178 = arith.truncf %173 : vector<16x32xf32> to vector<16x32xbf16>
    %cst_97 = arith.constant 0.353553385 : f32
    %179 = vector.broadcast %cst_97 : f32 to vector<16x32xf32>
    %180 = arith.mulf %173, %179 : vector<16x32xf32>
    %181 = arith.truncf %180 : vector<16x32xf32> to vector<16x32xbf16>
    %182 = vector.extract_strided_slice %181 {offsets = [0, 0], sizes = [8, 8], strides = [1, 1]} : vector<16x32xbf16> to vector<8x8xbf16>
    %183 = vector.extract_strided_slice %178 {offsets = [0, 0], sizes = [8, 8], strides = [1, 1]} : vector<16x32xbf16> to vector<8x8xbf16>
    %cst_98 = arith.constant dense<0.000000e+00> : vector<8x8xf32>
    %184 = tpu.matmul %182, %183, %cst_98 {dimension_numbers = #tpu.dot_dimension_numbers<[1], [1], [0], [0], [0, 0, 1, 0], [], []>} : vector<8x8xbf16>, vector<8x8xbf16>, vector<8x8xf32> -> vector<8x8xf32>
    %185 = vector.extract_strided_slice %181 {offsets = [0, 8], sizes = [8, 8], strides = [1, 1]} : vector<16x32xbf16> to vector<8x8xbf16>
    %186 = vector.extract_strided_slice %178 {offsets = [0, 8], sizes = [8, 8], strides = [1, 1]} : vector<16x32xbf16> to vector<8x8xbf16>
    %cst_99 = arith.constant dense<0.000000e+00> : vector<8x8xf32>
    %187 = tpu.matmul %185, %186, %cst_99 {dimension_numbers = #tpu.dot_dimension_numbers<[1], [1], [0], [0], [0, 0, 1, 0], [], []>} : vector<8x8xbf16>, vector<8x8xbf16>, vector<8x8xf32> -> vector<8x8xf32>
    %188 = vector.extract_strided_slice %181 {offsets = [0, 16], sizes = [8, 8], strides = [1, 1]} : vector<16x32xbf16> to vector<8x8xbf16>
    %189 = vector.extract_strided_slice %178 {offsets = [0, 16], sizes = [8, 8], strides = [1, 1]} : vector<16x32xbf16> to vector<8x8xbf16>
    %cst_100 = arith.constant dense<0.000000e+00> : vector<8x8xf32>
    %190 = tpu.matmul %188, %189, %cst_100 {dimension_numbers = #tpu.dot_dimension_numbers<[1], [1], [0], [0], [0, 0, 1, 0], [], []>} : vector<8x8xbf16>, vector<8x8xbf16>, vector<8x8xf32> -> vector<8x8xf32>
    %191 = vector.extract_strided_slice %181 {offsets = [0, 24], sizes = [8, 8], strides = [1, 1]} : vector<16x32xbf16> to vector<8x8xbf16>
    %192 = vector.extract_strided_slice %178 {offsets = [0, 24], sizes = [8, 8], strides = [1, 1]} : vector<16x32xbf16> to vector<8x8xbf16>
    %cst_101 = arith.constant dense<0.000000e+00> : vector<8x8xf32>
    %193 = tpu.matmul %191, %192, %cst_101 {dimension_numbers = #tpu.dot_dimension_numbers<[1], [1], [0], [0], [0, 0, 1, 0], [], []>} : vector<8x8xbf16>, vector<8x8xbf16>, vector<8x8xf32> -> vector<8x8xf32>
    %194 = vector.extract_strided_slice %181 {offsets = [8, 0], sizes = [8, 8], strides = [1, 1]} : vector<16x32xbf16> to vector<8x8xbf16>
    %195 = vector.extract_strided_slice %178 {offsets = [8, 0], sizes = [8, 8], strides = [1, 1]} : vector<16x32xbf16> to vector<8x8xbf16>
    %cst_102 = arith.constant dense<0.000000e+00> : vector<8x8xf32>
    %196 = tpu.matmul %194, %195, %cst_102 {dimension_numbers = #tpu.dot_dimension_numbers<[1], [1], [0], [0], [0, 0, 1, 0], [], []>} : vector<8x8xbf16>, vector<8x8xbf16>, vector<8x8xf32> -> vector<8x8xf32>
    %197 = vector.extract_strided_slice %181 {offsets = [8, 8], sizes = [8, 8], strides = [1, 1]} : vector<16x32xbf16> to vector<8x8xbf16>
    %198 = vector.extract_strided_slice %178 {offsets = [8, 8], sizes = [8, 8], strides = [1, 1]} : vector<16x32xbf16> to vector<8x8xbf16>
    %cst_103 = arith.constant dense<0.000000e+00> : vector<8x8xf32>
    %199 = tpu.matmul %197, %198, %cst_103 {dimension_numbers = #tpu.dot_dimension_numbers<[1], [1], [0], [0], [0, 0, 1, 0], [], []>} : vector<8x8xbf16>, vector<8x8xbf16>, vector<8x8xf32> -> vector<8x8xf32>
    %200 = vector.extract_strided_slice %181 {offsets = [8, 16], sizes = [8, 8], strides = [1, 1]} : vector<16x32xbf16> to vector<8x8xbf16>
    %201 = vector.extract_strided_slice %178 {offsets = [8, 16], sizes = [8, 8], strides = [1, 1]} : vector<16x32xbf16> to vector<8x8xbf16>
    %cst_104 = arith.constant dense<0.000000e+00> : vector<8x8xf32>
    %202 = tpu.matmul %200, %201, %cst_104 {dimension_numbers = #tpu.dot_dimension_numbers<[1], [1], [0], [0], [0, 0, 1, 0], [], []>} : vector<8x8xbf16>, vector<8x8xbf16>, vector<8x8xf32> -> vector<8x8xf32>
    %203 = vector.extract_strided_slice %181 {offsets = [8, 24], sizes = [8, 8], strides = [1, 1]} : vector<16x32xbf16> to vector<8x8xbf16>
    %204 = vector.extract_strided_slice %178 {offsets = [8, 24], sizes = [8, 8], strides = [1, 1]} : vector<16x32xbf16> to vector<8x8xbf16>
    %cst_105 = arith.constant dense<0.000000e+00> : vector<8x8xf32>
    %205 = tpu.matmul %203, %204, %cst_105 {dimension_numbers = #tpu.dot_dimension_numbers<[1], [1], [0], [0], [0, 0, 1, 0], [], []>} : vector<8x8xbf16>, vector<8x8xbf16>, vector<8x8xf32> -> vector<8x8xf32>
    %206 = tpu.concatenate %184, %187, %190, %193, %196, %199, %202, %205 in 0 : vector<8x8xf32>, vector<8x8xf32>, vector<8x8xf32>, vector<8x8xf32>, vector<8x8xf32>, vector<8x8xf32>, vector<8x8xf32>, vector<8x8xf32> -> vector<64x8xf32>
    %207 = arith.addf %206, %29 : vector<64x8xf32>
    %cst_106 = arith.constant dense<0xFF800000> : vector<64xf32>
    %208 = vector.multi_reduction <maximumf>, %207, %cst_106 [1] : vector<64x8xf32> to vector<64xf32>
    %209 = vector.shape_cast %208 : vector<64xf32> to vector<64x1xf32>
    %210 = vector.broadcast %209 : vector<64x1xf32> to vector<64x8xf32>
    %211 = arith.subf %207, %210 : vector<64x8xf32>
    %212 = math.exp %211 : vector<64x8xf32>
    %cst_107 = arith.constant dense<0.000000e+00> : vector<64xf32>
    %213 = vector.multi_reduction <add>, %212, %cst_107 [1] : vector<64x8xf32> to vector<64xf32>
    %214 = vector.shape_cast %213 : vector<64xf32> to vector<64x1xf32>
    %215 = tpu.reciprocal %214 {approx = true} : vector<64x1xf32> -> vector<64x1xf32>
    %216 = vector.broadcast %215 : vector<64x1xf32> to vector<64x8xf32>
    %217 = arith.mulf %212, %216 : vector<64x8xf32>
    %218 = arith.truncf %217 : vector<64x8xf32> to vector<64x8xbf16>
    %219 = vector.extract_strided_slice %218 {offsets = [0, 0], sizes = [8, 8], strides = [1, 1]} : vector<64x8xbf16> to vector<8x8xbf16>
    %220 = vector.extract_strided_slice %178 {offsets = [0, 0], sizes = [8, 8], strides = [1, 1]} : vector<16x32xbf16> to vector<8x8xbf16>
    %cst_108 = arith.constant dense<0.000000e+00> : vector<8x8xf32>
    %221 = tpu.matmul %219, %220, %cst_108 {dimension_numbers = #tpu.dot_dimension_numbers<[1], [0], [0], [1], [0, 0, 1, 1], [], []>} : vector<8x8xbf16>, vector<8x8xbf16>, vector<8x8xf32> -> vector<8x8xf32>
    %222 = vector.extract_strided_slice %218 {offsets = [8, 0], sizes = [8, 8], strides = [1, 1]} : vector<64x8xbf16> to vector<8x8xbf16>
    %223 = vector.extract_strided_slice %178 {offsets = [0, 8], sizes = [8, 8], strides = [1, 1]} : vector<16x32xbf16> to vector<8x8xbf16>
    %cst_109 = arith.constant dense<0.000000e+00> : vector<8x8xf32>
    %224 = tpu.matmul %222, %223, %cst_109 {dimension_numbers = #tpu.dot_dimension_numbers<[1], [0], [0], [1], [0, 0, 1, 1], [], []>} : vector<8x8xbf16>, vector<8x8xbf16>, vector<8x8xf32> -> vector<8x8xf32>
    %225 = vector.extract_strided_slice %218 {offsets = [16, 0], sizes = [8, 8], strides = [1, 1]} : vector<64x8xbf16> to vector<8x8xbf16>
    %226 = vector.extract_strided_slice %178 {offsets = [0, 16], sizes = [8, 8], strides = [1, 1]} : vector<16x32xbf16> to vector<8x8xbf16>
    %cst_110 = arith.constant dense<0.000000e+00> : vector<8x8xf32>
    %227 = tpu.matmul %225, %226, %cst_110 {dimension_numbers = #tpu.dot_dimension_numbers<[1], [0], [0], [1], [0, 0, 1, 1], [], []>} : vector<8x8xbf16>, vector<8x8xbf16>, vector<8x8xf32> -> vector<8x8xf32>
    %228 = vector.extract_strided_slice %218 {offsets = [24, 0], sizes = [8, 8], strides = [1, 1]} : vector<64x8xbf16> to vector<8x8xbf16>
    %229 = vector.extract_strided_slice %178 {offsets = [0, 24], sizes = [8, 8], strides = [1, 1]} : vector<16x32xbf16> to vector<8x8xbf16>
    %cst_111 = arith.constant dense<0.000000e+00> : vector<8x8xf32>
    %230 = tpu.matmul %228, %229, %cst_111 {dimension_numbers = #tpu.dot_dimension_numbers<[1], [0], [0], [1], [0, 0, 1, 1], [], []>} : vector<8x8xbf16>, vector<8x8xbf16>, vector<8x8xf32> -> vector<8x8xf32>
    %231 = tpu.concatenate %221, %224, %227, %230 in 1 : vector<8x8xf32>, vector<8x8xf32>, vector<8x8xf32>, vector<8x8xf32> -> vector<8x32xf32>
    %232 = vector.extract_strided_slice %218 {offsets = [32, 0], sizes = [8, 8], strides = [1, 1]} : vector<64x8xbf16> to vector<8x8xbf16>
    %233 = vector.extract_strided_slice %178 {offsets = [8, 0], sizes = [8, 8], strides = [1, 1]} : vector<16x32xbf16> to vector<8x8xbf16>
    %cst_112 = arith.constant dense<0.000000e+00> : vector<8x8xf32>
    %234 = tpu.matmul %232, %233, %cst_112 {dimension_numbers = #tpu.dot_dimension_numbers<[1], [0], [0], [1], [0, 0, 1, 1], [], []>} : vector<8x8xbf16>, vector<8x8xbf16>, vector<8x8xf32> -> vector<8x8xf32>
    %235 = vector.extract_strided_slice %218 {offsets = [40, 0], sizes = [8, 8], strides = [1, 1]} : vector<64x8xbf16> to vector<8x8xbf16>
    %236 = vector.extract_strided_slice %178 {offsets = [8, 8], sizes = [8, 8], strides = [1, 1]} : vector<16x32xbf16> to vector<8x8xbf16>
    %cst_113 = arith.constant dense<0.000000e+00> : vector<8x8xf32>
    %237 = tpu.matmul %235, %236, %cst_113 {dimension_numbers = #tpu.dot_dimension_numbers<[1], [0], [0], [1], [0, 0, 1, 1], [], []>} : vector<8x8xbf16>, vector<8x8xbf16>, vector<8x8xf32> -> vector<8x8xf32>
    %238 = vector.extract_strided_slice %218 {offsets = [48, 0], sizes = [8, 8], strides = [1, 1]} : vector<64x8xbf16> to vector<8x8xbf16>
    %239 = vector.extract_strided_slice %178 {offsets = [8, 16], sizes = [8, 8], strides = [1, 1]} : vector<16x32xbf16> to vector<8x8xbf16>
    %cst_114 = arith.constant dense<0.000000e+00> : vector<8x8xf32>
    %240 = tpu.matmul %238, %239, %cst_114 {dimension_numbers = #tpu.dot_dimension_numbers<[1], [0], [0], [1], [0, 0, 1, 1], [], []>} : vector<8x8xbf16>, vector<8x8xbf16>, vector<8x8xf32> -> vector<8x8xf32>
    %241 = vector.extract_strided_slice %218 {offsets = [56, 0], sizes = [8, 8], strides = [1, 1]} : vector<64x8xbf16> to vector<8x8xbf16>
    %242 = vector.extract_strided_slice %178 {offsets = [8, 24], sizes = [8, 8], strides = [1, 1]} : vector<16x32xbf16> to vector<8x8xbf16>
    %cst_115 = arith.constant dense<0.000000e+00> : vector<8x8xf32>
    %243 = tpu.matmul %241, %242, %cst_115 {dimension_numbers = #tpu.dot_dimension_numbers<[1], [0], [0], [1], [0, 0, 1, 1], [], []>} : vector<8x8xbf16>, vector<8x8xbf16>, vector<8x8xf32> -> vector<8x8xf32>
    %244 = tpu.concatenate %234, %237, %240, %243 in 1 : vector<8x8xf32>, vector<8x8xf32>, vector<8x8xf32>, vector<8x8xf32> -> vector<8x32xf32>
    %245 = tpu.concatenate %231, %244 in 0 : vector<8x32xf32>, vector<8x32xf32> -> vector<16x32xf32>
    %246 = arith.truncf %245 : vector<16x32xf32> to vector<16x32xbf16>
    %cst_116 = arith.constant dense<0.000000e+00> : vector<16x32xf32>
    %247 = tpu.matmul %246, %175, %cst_116 {dimension_numbers = #tpu.dot_dimension_numbers<[1], [0], [0], [1], [0, 0, 1, 1], [], []>} : vector<16x32xbf16>, vector<32x32xbf16>, vector<16x32xf32> -> vector<16x32xf32>
    %248 = vector.broadcast %177 : vector<1x32xf32> to vector<16x32xf32>
    %249 = arith.addf %247, %248 : vector<16x32xf32>
    %250 = arith.addf %249, %173 : vector<16x32xf32>
    %c1_117 = arith.constant 1 : index
    %c0_118 = arith.constant 0 : index
    %c0_119 = arith.constant 0 : index
    %251 = vector.load %arg7[%c1_117, %c0_118, %c0_119] : memref<2x1x32xf32, #tpu.memory_space<vmem>>, vector<1x1x32xf32>
    %252 = vector.shape_cast %251 : vector<1x1x32xf32> to vector<1x32xf32>
    %c1_120 = arith.constant 1 : index
    %c0_121 = arith.constant 0 : index
    %c0_122 = arith.constant 0 : index
    %253 = vector.load %arg8[%c1_120, %c0_121, %c0_122] : memref<2x1x32xf32, #tpu.memory_space<vmem>>, vector<1x1x32xf32>
    %254 = vector.shape_cast %253 : vector<1x1x32xf32> to vector<1x32xf32>
    %cst_123 = arith.constant dense<0.000000e+00> : vector<16xf32>
    %255 = vector.multi_reduction <add>, %250, %cst_123 [1] : vector<16x32xf32> to vector<16xf32>
    %256 = vector.shape_cast %255 : vector<16xf32> to vector<16x1xf32>
    %cst_124 = arith.constant 3.200000e+01 : f32
    %257 = vector.broadcast %cst_124 : f32 to vector<16x1xf32>
    %258 = arith.divf %256, %257 : vector<16x1xf32>
    %259 = vector.broadcast %258 : vector<16x1xf32> to vector<16x32xf32>
    %260 = arith.subf %250, %259 : vector<16x32xf32>
    %261 = arith.mulf %260, %260 : vector<16x32xf32>
    %cst_125 = arith.constant dense<0.000000e+00> : vector<16xf32>
    %262 = vector.multi_reduction <add>, %261, %cst_125 [1] : vector<16x32xf32> to vector<16xf32>
    %263 = vector.shape_cast %262 : vector<16xf32> to vector<16x1xf32>
    %cst_126 = arith.constant 3.200000e+01 : f32
    %264 = vector.broadcast %cst_126 : f32 to vector<16x1xf32>
    %265 = arith.divf %263, %264 : vector<16x1xf32>
    %cst_127 = arith.constant 9.99999974E-6 : f32
    %266 = vector.broadcast %cst_127 : f32 to vector<16x1xf32>
    %267 = arith.addf %265, %266 : vector<16x1xf32>
    %268 = math.rsqrt %267 : vector<16x1xf32>
    %269 = vector.broadcast %268 : vector<16x1xf32> to vector<16x32xf32>
    %270 = arith.mulf %260, %269 : vector<16x32xf32>
    %271 = vector.broadcast %252 : vector<1x32xf32> to vector<16x32xf32>
    %272 = arith.mulf %270, %271 : vector<16x32xf32>
    %273 = vector.broadcast %254 : vector<1x32xf32> to vector<16x32xf32>
    %274 = arith.addf %272, %273 : vector<16x32xf32>
    %275 = arith.truncf %274 : vector<16x32xf32> to vector<16x32xbf16>
    %c1_128 = arith.constant 1 : index
    %c0_129 = arith.constant 0 : index
    %c0_130 = arith.constant 0 : index
    %276 = vector.load %arg9[%c1_128, %c0_129, %c0_130] : memref<2x32x128xbf16, #tpu.memory_space<vmem>>, vector<1x32x128xbf16>
    %277 = vector.shape_cast %276 : vector<1x32x128xbf16> to vector<32x128xbf16>
    %cst_131 = arith.constant dense<0.000000e+00> : vector<16x128xf32>
    %278 = tpu.matmul %275, %277, %cst_131 {dimension_numbers = #tpu.dot_dimension_numbers<[1], [0], [0], [1], [0, 0, 1, 1], [], []>} : vector<16x32xbf16>, vector<32x128xbf16>, vector<16x128xf32> -> vector<16x128xf32>
    %c1_132 = arith.constant 1 : index
    %c0_133 = arith.constant 0 : index
    %c0_134 = arith.constant 0 : index
    %279 = vector.load %arg10[%c1_132, %c0_133, %c0_134] : memref<2x1x128xf32, #tpu.memory_space<vmem>>, vector<1x1x128xf32>
    %280 = vector.shape_cast %279 : vector<1x1x128xf32> to vector<1x128xf32>
    %281 = vector.broadcast %280 : vector<1x128xf32> to vector<16x128xf32>
    %282 = arith.addf %278, %281 : vector<16x128xf32>
    %cst_135 = arith.constant 0.000000e+00 : f32
    %283 = vector.broadcast %cst_135 : f32 to vector<16x128xf32>
    %284 = arith.maximumf %282, %283 : vector<16x128xf32>
    %285 = arith.truncf %284 : vector<16x128xf32> to vector<16x128xbf16>
    %c1_136 = arith.constant 1 : index
    %c0_137 = arith.constant 0 : index
    %c0_138 = arith.constant 0 : index
    %286 = vector.load %arg11[%c1_136, %c0_137, %c0_138] : memref<2x128x32xbf16, #tpu.memory_space<vmem>>, vector<1x128x32xbf16>
    %287 = vector.shape_cast %286 : vector<1x128x32xbf16> to vector<128x32xbf16>
    %cst_139 = arith.constant dense<0.000000e+00> : vector<16x32xf32>
    %288 = tpu.matmul %285, %287, %cst_139 {dimension_numbers = #tpu.dot_dimension_numbers<[1], [0], [0], [1], [0, 0, 1, 1], [], []>} : vector<16x128xbf16>, vector<128x32xbf16>, vector<16x32xf32> -> vector<16x32xf32>
    %c1_140 = arith.constant 1 : index
    %c0_141 = arith.constant 0 : index
    %c0_142 = arith.constant 0 : index
    %289 = vector.load %arg12[%c1_140, %c0_141, %c0_142] : memref<2x1x32xf32, #tpu.memory_space<vmem>>, vector<1x1x32xf32>
    %290 = vector.shape_cast %289 : vector<1x1x32xf32> to vector<1x32xf32>
    %291 = vector.broadcast %290 : vector<1x32xf32> to vector<16x32xf32>
    %292 = arith.addf %288, %291 : vector<16x32xf32>
    %293 = arith.addf %292, %274 : vector<16x32xf32>
    %c1_143 = arith.constant 1 : index
    %c0_144 = arith.constant 0 : index
    %c0_145 = arith.constant 0 : index
    %294 = vector.load %arg13[%c1_143, %c0_144, %c0_145] : memref<2x1x32xf32, #tpu.memory_space<vmem>>, vector<1x1x32xf32>
    %295 = vector.shape_cast %294 : vector<1x1x32xf32> to vector<1x32xf32>
    %c1_146 = arith.constant 1 : index
    %c0_147 = arith.constant 0 : index
    %c0_148 = arith.constant 0 : index
    %296 = vector.load %arg14[%c1_146, %c0_147, %c0_148] : memref<2x1x32xf32, #tpu.memory_space<vmem>>, vector<1x1x32xf32>
    %297 = vector.shape_cast %296 : vector<1x1x32xf32> to vector<1x32xf32>
    %cst_149 = arith.constant dense<0.000000e+00> : vector<16xf32>
    %298 = vector.multi_reduction <add>, %293, %cst_149 [1] : vector<16x32xf32> to vector<16xf32>
    %299 = vector.shape_cast %298 : vector<16xf32> to vector<16x1xf32>
    %cst_150 = arith.constant 3.200000e+01 : f32
    %300 = vector.broadcast %cst_150 : f32 to vector<16x1xf32>
    %301 = arith.divf %299, %300 : vector<16x1xf32>
    %302 = vector.broadcast %301 : vector<16x1xf32> to vector<16x32xf32>
    %303 = arith.subf %293, %302 : vector<16x32xf32>
    %304 = arith.mulf %303, %303 : vector<16x32xf32>
    %cst_151 = arith.constant dense<0.000000e+00> : vector<16xf32>
    %305 = vector.multi_reduction <add>, %304, %cst_151 [1] : vector<16x32xf32> to vector<16xf32>
    %306 = vector.shape_cast %305 : vector<16xf32> to vector<16x1xf32>
    %cst_152 = arith.constant 3.200000e+01 : f32
    %307 = vector.broadcast %cst_152 : f32 to vector<16x1xf32>
    %308 = arith.divf %306, %307 : vector<16x1xf32>
    %cst_153 = arith.constant 9.99999974E-6 : f32
    %309 = vector.broadcast %cst_153 : f32 to vector<16x1xf32>
    %310 = arith.addf %308, %309 : vector<16x1xf32>
    %311 = math.rsqrt %310 : vector<16x1xf32>
    %312 = vector.broadcast %311 : vector<16x1xf32> to vector<16x32xf32>
    %313 = arith.mulf %303, %312 : vector<16x32xf32>
    %314 = vector.broadcast %295 : vector<1x32xf32> to vector<16x32xf32>
    %315 = arith.mulf %313, %314 : vector<16x32xf32>
    %316 = vector.broadcast %297 : vector<1x32xf32> to vector<16x32xf32>
    %317 = arith.addf %315, %316 : vector<16x32xf32>
    %c0_154 = arith.constant 0 : index
    %c0_155 = arith.constant 0 : index
    %318 = vector.load %arg15[%c0_154, %c0_155] : memref<16x32xf32, #tpu.memory_space<vmem>>, vector<16x32xf32>
    tpu.vector_store %arg15[%c0_154, %c0_155], %317 {strides = array<i32>} : memref<16x32xf32, #tpu.memory_space<vmem>>, vector<16x32xf32>,
    return
  }
  func.func @transform_0(%arg0: i32) -> (i32, i32) {
    %c0_i32 = arith.constant 0 : i32
    %c0_i32_0 = arith.constant 0 : i32
    return %arg0, %c0_i32 : i32, i32
  }
  func.func @transform_1(%arg0: i32) -> (i32, i32, i32) {
    %c0_i32 = arith.constant 0 : i32
    %c0_i32_0 = arith.constant 0 : i32
    %c0_i32_1 = arith.constant 0 : i32
    return %arg0, %c0_i32, %c0_i32_0 : i32, i32, i32
  }
  func.func @transform_2(%arg0: i32) -> (i32, i32) {
    %c0_i32 = arith.constant 0 : i32
    %c0_i32_0 = arith.constant 0 : i32
    %c0_i32_1 = arith.constant 0 : i32
    return %c0_i32, %c0_i32_0 : i32, i32
  }
  func.func @transform_3(%arg0: i32) -> (i32, i32) {
    %c0_i32 = arith.constant 0 : i32
    %c0_i32_0 = arith.constant 0 : i32
    %c0_i32_1 = arith.constant 0 : i32
    return %c0_i32, %c0_i32_0 : i32, i32
  }
  func.func @transform_4(%arg0: i32) -> (i32, i32, i32) {
    %c0_i32 = arith.constant 0 : i32
    %c0_i32_0 = arith.constant 0 : i32
    %c0_i32_1 = arith.constant 0 : i32
    %c0_i32_2 = arith.constant 0 : i32
    return %c0_i32, %c0_i32_0, %c0_i32_1 : i32, i32, i32
  }
  func.func @transform_5(%arg0: i32) -> (i32, i32, i32) {
    %c0_i32 = arith.constant 0 : i32
    %c0_i32_0 = arith.constant 0 : i32
    %c0_i32_1 = arith.constant 0 : i32
    %c0_i32_2 = arith.constant 0 : i32
    return %c0_i32, %c0_i32_0, %c0_i32_1 : i32, i32, i32
  }
  func.func @transform_6(%arg0: i32) -> (i32, i32, i32) {
    %c0_i32 = arith.constant 0 : i32
    %c0_i32_0 = arith.constant 0 : i32
    %c0_i32_1 = arith.constant 0 : i32
    %c0_i32_2 = arith.constant 0 : i32
    return %c0_i32, %c0_i32_0, %c0_i32_1 : i32, i32, i32
  }
  func.func @transform_7(%arg0: i32) -> (i32, i32, i32) {
    %c0_i32 = arith.constant 0 : i32
    %c0_i32_0 = arith.constant 0 : i32
    %c0_i32_1 = arith.constant 0 : i32
    %c0_i32_2 = arith.constant 0 : i32
    return %c0_i32, %c0_i32_0, %c0_i32_1 : i32, i32, i32
  }
  func.func @transform_8(%arg0: i32) -> (i32, i32, i32) {
    %c0_i32 = arith.constant 0 : i32
    %c0_i32_0 = arith.constant 0 : i32
    %c0_i32_1 = arith.constant 0 : i32
    %c0_i32_2 = arith.constant 0 : i32
    return %c0_i32, %c0_i32_0, %c0_i32_1 : i32, i32, i32
  }
  func.func @transform_9(%arg0: i32) -> (i32, i32, i32) {
    %c0_i32 = arith.constant 0 : i32
    %c0_i32_0 = arith.constant 0 : i32
    %c0_i32_1 = arith.constant 0 : i32
    %c0_i32_2 = arith.constant 0 : i32
    return %c0_i32, %c0_i32_0, %c0_i32_1 : i32, i32, i32
  }
  func.func @transform_10(%arg0: i32) -> (i32, i32, i32) {
    %c0_i32 = arith.constant 0 : i32
    %c0_i32_0 = arith.constant 0 : i32
    %c0_i32_1 = arith.constant 0 : i32
    %c0_i32_2 = arith.constant 0 : i32
    return %c0_i32, %c0_i32_0, %c0_i32_1 : i32, i32, i32
  }
  func.func @transform_11(%arg0: i32) -> (i32, i32, i32) {
    %c0_i32 = arith.constant 0 : i32
    %c0_i32_0 = arith.constant 0 : i32
    %c0_i32_1 = arith.constant 0 : i32
    %c0_i32_2 = arith.constant 0 : i32
    return %c0_i32, %c0_i32_0, %c0_i32_1 : i32, i32, i32
  }
  func.func @transform_12(%arg0: i32) -> (i32, i32, i32) {
    %c0_i32 = arith.constant 0 : i32
    %c0_i32_0 = arith.constant 0 : i32
    %c0_i32_1 = arith.constant 0 : i32
    %c0_i32_2 = arith.constant 0 : i32
    return %c0_i32, %c0_i32_0, %c0_i32_1 : i32, i32, i32
  }
  func.func @transform_13(%arg0: i32) -> (i32, i32, i32) {
    %c0_i32 = arith.constant 0 : i32
    %c0_i32_0 = arith.constant 0 : i32
    %c0_i32_1 = arith.constant 0 : i32
    %c0_i32_2 = arith.constant 0 : i32
    return %c0_i32, %c0_i32_0, %c0_i32_1 : i32, i32, i32
  }
  func.func @transform_14(%arg0: i32) -> (i32, i32) {
    %c0_i32 = arith.constant 0 : i32
    %c0_i32_0 = arith.constant 0 : i32
    return %arg0, %c0_i32 : i32, i32
  }
}

</mosaic_0001>

<llo_original>
// kernel: encoder_forward.1
$region0: #{encoder_forward.1}
  #allocation0 [shape = 'u32[]', space=smem, size = 0x4, offset = 0x4, fixed_abs, tag = 'smem constant byte address 0x4 - core index']
  #allocation1 [shape = 'u32[144,128]{1,0:T(1,128)}', space=vmem, size = 0x12000, scoped, tag = 'internal scratch']
  %s0 = inlined_call_operand.vmem [shape: s32[16,1], index: 0, kind: input, shape index: {}]
  %s1 = inlined_call_operand.vmem [shape: bf16[2,8,8], index: 1, kind: input, shape index: {}]
  %s2 = inlined_call_operand.vmem [shape: bf16[64,32], index: 2, kind: input, shape index: {}]
  %s3 = inlined_call_operand.vmem [shape: f32[16,32], index: 3, kind: input, shape index: {}]
  %s4 = inlined_call_operand.vmem [shape: bf16[2,32,32], index: 4, kind: input, shape index: {}]
  %s5 = inlined_call_operand.vmem [shape: f32[2,1,32], index: 5, kind: input, shape index: {}]
  %s6 = inlined_call_operand.vmem [shape: f32[2,1,32], index: 6, kind: input, shape index: {}]
  %s7 = inlined_call_operand.vmem [shape: f32[2,1,32], index: 7, kind: input, shape index: {}]
  %s8 = inlined_call_operand.vmem [shape: bf16[2,32,128], index: 8, kind: input, shape index: {}]
  %s9 = inlined_call_operand.vmem [shape: f32[2,1,128], index: 9, kind: input, shape index: {}]
  %s10 = inlined_call_operand.vmem [shape: bf16[2,128,32], index: 10, kind: input, shape index: {}]
  %s11 = inlined_call_operand.vmem [shape: f32[2,1,32], index: 11, kind: input, shape index: {}]
  %s12 = inlined_call_operand.vmem [shape: f32[2,1,32], index: 12, kind: input, shape index: {}]
  %s13 = inlined_call_operand.vmem [shape: f32[2,1,32], index: 13, kind: input, shape index: {}]
  %s14 = inlined_call_operand.hbm [shape: f32[16,32], index: 14, kind: output, shape index: {}]
  %s15 = sld [smem:[#allocation0]]
  $region66: #{encoder_forward.1} parent=0
    _
  %s17 = ssub.s32 1, %s15
  %s18 = scalar_select 0, %s17, %s15
  $region1: #{encoder_forward.1} parent=0
    #allocation2 [shape = 'u8[8192]{0}', space=vmem, size = 0x2000, scoped, tag = 'output window, operand 0, single buffered']
    #allocation3 [shape = 's32[1]{0}', space=sflag, size = 0x4, scoped, tag = 'scoped memory for encoder_forward.1']
    %19 = vsyncpa [#allocation3], 0
    // Predicated region
    $region2: #{encoder_forward.1} parent=1 // pred_check
      _
    $region3: #{encoder_forward.1} parent=1 // pred_check_branch
      %21 = sbr.rel (0) target = $region5
    $region4: #{encoder_forward.1} parent=1 // pred_region
      _
    $region5: #{encoder_forward.1} parent=1 // pred_fallthru
      _
    // Predicated region
    $region6: #{encoder_forward.1} parent=1 // pred_check
      _
    $region7: #{encoder_forward.1} parent=1 // pred_check_branch
      %23 = sbr.rel (0) target = $region9
    $region8: #{encoder_forward.1} parent=1 // pred_region
      _
    $region9: #{encoder_forward.1} parent=1 // pred_fallthru
      _
    // Predicated region
    $region10: #{encoder_forward.1} parent=1 // pred_check
      _
    $region11: #{encoder_forward.1} parent=1 // pred_check_branch
      %25 = sbr.rel (0) target = $region13
    $region12: #{encoder_forward.1} parent=1 // pred_region
      _
    $region13: #{encoder_forward.1} parent=1 // pred_fallthru
      _
    // Predicated region
    $region14: #{encoder_forward.1} parent=1 // pred_check
      _
    $region15: #{encoder_forward.1} parent=1 // pred_check_branch
      %27 = sbr.rel (0) target = $region17
    $region16: #{encoder_forward.1} parent=1 // pred_region
      _
    $region17: #{encoder_forward.1} parent=1 // pred_fallthru
      _
    // Predicated region
    $region18: #{encoder_forward.1} parent=1 // pred_check
      _
    $region19: #{encoder_forward.1} parent=1 // pred_check_branch
      %29 = sbr.rel (0) target = $region21
    $region20: #{encoder_forward.1} parent=1 // pred_region
      _
    $region21: #{encoder_forward.1} parent=1 // pred_fallthru
      _
    // Predicated region
    $region22: #{encoder_forward.1} parent=1 // pred_check
      _
    $region23: #{encoder_forward.1} parent=1 // pred_check_branch
      %31 = sbr.rel (0) target = $region25
    $region24: #{encoder_forward.1} parent=1 // pred_region
      _
    $region25: #{encoder_forward.1} parent=1 // pred_fallthru
      _
    // Predicated region
    $region26: #{encoder_forward.1} parent=1 // pred_check
      _
    $region27: #{encoder_forward.1} parent=1 // pred_check_branch
      %33 = sbr.rel (0) target = $region29
    $region28: #{encoder_forward.1} parent=1 // pred_region
      _
    $region29: #{encoder_forward.1} parent=1 // pred_fallthru
      _
    // Predicated region
    $region30: #{encoder_forward.1} parent=1 // pred_check
      _
    $region31: #{encoder_forward.1} parent=1 // pred_check_branch
      %35 = sbr.rel (0) target = $region33
    $region32: #{encoder_forward.1} parent=1 // pred_region
      _
    $region33: #{encoder_forward.1} parent=1 // pred_fallthru
      _
    // Predicated region
    $region34: #{encoder_forward.1} parent=1 // pred_check
      _
    $region35: #{encoder_forward.1} parent=1 // pred_check_branch
      %37 = sbr.rel (0) target = $region37
    $region36: #{encoder_forward.1} parent=1 // pred_region
      _
    $region37: #{encoder_forward.1} parent=1 // pred_fallthru
      _
    // Predicated region
    $region38: #{encoder_forward.1} parent=1 // pred_check
      _
    $region39: #{encoder_forward.1} parent=1 // pred_check_branch
      %39 = sbr.rel (0) target = $region41
    $region40: #{encoder_forward.1} parent=1 // pred_region
      _
    $region41: #{encoder_forward.1} parent=1 // pred_fallthru
      _
    // Predicated region
    $region42: #{encoder_forward.1} parent=1 // pred_check
      _
    $region43: #{encoder_forward.1} parent=1 // pred_check_branch
      %41 = sbr.rel (0) target = $region45
    $region44: #{encoder_forward.1} parent=1 // pred_region
      _
    $region45: #{encoder_forward.1} parent=1 // pred_fallthru
      _
    // Predicated region
    $region46: #{encoder_forward.1} parent=1 // pred_check
      _
    $region47: #{encoder_forward.1} parent=1 // pred_check_branch
      %43 = sbr.rel (0) target = $region49
    $region48: #{encoder_forward.1} parent=1 // pred_region
      _
    $region49: #{encoder_forward.1} parent=1 // pred_fallthru
      _
    // Predicated region
    $region50: #{encoder_forward.1} parent=1 // pred_check
      _
    $region51: #{encoder_forward.1} parent=1 // pred_check_branch
      %45 = sbr.rel (0) target = $region53
    $region52: #{encoder_forward.1} parent=1 // pred_region
      _
    $region53: #{encoder_forward.1} parent=1 // pred_fallthru
      _
    // Predicated region
    $region54: #{encoder_forward.1} parent=1 // pred_check
      _
    $region55: #{encoder_forward.1} parent=1 // pred_check_branch
      %47 = sbr.rel (0) target = $region57
    $region56: #{encoder_forward.1} parent=1 // pred_region
      _
    $region57: #{encoder_forward.1} parent=1 // pred_fallthru
      _
    %v49 = vld [vmem:[%s0] sm:$0xff]
    %v50 = vld [vmem:[%s0 + $0x8] sm:$0xff]
    %v51 = vlaneseq
    %v52 = vand.u32 %v51, 127
    %53 = vset.pattern.permute.xlu0 0
    %54 = vperm.xlu0 %53, %v49
    %v55 = vpop.permute.xlu0 %54
    %56 = vset.pattern.permute.xlu0 0
    %57 = vperm.xlu0 %56, %v50
    %v58 = vpop.permute.xlu0 %57
    %vm59 = vcmp.eq.s32.totalorder %v52, %v55
    %vm60 = vcmp.eq.s32.totalorder %v52, %v58
    %v61 = vsel %vm59, 1, 0
    %v62 = vsel %vm60, 1, 0
    %v63 = vcvt.s32.f32 %v61
    %v64 = vcvt.s32.f32 %v62
    %v65 = vpack.c.bf16 %v64, %v63
    %v66 = vld [vmem:[%s2] sm:$0xf]
    %v67 = vld [vmem:[%s2 + $0x4] sm:$0xf]
    %v68 = vld [vmem:[%s2 + $0x8] sm:$0xf]
    %v69 = vld [vmem:[%s2 + $0xc] sm:$0xf]
    %v70 = vld [vmem:[%s2 + $0x10] sm:$0xf]
    %v71 = vld [vmem:[%s2 + $0x14] sm:$0xf]
    %v72 = vld [vmem:[%s2 + $0x18] sm:$0xf]
    %v73 = vld [vmem:[%s2 + $0x1c] sm:$0xf]
    %v74 = vld [vmem:[%s3] sm:$0xff]
    %v83 = vunpack.c.l.b16 %v66
    %v84 = vunpack.c.l.b16 %v67
    %v85 = vunpack.c.l.b16 %v68
    %v86 = vunpack.c.l.b16 %v69
    %v87 = vunpack.c.l.b16 %v70
    %v88 = vunpack.c.l.b16 %v71
    %v89 = vunpack.c.l.b16 %v72
    %v90 = vunpack.c.l.b16 %v73
    %v91 = vpack.c.b16 %v84, %v83
    %v92 = vpack.c.b16 %v86, %v85
    %v93 = vpack.c.b16 %v88, %v87
    %v94 = vpack.c.b16 %v90, %v89
    %vm99 = vcmask 523264
    %v101 = vsel %vm99, %v65, 0
    %103 = vmatprep.subr.bf16.mxu0 0
    %104 = vmatpush1.bf16.msra.mxu0 0
    %105 = vmatprep.subr.bf16.mxu0 0
    %106 = vmatpush1.bf16.msra.mxu0 0
    %107 = vmatprep.subr.bf16.mxu0 0
    %108 = vmatpush1.bf16.msra.mxu0 0
    %109 = vmatprep.subr.bf16.mxu0 0
    %110 = vmatpush1.bf16.msra.mxu0 0
    %111 = vmatprep.subr.bf16.mxu0 0
    %112 = vmatpush1.bf16.msra.mxu0 %v94
    %113 = vmatprep.subr.bf16.mxu0 0
    %114 = vmatpush1.bf16.msra.mxu0 %v93
    %115 = vmatprep.subr.bf16.mxu0 0
    %116 = vmatpush1.bf16.msra.mxu0 %v92
    %117 = vmatprep.subr.bf16.mxu0 0
    %118 = vmatpush1.bf16.msra.mxu0 %v91
    %119 = vmatprep.subr.bf16.mxu0 0
    %120 = vmatpush2.bf16.msra.mxu0 0
    %121 = vmatprep.subr.bf16.mxu0 0
    %122 = vmatpush2.bf16.msra.mxu0 0
    %123 = vmatprep.subr.bf16.mxu0 0
    %124 = vmatpush2.bf16.msra.mxu0 0
    %125 = vmatprep.subr.bf16.mxu0 0
    %126 = vmatpush2.bf16.msra.mxu0 0
    %127 = vmatprep.subr.bf16.mxu0 0
    %128 = vmatpush2.bf16.msra.mxu0 0
    %129 = vmatprep.subr.bf16.mxu0 0
    %130 = vmatpush2.bf16.msra.mxu0 0
    %131 = vmatprep.subr.bf16.mxu0 0
    %132 = vmatpush2.bf16.msra.mxu0 0
    %133 = vmatprep.subr.bf16.mxu0 0
    %134 = vmatpush2.bf16.msra.mxu0 0
    %135 = vmatprep.mubr.bf16.mxu0 0
    %136 = vmatmul.mubr.bf16.gmra.mxu0 %v101
    %v137 = vpop.f32.mrf.mxu0
    %v138 = vadd.f32 %v74, %v137
    %v139 = vpop.f32.mrf.mxu0
    %v140 = vpop.f32.mrf.mxu0
    %v141 = vadd.f32 %v74, %v140
    %v142 = vpop.f32.mrf.mxu0
    %143 = vdwg.mxu0
    %v144 = vld [vmem:[%s1] sm:$0xf]
    %s145 = scalar_lea.vmem %s1, 4
    %v146 = vld [vmem:[%s145] sm:$0xf]
    %v148 = vunpack.c.l.b16 %v144
    %v149 = vpack.c.b16 %v148, %v148
    %v151 = vunpack.c.l.b16 %v146
    %v152 = vpack.c.b16 %v151, %v151
    %vm153 = vcmask 1043456
    %v156 = vsel %vm153, %v144, %v149
    %v160 = vsel %vm153, %v146, %v152
    %v162 = vunpack.c.l.bf16 %v156
    %v163 = vunpack.c.h.bf16 %v156
    %v164 = vunpack.c.l.bf16 %v160
    %v165 = vunpack.c.h.bf16 %v160
    %v166 = vld [vmem:[%s4] sm:$0xf]
    %v167 = vld [vmem:[%s4 + $0x4] sm:$0xf]
    %v168 = vld [vmem:[%s4 + $0x8] sm:$0xf]
    %v169 = vld [vmem:[%s4 + $0xc] sm:$0xf]
    %v170 = vld [vmem:[%s5] sm:$0x1]
    %v171 = vpack.c.bf16 %v141, %v138
    %v172 = vmul.f32 %v138, 0.35355338
    %v173 = vmul.f32 %v141, 0.35355338
    %v174 = vpack.c.bf16 %v173, %v172
    %vm175 = vcmask 64512
    %v177 = vsel %vm175, %v174, 0
    %v180 = vsel %vm175, %v171, 0
    %182 = vmatprep.subr.bf16.mxu0 0
    %183 = vmatpush1.bf16.xpose.msra.mxu0 0
    %184 = vmatprep.subr.bf16.mxu0 0
    %185 = vmatpush1.bf16.xpose.msra.mxu0 0
    %186 = vmatprep.subr.bf16.mxu0 0
    %187 = vmatpush1.bf16.xpose.msra.mxu0 0
    %188 = vmatprep.subr.bf16.mxu0 0
    %189 = vmatpush1.bf16.xpose.msra.mxu0 0
    %190 = vmatprep.subr.bf16.mxu0 0
    %191 = vmatpush1.bf16.xpose.msra.mxu0 0
    %192 = vmatprep.subr.bf16.mxu0 0
    %193 = vmatpush1.bf16.xpose.msra.mxu0 0
    %194 = vmatprep.subr.bf16.mxu0 0
    %195 = vmatpush1.bf16.xpose.msra.mxu0 0
    %196 = vmatprep.subr.bf16.mxu0 0
    %197 = vmatpush1.bf16.xpose.msra.mxu0 %v180
    %198 = vmatprep.subr.bf16.mxu0 0
    %199 = vmatpush2.bf16.xpose.msra.mxu0 0
    %200 = vmatprep.subr.bf16.mxu0 0
    %201 = vmatpush2.bf16.xpose.msra.mxu0 0
    %202 = vmatprep.subr.bf16.mxu0 0
    %203 = vmatpush2.bf16.xpose.msra.mxu0 0
    %204 = vmatprep.subr.bf16.mxu0 0
    %205 = vmatpush2.bf16.xpose.msra.mxu0 0
    %206 = vmatprep.subr.bf16.mxu0 0
    %207 = vmatpush2.bf16.xpose.msra.mxu0 0
    %208 = vmatprep.subr.bf16.mxu0 0
    %209 = vmatpush2.bf16.xpose.msra.mxu0 0
    %210 = vmatprep.subr.bf16.mxu0 0
    %211 = vmatpush2.bf16.xpose.msra.mxu0 0
    %212 = vmatprep.subr.bf16.mxu0 0
    %213 = vmatpush2.bf16.xpose.msra.mxu0 0
    %214 = vmatprep.mubr.bf16.mxu0 0
    %215 = vmatmul.mubr.bf16.gmra.mxu0 %v177
    %v216 = vpop.f32.mrf.mxu0
    %v217 = vadd.f32 0.0, %v216
    %v218 = vpop.f32.mrf.mxu0
    %v219 = vpop.f32.mrf.mxu0
    %v220 = vpop.f32.mrf.mxu0
    %221 = vdwg.mxu0
    %223 = vrot.lane.b32.xlu0 %v174, 120
    %v224 = vpop.permute.xlu0 %223
    %226 = vrot.lane.b32.xlu0 %v171, 120
    %v227 = vpop.permute.xlu0 %226
    %v229 = vsel %vm175, %v224, 0
    %v232 = vsel %vm175, %v227, 0
    %234 = vmatprep.subr.bf16.mxu0 0
    %235 = vmatpush1.bf16.xpose.msra.mxu0 0
    %236 = vmatprep.subr.bf16.mxu0 0
    %237 = vmatpush1.bf16.xpose.msra.mxu0 0
    %238 = vmatprep.subr.bf16.mxu0 0
    %239 = vmatpush1.bf16.xpose.msra.mxu0 0
    %240 = vmatprep.subr.bf16.mxu0 0
    %241 = vmatpush1.bf16.xpose.msra.mxu0 0
    %242 = vmatprep.subr.bf16.mxu0 0
    %243 = vmatpush1.bf16.xpose.msra.mxu0 0
    %244 = vmatprep.subr.bf16.mxu0 0
    %245 = vmatpush1.bf16.xpose.msra.mxu0 0
    %246 = vmatprep.subr.bf16.mxu0 0
    %247 = vmatpush1.bf16.xpose.msra.mxu0 0
    %248 = vmatprep.subr.bf16.mxu0 0
    %249 = vmatpush1.bf16.xpose.msra.mxu0 %v232
    %250 = vmatprep.subr.bf16.mxu0 0
    %251 = vmatpush2.bf16.xpose.msra.mxu0 0
    %252 = vmatprep.subr.bf16.mxu0 0
    %253 = vmatpush2.bf16.xpose.msra.mxu0 0
    %254 = vmatprep.subr.bf16.mxu0 0
    %255 = vmatpush2.bf16.xpose.msra.mxu0 0
    %256 = vmatprep.subr.bf16.mxu0 0
    %257 = vmatpush2.bf16.xpose.msra.mxu0 0
    %258 = vmatprep.subr.bf16.mxu0 0
    %259 = vmatpush2.bf16.xpose.msra.mxu0 0
    %260 = vmatprep.subr.bf16.mxu0 0
    %261 = vmatpush2.bf16.xpose.msra.mxu0 0
    %262 = vmatprep.subr.bf16.mxu0 0
    %263 = vmatpush2.bf16.xpose.msra.mxu0 0
    %264 = vmatprep.subr.bf16.mxu0 0
    %265 = vmatpush2.bf16.xpose.msra.mxu0 0
    %266 = vmatprep.mubr.bf16.mxu0 0
    %267 = vmatmul.mubr.bf16.gmra.mxu0 %v229
    %v268 = vpop.f32.mrf.mxu0
    %v269 = vadd.f32 0.0, %v268
    %v270 = vpop.f32.mrf.mxu0
    %v271 = vpop.f32.mrf.mxu0
    %v272 = vpop.f32.mrf.mxu0
    %273 = vdwg.mxu0
    %274 = vrot.lane.b32.xlu0 %v174, 112
    %v275 = vpop.permute.xlu0 %274
    %276 = vrot.lane.b32.xlu0 %v171, 112
    %v277 = vpop.permute.xlu0 %276
    %v279 = vsel %vm175, %v275, 0
    %v282 = vsel %vm175, %v277, 0
    %284 = vmatprep.subr.bf16.mxu0 0
    %285 = vmatpush1.bf16.xpose.msra.mxu0 0
    %286 = vmatprep.subr.bf16.mxu0 0
    %287 = vmatpush1.bf16.xpose.msra.mxu0 0
    %288 = vmatprep.subr.bf16.mxu0 0
    %289 = vmatpush1.bf16.xpose.msra.mxu0 0
    %290 = vmatprep.subr.bf16.mxu0 0
    %291 = vmatpush1.bf16.xpose.msra.mxu0 0
    %292 = vmatprep.subr.bf16.mxu0 0
    %293 = vmatpush1.bf16.xpose.msra.mxu0 0
    %294 = vmatprep.subr.bf16.mxu0 0
    %295 = vmatpush1.bf16.xpose.msra.mxu0 0
    %296 = vmatprep.subr.bf16.mxu0 0
    %297 = vmatpush1.bf16.xpose.msra.mxu0 0
    %298 = vmatprep.subr.bf16.mxu0 0
    %299 = vmatpush1.bf16.xpose.msra.mxu0 %v282
    %300 = vmatprep.subr.bf16.mxu0 0
    %301 = vmatpush2.bf16.xpose.msra.mxu0 0
    %302 = vmatprep.subr.bf16.mxu0 0
    %303 = vmatpush2.bf16.xpose.msra.mxu0 0
    %304 = vmatprep.subr.bf16.mxu0 0
    %305 = vmatpush2.bf16.xpose.msra.mxu0 0
    %306 = vmatprep.subr.bf16.mxu0 0
    %307 = vmatpush2.bf16.xpose.msra.mxu0 0
    %308 = vmatprep.subr.bf16.mxu0 0
    %309 = vmatpush2.bf16.xpose.msra.mxu0 0
    %310 = vmatprep.subr.bf16.mxu0 0
    %311 = vmatpush2.bf16.xpose.msra.mxu0 0
    %312 = vmatprep.subr.bf16.mxu0 0
    %313 = vmatpush2.bf16.xpose.msra.mxu0 0
    %314 = vmatprep.subr.bf16.mxu0 0
    %315 = vmatpush2.bf16.xpose.msra.mxu0 0
    %316 = vmatprep.mubr.bf16.mxu0 0
    %317 = vmatmul.mubr.bf16.gmra.mxu0 %v279
    %v318 = vpop.f32.mrf.mxu0
    %v319 = vadd.f32 0.0, %v318
    %v320 = vpop.f32.mrf.mxu0
    %v321 = vpop.f32.mrf.mxu0
    %v322 = vpop.f32.mrf.mxu0
    %323 = vdwg.mxu0
    %324 = vrot.lane.b32.xlu0 %v174, 104
    %v325 = vpop.permute.xlu0 %324
    %326 = vrot.lane.b32.xlu0 %v171, 104
    %v327 = vpop.permute.xlu0 %326
    %v329 = vsel %vm175, %v325, 0
    %v332 = vsel %vm175, %v327, 0
    %334 = vmatprep.subr.bf16.mxu0 0
    %335 = vmatpush1.bf16.xpose.msra.mxu0 0
    %336 = vmatprep.subr.bf16.mxu0 0
    %337 = vmatpush1.bf16.xpose.msra.mxu0 0
    %338 = vmatprep.subr.bf16.mxu0 0
    %339 = vmatpush1.bf16.xpose.msra.mxu0 0
    %340 = vmatprep.subr.bf16.mxu0 0
    %341 = vmatpush1.bf16.xpose.msra.mxu0 0
    %342 = vmatprep.subr.bf16.mxu0 0
    %343 = vmatpush1.bf16.xpose.msra.mxu0 0
    %344 = vmatprep.subr.bf16.mxu0 0
    %345 = vmatpush1.bf16.xpose.msra.mxu0 0
    %346 = vmatprep.subr.bf16.mxu0 0
    %347 = vmatpush1.bf16.xpose.msra.mxu0 0
    %348 = vmatprep.subr.bf16.mxu0 0
    %349 = vmatpush1.bf16.xpose.msra.mxu0 %v332
    %350 = vmatprep.subr.bf16.mxu0 0
    %351 = vmatpush2.bf16.xpose.msra.mxu0 0
    %352 = vmatprep.subr.bf16.mxu0 0
    %353 = vmatpush2.bf16.xpose.msra.mxu0 0
    %354 = vmatprep.subr.bf16.mxu0 0
    %355 = vmatpush2.bf16.xpose.msra.mxu0 0
    %356 = vmatprep.subr.bf16.mxu0 0
    %357 = vmatpush2.bf16.xpose.msra.mxu0 0
    %358 = vmatprep.subr.bf16.mxu0 0
    %359 = vmatpush2.bf16.xpose.msra.mxu0 0
    %360 = vmatprep.subr.bf16.mxu0 0
    %361 = vmatpush2.bf16.xpose.msra.mxu0 0
    %362 = vmatprep.subr.bf16.mxu0 0
    %363 = vmatpush2.bf16.xpose.msra.mxu0 0
    %364 = vmatprep.subr.bf16.mxu0 0
    %365 = vmatpush2.bf16.xpose.msra.mxu0 0
    %366 = vmatprep.mubr.bf16.mxu0 0
    %367 = vmatmul.mubr.bf16.gmra.mxu0 %v329
    %v368 = vpop.f32.mrf.mxu0
    %v369 = vadd.f32 0.0, %v368
    %v370 = vpop.f32.mrf.mxu0
    %v371 = vpop.f32.mrf.mxu0
    %v372 = vpop.f32.mrf.mxu0
    %373 = vdwg.mxu0
    %v374 = vrot.slane %v174, 4
    %v375 = vrot.slane %v171, 4
    %v377 = vsel %vm175, %v374, 0
    %v380 = vsel %vm175, %v375, 0
    %382 = vmatprep.subr.bf16.mxu0 0
    %383 = vmatpush1.bf16.xpose.msra.mxu0 0
    %384 = vmatprep.subr.bf16.mxu0 0
    %385 = vmatpush1.bf16.xpose.msra.mxu0 0
    %386 = vmatprep.subr.bf16.mxu0 0
    %387 = vmatpush1.bf16.xpose.msra.mxu0 0
    %388 = vmatprep.subr.bf16.mxu0 0
    %389 = vmatpush1.bf16.xpose.msra.mxu0 0
    %390 = vmatprep.subr.bf16.mxu0 0
    %391 = vmatpush1.bf16.xpose.msra.mxu0 0
    %392 = vmatprep.subr.bf16.mxu0 0
    %393 = vmatpush1.bf16.xpose.msra.mxu0 0
    %394 = vmatprep.subr.bf16.mxu0 0
    %395 = vmatpush1.bf16.xpose.msra.mxu0 0
    %396 = vmatprep.subr.bf16.mxu0 0
    %397 = vmatpush1.bf16.xpose.msra.mxu0 %v380
    %398 = vmatprep.subr.bf16.mxu0 0
    %399 = vmatpush2.bf16.xpose.msra.mxu0 0
    %400 = vmatprep.subr.bf16.mxu0 0
    %401 = vmatpush2.bf16.xpose.msra.mxu0 0
    %402 = vmatprep.subr.bf16.mxu0 0
    %403 = vmatpush2.bf16.xpose.msra.mxu0 0
    %404 = vmatprep.subr.bf16.mxu0 0
    %405 = vmatpush2.bf16.xpose.msra.mxu0 0
    %406 = vmatprep.subr.bf16.mxu0 0
    %407 = vmatpush2.bf16.xpose.msra.mxu0 0
    %408 = vmatprep.subr.bf16.mxu0 0
    %409 = vmatpush2.bf16.xpose.msra.mxu0 0
    %410 = vmatprep.subr.bf16.mxu0 0
    %411 = vmatpush2.bf16.xpose.msra.mxu0 0
    %412 = vmatprep.subr.bf16.mxu0 0
    %413 = vmatpush2.bf16.xpose.msra.mxu0 0
    %414 = vmatprep.mubr.bf16.mxu0 0
    %415 = vmatmul.mubr.bf16.gmra.mxu0 %v377
    %v416 = vpop.f32.mrf.mxu0
    %v417 = vadd.f32 0.0, %v416
    %v418 = vpop.f32.mrf.mxu0
    %v419 = vpop.f32.mrf.mxu0
    %v420 = vpop.f32.mrf.mxu0
    %421 = vdwg.mxu0
    %422 = vrot.lane.b32.xlu0 %v374, 120
    %v423 = vpop.permute.xlu0 %422
    %424 = vrot.lane.b32.xlu0 %v375, 120
    %v425 = vpop.permute.xlu0 %424
    %v427 = vsel %vm175, %v423, 0
    %v430 = vsel %vm175, %v425, 0
    %432 = vmatprep.subr.bf16.mxu0 0
    %433 = vmatpush1.bf16.xpose.msra.mxu0 0
    %434 = vmatprep.subr.bf16.mxu0 0
    %435 = vmatpush1.bf16.xpose.msra.mxu0 0
    %436 = vmatprep.subr.bf16.mxu0 0
    %437 = vmatpush1.bf16.xpose.msra.mxu0 0
    %438 = vmatprep.subr.bf16.mxu0 0
    %439 = vmatpush1.bf16.xpose.msra.mxu0 0
    %440 = vmatprep.subr.bf16.mxu0 0
    %441 = vmatpush1.bf16.xpose.msra.mxu0 0
    %442 = vmatprep.subr.bf16.mxu0 0
    %443 = vmatpush1.bf16.xpose.msra.mxu0 0
    %444 = vmatprep.subr.bf16.mxu0 0
    %445 = vmatpush1.bf16.xpose.msra.mxu0 0
    %446 = vmatprep.subr.bf16.mxu0 0
    %447 = vmatpush1.bf16.xpose.msra.mxu0 %v430
    %448 = vmatprep.subr.bf16.mxu0 0
    %449 = vmatpush2.bf16.xpose.msra.mxu0 0
    %450 = vmatprep.subr.bf16.mxu0 0
    %451 = vmatpush2.bf16.xpose.msra.mxu0 0
    %452 = vmatprep.subr.bf16.mxu0 0
    %453 = vmatpush2.bf16.xpose.msra.mxu0 0
    %454 = vmatprep.subr.bf16.mxu0 0
    %455 = vmatpush2.bf16.xpose.msra.mxu0 0
    %456 = vmatprep.subr.bf16.mxu0 0
    %457 = vmatpush2.bf16.xpose.msra.mxu0 0
    %458 = vmatprep.subr.bf16.mxu0 0
    %459 = vmatpush2.bf16.xpose.msra.mxu0 0
    %460 = vmatprep.subr.bf16.mxu0 0
    %461 = vmatpush2.bf16.xpose.msra.mxu0 0
    %462 = vmatprep.subr.bf16.mxu0 0
    %463 = vmatpush2.bf16.xpose.msra.mxu0 0
    %464 = vmatprep.mubr.bf16.mxu0 0
    %465 = vmatmul.mubr.bf16.gmra.mxu0 %v427
    %v466 = vpop.f32.mrf.mxu0
    %v467 = vadd.f32 0.0, %v466
    %v468 = vpop.f32.mrf.mxu0
    %v469 = vpop.f32.mrf.mxu0
    %v470 = vpop.f32.mrf.mxu0
    %471 = vdwg.mxu0
    %472 = vrot.lane.b32.xlu0 %v374, 112
    %v473 = vpop.permute.xlu0 %472
    %474 = vrot.lane.b32.xlu0 %v375, 112
    %v475 = vpop.permute.xlu0 %474
    %v477 = vsel %vm175, %v473, 0
    %v480 = vsel %vm175, %v475, 0
    %482 = vmatprep.subr.bf16.mxu0 0
    %483 = vmatpush1.bf16.xpose.msra.mxu0 0
    %484 = vmatprep.subr.bf16.mxu0 0
    %485 = vmatpush1.bf16.xpose.msra.mxu0 0
    %486 = vmatprep.subr.bf16.mxu0 0
    %487 = vmatpush1.bf16.xpose.msra.mxu0 0
    %488 = vmatprep.subr.bf16.mxu0 0
    %489 = vmatpush1.bf16.xpose.msra.mxu0 0
    %490 = vmatprep.subr.bf16.mxu0 0
    %491 = vmatpush1.bf16.xpose.msra.mxu0 0
    %492 = vmatprep.subr.bf16.mxu0 0
    %493 = vmatpush1.bf16.xpose.msra.mxu0 0
    %494 = vmatprep.subr.bf16.mxu0 0
    %495 = vmatpush1.bf16.xpose.msra.mxu0 0
    %496 = vmatprep.subr.bf16.mxu0 0
    %497 = vmatpush1.bf16.xpose.msra.mxu0 %v480
    %498 = vmatprep.subr.bf16.mxu0 0
    %499 = vmatpush2.bf16.xpose.msra.mxu0 0
    %500 = vmatprep.subr.bf16.mxu0 0
    %501 = vmatpush2.bf16.xpose.msra.mxu0 0
    %502 = vmatprep.subr.bf16.mxu0 0
    %503 = vmatpush2.bf16.xpose.msra.mxu0 0
    %504 = vmatprep.subr.bf16.mxu0 0
    %505 = vmatpush2.bf16.xpose.msra.mxu0 0
    %506 = vmatprep.subr.bf16.mxu0 0
    %507 = vmatpush2.bf16.xpose.msra.mxu0 0
    %508 = vmatprep.subr.bf16.mxu0 0
    %509 = vmatpush2.bf16.xpose.msra.mxu0 0
    %510 = vmatprep.subr.bf16.mxu0 0
    %511 = vmatpush2.bf16.xpose.msra.mxu0 0
    %512 = vmatprep.subr.bf16.mxu0 0
    %513 = vmatpush2.bf16.xpose.msra.mxu0 0
    %514 = vmatprep.mubr.bf16.mxu0 0
    %515 = vmatmul.mubr.bf16.gmra.mxu0 %v477
    %v516 = vpop.f32.mrf.mxu0
    %v517 = vadd.f32 0.0, %v516
    %v518 = vpop.f32.mrf.mxu0
    %v519 = vpop.f32.mrf.mxu0
    %v520 = vpop.f32.mrf.mxu0
    %521 = vdwg.mxu0
    %522 = vrot.lane.b32.xlu0 %v374, 104
    %v523 = vpop.permute.xlu0 %522
    %524 = vrot.lane.b32.xlu0 %v375, 104
    %v525 = vpop.permute.xlu0 %524
    %v527 = vsel %vm175, %v523, 0
    %v530 = vsel %vm175, %v525, 0
    %532 = vmatprep.subr.bf16.mxu0 0
    %533 = vmatpush1.bf16.xpose.msra.mxu0 0
    %534 = vmatprep.subr.bf16.mxu0 0
    %535 = vmatpush1.bf16.xpose.msra.mxu0 0
    %536 = vmatprep.subr.bf16.mxu0 0
    %537 = vmatpush1.bf16.xpose.msra.mxu0 0
    %538 = vmatprep.subr.bf16.mxu0 0
    %539 = vmatpush1.bf16.xpose.msra.mxu0 0
    %540 = vmatprep.subr.bf16.mxu0 0
    %541 = vmatpush1.bf16.xpose.msra.mxu0 0
    %542 = vmatprep.subr.bf16.mxu0 0
    %543 = vmatpush1.bf16.xpose.msra.mxu0 0
    %544 = vmatprep.subr.bf16.mxu0 0
    %545 = vmatpush1.bf16.xpose.msra.mxu0 0
    %546 = vmatprep.subr.bf16.mxu0 0
    %547 = vmatpush1.bf16.xpose.msra.mxu0 %v530
    %548 = vmatprep.subr.bf16.mxu0 0
    %549 = vmatpush2.bf16.xpose.msra.mxu0 0
    %550 = vmatprep.subr.bf16.mxu0 0
    %551 = vmatpush2.bf16.xpose.msra.mxu0 0
    %552 = vmatprep.subr.bf16.mxu0 0
    %553 = vmatpush2.bf16.xpose.msra.mxu0 0
    %554 = vmatprep.subr.bf16.mxu0 0
    %555 = vmatpush2.bf16.xpose.msra.mxu0 0
    %556 = vmatprep.subr.bf16.mxu0 0
    %557 = vmatpush2.bf16.xpose.msra.mxu0 0
    %558 = vmatprep.subr.bf16.mxu0 0
    %559 = vmatpush2.bf16.xpose.msra.mxu0 0
    %560 = vmatprep.subr.bf16.mxu0 0
    %561 = vmatpush2.bf16.xpose.msra.mxu0 0
    %562 = vmatprep.subr.bf16.mxu0 0
    %563 = vmatpush2.bf16.xpose.msra.mxu0 0
    %564 = vmatprep.mubr.bf16.mxu0 0
    %565 = vmatmul.mubr.bf16.gmra.mxu0 %v527
    %v566 = vpop.f32.mrf.mxu0
    %v567 = vadd.f32 0.0, %v566
    %v568 = vpop.f32.mrf.mxu0
    %v569 = vpop.f32.mrf.mxu0
    %v570 = vpop.f32.mrf.mxu0
    %571 = vdwg.mxu0
    %v572 = vadd.f32 %v217, %v162
    %v573 = vadd.f32 %v269, %v163
    %v574 = vadd.f32 %v319, %v162
    %v575 = vadd.f32 %v369, %v163
    %v576 = vadd.f32 %v417, %v164
    %v577 = vadd.f32 %v467, %v165
    %v578 = vadd.f32 %v517, %v164
    %v579 = vadd.f32 %v567, %v165
    %v580 = vsel %vm175, %v572, -inf
    %581 = vmax.xlane.f32.xlu0 %v580
    %v582 = vpop.xlane.xlu0 %581
    %v583 = vsel %vm175, %v573, -inf
    %584 = vmax.xlane.f32.xlu0 %v583
    %v585 = vpop.xlane.xlu0 %584
    %v586 = vsel %vm175, %v574, -inf
    %587 = vmax.xlane.f32.xlu0 %v586
    %v588 = vpop.xlane.xlu0 %587
    %v589 = vsel %vm175, %v575, -inf
    %590 = vmax.xlane.f32.xlu0 %v589
    %v591 = vpop.xlane.xlu0 %590
    %v592 = vsel %vm175, %v576, -inf
    %593 = vmax.xlane.f32.xlu0 %v592
    %v594 = vpop.xlane.xlu0 %593
    %v595 = vsel %vm175, %v577, -inf
    %596 = vmax.xlane.f32.xlu0 %v595
    %v597 = vpop.xlane.xlu0 %596
    %v598 = vsel %vm175, %v578, -inf
    %599 = vmax.xlane.f32.xlu0 %v598
    %v600 = vpop.xlane.xlu0 %599
    %v601 = vsel %vm175, %v579, -inf
    %602 = vmax.xlane.f32.xlu0 %v601
    %v603 = vpop.xlane.xlu0 %602
    %v604 = vsub.f32 %v572, %v582
    %v605 = vsub.f32 %v573, %v585
    %v606 = vsub.f32 %v574, %v588
    %v607 = vsub.f32 %v575, %v591
    %v608 = vsub.f32 %v576, %v594
    %v609 = vsub.f32 %v577, %v597
    %v610 = vsub.f32 %v578, %v600
    %v611 = vsub.f32 %v579, %v603
    %v612 = vmul.f32 %v604, 1.442695
    %v613 = vpow.pop %v612
    %v614 = vmul.f32 %v605, 1.442695
    %v615 = vpow.pop %v614
    %v616 = vmul.f32 %v606, 1.442695
    %v617 = vpow.pop %v616
    %v618 = vmul.f32 %v607, 1.442695
    %v619 = vpow.pop %v618
    %v620 = vmul.f32 %v608, 1.442695
    %v621 = vpow.pop %v620
    %v622 = vmul.f32 %v609, 1.442695
    %v623 = vpow.pop %v622
    %v624 = vmul.f32 %v610, 1.442695
    %v625 = vpow.pop %v624
    %v626 = vmul.f32 %v611, 1.442695
    %v627 = vpow.pop %v626
    %v628 = vsel %vm175, %v613, 0.0
    %629 = vadd.xlane.f32.xlu0 %v628
    %v630 = vpop.xlane.xlu0 %629
    %v631 = vsel %vm175, %v615, 0.0
    %632 = vadd.xlane.f32.xlu0 %v631
    %v633 = vpop.xlane.xlu0 %632
    %v634 = vsel %vm175, %v617, 0.0
    %635 = vadd.xlane.f32.xlu0 %v634
    %v636 = vpop.xlane.xlu0 %635
    %v637 = vsel %vm175, %v619, 0.0
    %638 = vadd.xlane.f32.xlu0 %v637
    %v639 = vpop.xlane.xlu0 %638
    %v640 = vsel %vm175, %v621, 0.0
    %641 = vadd.xlane.f32.xlu0 %v640
    %v642 = vpop.xlane.xlu0 %641
    %v643 = vsel %vm175, %v623, 0.0
    %644 = vadd.xlane.f32.xlu0 %v643
    %v645 = vpop.xlane.xlu0 %644
    %v646 = vsel %vm175, %v625, 0.0
    %647 = vadd.xlane.f32.xlu0 %v646
    %v648 = vpop.xlane.xlu0 %647
    %v649 = vsel %vm175, %v627, 0.0
    %650 = vadd.xlane.f32.xlu0 %v649
    %v651 = vpop.xlane.xlu0 %650
    %v652 = vrcp.pop %v630
    %v653 = vrcp.pop %v633
    %v654 = vrcp.pop %v636
    %v655 = vrcp.pop %v639
    %v656 = vrcp.pop %v642
    %v657 = vrcp.pop %v645
    %v658 = vrcp.pop %v648
    %v659 = vrcp.pop %v651
    %v660 = vmul.f32 %v613, %v652
    %v661 = vmul.f32 %v615, %v653
    %v662 = vmul.f32 %v617, %v654
    %v663 = vmul.f32 %v619, %v655
    %v664 = vmul.f32 %v621, %v656
    %v665 = vmul.f32 %v623, %v657
    %v666 = vmul.f32 %v625, %v658
    %v667 = vmul.f32 %v627, %v659
    %v668 = vpack.c.bf16 %v661, %v660
    %v669 = vpack.c.bf16 %v663, %v662
    %v670 = vpack.c.bf16 %v665, %v664
    %v671 = vpack.c.bf16 %v667, %v666
    %v673 = vsel %vm175, %v668, 0
    %v675 = vsel %vm153, %v171, 0
    %677 = vmatprep.subr.bf16.mxu0 0
    %678 = vmatpush1.bf16.msra.mxu0 0
    %679 = vmatprep.subr.bf16.mxu0 0
    %680 = vmatpush1.bf16.msra.mxu0 0
    %681 = vmatprep.subr.bf16.mxu0 0
    %682 = vmatpush1.bf16.msra.mxu0 0
    %683 = vmatprep.subr.bf16.mxu0 0
    %684 = vmatpush1.bf16.msra.mxu0 0
    %685 = vmatprep.subr.bf16.mxu0 0
    %686 = vmatpush1.bf16.msra.mxu0 0
    %687 = vmatprep.subr.bf16.mxu0 0
    %688 = vmatpush1.bf16.msra.mxu0 0
    %689 = vmatprep.subr.bf16.mxu0 0
    %690 = vmatpush1.bf16.msra.mxu0 0
    %691 = vmatprep.subr.bf16.mxu0 0
    %692 = vmatpush1.bf16.msra.mxu0 %v675
    %693 = vmatprep.subr.bf16.mxu0 0
    %694 = vmatpush2.bf16.msra.mxu0 0
    %695 = vmatprep.subr.bf16.mxu0 0
    %696 = vmatpush2.bf16.msra.mxu0 0
    %697 = vmatprep.subr.bf16.mxu0 0
    %698 = vmatpush2.bf16.msra.mxu0 0
    %699 = vmatprep.subr.bf16.mxu0 0
    %700 = vmatpush2.bf16.msra.mxu0 0
    %701 = vmatprep.subr.bf16.mxu0 0
    %702 = vmatpush2.bf16.msra.mxu0 0
    %703 = vmatprep.subr.bf16.mxu0 0
    %704 = vmatpush2.bf16.msra.mxu0 0
    %705 = vmatprep.subr.bf16.mxu0 0
    %706 = vmatpush2.bf16.msra.mxu0 0
    %707 = vmatprep.subr.bf16.mxu0 0
    %708 = vmatpush2.bf16.msra.mxu0 0
    %709 = vmatprep.mubr.bf16.mxu0 0
    %710 = vmatmul.mubr.bf16.gmra.mxu0 %v673
    %v711 = vpop.f32.mrf.mxu0
    %v712 = vadd.f32 0.0, %v711
    %v713 = vpop.f32.mrf.mxu0
    %v714 = vpop.f32.mrf.mxu0
    %v715 = vpop.f32.mrf.mxu0
    %716 = vdwg.mxu0
    %v718 = vrot.slane %v668, 4
    %v720 = vsel %vm175, %v718, 0
    %v722 = vsel %vm153, %v227, 0
    %724 = vmatprep.subr.bf16.mxu0 0
    %725 = vmatpush1.bf16.msra.mxu0 0
    %726 = vmatprep.subr.bf16.mxu0 0
    %727 = vmatpush1.bf16.msra.mxu0 0
    %728 = vmatprep.subr.bf16.mxu0 0
    %729 = vmatpush1.bf16.msra.mxu0 0
    %730 = vmatprep.subr.bf16.mxu0 0
    %731 = vmatpush1.bf16.msra.mxu0 0
    %732 = vmatprep.subr.bf16.mxu0 0
    %733 = vmatpush1.bf16.msra.mxu0 0
    %734 = vmatprep.subr.bf16.mxu0 0
    %735 = vmatpush1.bf16.msra.mxu0 0
    %736 = vmatprep.subr.bf16.mxu0 0
    %737 = vmatpush1.bf16.msra.mxu0 0
    %738 = vmatprep.subr.bf16.mxu0 0
    %739 = vmatpush1.bf16.msra.mxu0 %v722
    %740 = vmatprep.subr.bf16.mxu0 0
    %741 = vmatpush2.bf16.msra.mxu0 0
    %742 = vmatprep.subr.bf16.mxu0 0
    %743 = vmatpush2.bf16.msra.mxu0 0
    %744 = vmatprep.subr.bf16.mxu0 0
    %745 = vmatpush2.bf16.msra.mxu0 0
    %746 = vmatprep.subr.bf16.mxu0 0
    %747 = vmatpush2.bf16.msra.mxu0 0
    %748 = vmatprep.subr.bf16.mxu0 0
    %749 = vmatpush2.bf16.msra.mxu0 0
    %750 = vmatprep.subr.bf16.mxu0 0
    %751 = vmatpush2.bf16.msra.mxu0 0
    %752 = vmatprep.subr.bf16.mxu0 0
    %753 = vmatpush2.bf16.msra.mxu0 0
    %754 = vmatprep.subr.bf16.mxu0 0
    %755 = vmatpush2.bf16.msra.mxu0 0
    %756 = vmatprep.mubr.bf16.mxu0 0
    %757 = vmatmul.mubr.bf16.gmra.mxu0 %v720
    %v758 = vpop.f32.mrf.mxu0
    %v759 = vadd.f32 0.0, %v758
    %v760 = vpop.f32.mrf.mxu0
    %v761 = vpop.f32.mrf.mxu0
    %v762 = vpop.f32.mrf.mxu0
    %763 = vdwg.mxu0
    %v765 = vsel %vm175, %v669, 0
    %v767 = vsel %vm153, %v277, 0
    %769 = vmatprep.subr.bf16.mxu0 0
    %770 = vmatpush1.bf16.msra.mxu0 0
    %771 = vmatprep.subr.bf16.mxu0 0
    %772 = vmatpush1.bf16.msra.mxu0 0
    %773 = vmatprep.subr.bf16.mxu0 0
    %774 = vmatpush1.bf16.msra.mxu0 0
    %775 = vmatprep.subr.bf16.mxu0 0
    %776 = vmatpush1.bf16.msra.mxu0 0
    %777 = vmatprep.subr.bf16.mxu0 0
    %778 = vmatpush1.bf16.msra.mxu0 0
    %779 = vmatprep.subr.bf16.mxu0 0
    %780 = vmatpush1.bf16.msra.mxu0 0
    %781 = vmatprep.subr.bf16.mxu0 0
    %782 = vmatpush1.bf16.msra.mxu0 0
    %783 = vmatprep.subr.bf16.mxu0 0
    %784 = vmatpush1.bf16.msra.mxu0 %v767
    %785 = vmatprep.subr.bf16.mxu0 0
    %786 = vmatpush2.bf16.msra.mxu0 0
    %787 = vmatprep.subr.bf16.mxu0 0
    %788 = vmatpush2.bf16.msra.mxu0 0
    %789 = vmatprep.subr.bf16.mxu0 0
    %790 = vmatpush2.bf16.msra.mxu0 0
    %791 = vmatprep.subr.bf16.mxu0 0
    %792 = vmatpush2.bf16.msra.mxu0 0
    %793 = vmatprep.subr.bf16.mxu0 0
    %794 = vmatpush2.bf16.msra.mxu0 0
    %795 = vmatprep.subr.bf16.mxu0 0
    %796 = vmatpush2.bf16.msra.mxu0 0
    %797 = vmatprep.subr.bf16.mxu0 0
    %798 = vmatpush2.bf16.msra.mxu0 0
    %799 = vmatprep.subr.bf16.mxu0 0
    %800 = vmatpush2.bf16.msra.mxu0 0
    %801 = vmatprep.mubr.bf16.mxu0 0
    %802 = vmatmul.mubr.bf16.gmra.mxu0 %v765
    %v803 = vpop.f32.mrf.mxu0
    %v804 = vadd.f32 0.0, %v803
    %v805 = vpop.f32.mrf.mxu0
    %v806 = vpop.f32.mrf.mxu0
    %v807 = vpop.f32.mrf.mxu0
    %808 = vdwg.mxu0
    %v810 = vrot.slane %v669, 4
    %v812 = vsel %vm175, %v810, 0
    %v814 = vsel %vm153, %v327, 0
    %816 = vmatprep.subr.bf16.mxu0 0
    %817 = vmatpush1.bf16.msra.mxu0 0
    %818 = vmatprep.subr.bf16.mxu0 0
    %819 = vmatpush1.bf16.msra.mxu0 0
    %820 = vmatprep.subr.bf16.mxu0 0
    %821 = vmatpush1.bf16.msra.mxu0 0
    %822 = vmatprep.subr.bf16.mxu0 0
    %823 = vmatpush1.bf16.msra.mxu0 0
    %824 = vmatprep.subr.bf16.mxu0 0
    %825 = vmatpush1.bf16.msra.mxu0 0
    %826 = vmatprep.subr.bf16.mxu0 0
    %827 = vmatpush1.bf16.msra.mxu0 0
    %828 = vmatprep.subr.bf16.mxu0 0
    %829 = vmatpush1.bf16.msra.mxu0 0
    %830 = vmatprep.subr.bf16.mxu0 0
    %831 = vmatpush1.bf16.msra.mxu0 %v814
    %832 = vmatprep.subr.bf16.mxu0 0
    %833 = vmatpush2.bf16.msra.mxu0 0
    %834 = vmatprep.subr.bf16.mxu0 0
    %835 = vmatpush2.bf16.msra.mxu0 0
    %836 = vmatprep.subr.bf16.mxu0 0
    %837 = vmatpush2.bf16.msra.mxu0 0
    %838 = vmatprep.subr.bf16.mxu0 0
    %839 = vmatpush2.bf16.msra.mxu0 0
    %840 = vmatprep.subr.bf16.mxu0 0
    %841 = vmatpush2.bf16.msra.mxu0 0
    %842 = vmatprep.subr.bf16.mxu0 0
    %843 = vmatpush2.bf16.msra.mxu0 0
    %844 = vmatprep.subr.bf16.mxu0 0
    %845 = vmatpush2.bf16.msra.mxu0 0
    %846 = vmatprep.subr.bf16.mxu0 0
    %847 = vmatpush2.bf16.msra.mxu0 0
    %848 = vmatprep.mubr.bf16.mxu0 0
    %849 = vmatmul.mubr.bf16.gmra.mxu0 %v812
    %v850 = vpop.f32.mrf.mxu0
    %v851 = vadd.f32 0.0, %v850
    %v852 = vpop.f32.mrf.mxu0
    %v853 = vpop.f32.mrf.mxu0
    %v854 = vpop.f32.mrf.mxu0
    %855 = vdwg.mxu0
    %857 = vrot.lane.b32.xlu0 %v759, 8
    %v858 = vpop.permute.xlu0 %857
    %861 = vrot.lane.b32.xlu0 %v804, 16
    %v862 = vpop.permute.xlu0 %861
    %865 = vrot.lane.b32.xlu0 %v851, 24
    %v866 = vpop.permute.xlu0 %865
    %v868 = vsel %vm175, %v712, %v858
    %vm869 = vcmask 130048
    %v870 = vsel %vm869, %v868, %v862
    %vm871 = vcmask 195584
    %v872 = vsel %vm871, %v870, %v866
    %v874 = vsel %vm175, %v670, 0
    %v876 = vsel %vm153, %v375, 0
    %878 = vmatprep.subr.bf16.mxu0 0
    %879 = vmatpush1.bf16.msra.mxu0 0
    %880 = vmatprep.subr.bf16.mxu0 0
    %881 = vmatpush1.bf16.msra.mxu0 0
    %882 = vmatprep.subr.bf16.mxu0 0
    %883 = vmatpush1.bf16.msra.mxu0 0
    %884 = vmatprep.subr.bf16.mxu0 0
    %885 = vmatpush1.bf16.msra.mxu0 0
    %886 = vmatprep.subr.bf16.mxu0 0
    %887 = vmatpush1.bf16.msra.mxu0 0
    %888 = vmatprep.subr.bf16.mxu0 0
    %889 = vmatpush1.bf16.msra.mxu0 0
    %890 = vmatprep.subr.bf16.mxu0 0
    %891 = vmatpush1.bf16.msra.mxu0 0
    %892 = vmatprep.subr.bf16.mxu0 0
    %893 = vmatpush1.bf16.msra.mxu0 %v876
    %894 = vmatprep.subr.bf16.mxu0 0
    %895 = vmatpush2.bf16.msra.mxu0 0
    %896 = vmatprep.subr.bf16.mxu0 0
    %897 = vmatpush2.bf16.msra.mxu0 0
    %898 = vmatprep.subr.bf16.mxu0 0
    %899 = vmatpush2.bf16.msra.mxu0 0
    %900 = vmatprep.subr.bf16.mxu0 0
    %901 = vmatpush2.bf16.msra.mxu0 0
    %902 = vmatprep.subr.bf16.mxu0 0
    %903 = vmatpush2.bf16.msra.mxu0 0
    %904 = vmatprep.subr.bf16.mxu0 0
    %905 = vmatpush2.bf16.msra.mxu0 0
    %906 = vmatprep.subr.bf16.mxu0 0
    %907 = vmatpush2.bf16.msra.mxu0 0
    %908 = vmatprep.subr.bf16.mxu0 0
    %909 = vmatpush2.bf16.msra.mxu0 0
    %910 = vmatprep.mubr.bf16.mxu0 0
    %911 = vmatmul.mubr.bf16.gmra.mxu0 %v874
    %v912 = vpop.f32.mrf.mxu0
    %v913 = vadd.f32 0.0, %v912
    %v914 = vpop.f32.mrf.mxu0
    %v915 = vpop.f32.mrf.mxu0
    %v916 = vpop.f32.mrf.mxu0
    %917 = vdwg.mxu0
    %v919 = vrot.slane %v670, 4
    %v921 = vsel %vm175, %v919, 0
    %v923 = vsel %vm153, %v425, 0
    %925 = vmatprep.subr.bf16.mxu0 0
    %926 = vmatpush1.bf16.msra.mxu0 0
    %927 = vmatprep.subr.bf16.mxu0 0
    %928 = vmatpush1.bf16.msra.mxu0 0
    %929 = vmatprep.subr.bf16.mxu0 0
    %930 = vmatpush1.bf16.msra.mxu0 0
    %931 = vmatprep.subr.bf16.mxu0 0
    %932 = vmatpush1.bf16.msra.mxu0 0
    %933 = vmatprep.subr.bf16.mxu0 0
    %934 = vmatpush1.bf16.msra.mxu0 0
    %935 = vmatprep.subr.bf16.mxu0 0
    %936 = vmatpush1.bf16.msra.mxu0 0
    %937 = vmatprep.subr.bf16.mxu0 0
    %938 = vmatpush1.bf16.msra.mxu0 0
    %939 = vmatprep.subr.bf16.mxu0 0
    %940 = vmatpush1.bf16.msra.mxu0 %v923
    %941 = vmatprep.subr.bf16.mxu0 0
    %942 = vmatpush2.bf16.msra.mxu0 0
    %943 = vmatprep.subr.bf16.mxu0 0
    %944 = vmatpush2.bf16.msra.mxu0 0
    %945 = vmatprep.subr.bf16.mxu0 0
    %946 = vmatpush2.bf16.msra.mxu0 0
    %947 = vmatprep.subr.bf16.mxu0 0
    %948 = vmatpush2.bf16.msra.mxu0 0
    %949 = vmatprep.subr.bf16.mxu0 0
    %950 = vmatpush2.bf16.msra.mxu0 0
    %951 = vmatprep.subr.bf16.mxu0 0
    %952 = vmatpush2.bf16.msra.mxu0 0
    %953 = vmatprep.subr.bf16.mxu0 0
    %954 = vmatpush2.bf16.msra.mxu0 0
    %955 = vmatprep.subr.bf16.mxu0 0
    %956 = vmatpush2.bf16.msra.mxu0 0
    %957 = vmatprep.mubr.bf16.mxu0 0
    %958 = vmatmul.mubr.bf16.gmra.mxu0 %v921
    %v959 = vpop.f32.mrf.mxu0
    %v960 = vadd.f32 0.0, %v959
    %v961 = vpop.f32.mrf.mxu0
    %v962 = vpop.f32.mrf.mxu0
    %v963 = vpop.f32.mrf.mxu0
    %964 = vdwg.mxu0
    %v966 = vsel %vm175, %v671, 0
    %v968 = vsel %vm153, %v475, 0
    %970 = vmatprep.subr.bf16.mxu0 0
    %971 = vmatpush1.bf16.msra.mxu0 0
    %972 = vmatprep.subr.bf16.mxu0 0
    %973 = vmatpush1.bf16.msra.mxu0 0
    %974 = vmatprep.subr.bf16.mxu0 0
    %975 = vmatpush1.bf16.msra.mxu0 0
    %976 = vmatprep.subr.bf16.mxu0 0
    %977 = vmatpush1.bf16.msra.mxu0 0
    %978 = vmatprep.subr.bf16.mxu0 0
    %979 = vmatpush1.bf16.msra.mxu0 0
    %980 = vmatprep.subr.bf16.mxu0 0
    %981 = vmatpush1.bf16.msra.mxu0 0
    %982 = vmatprep.subr.bf16.mxu0 0
    %983 = vmatpush1.bf16.msra.mxu0 0
    %984 = vmatprep.subr.bf16.mxu0 0
    %985 = vmatpush1.bf16.msra.mxu0 %v968
    %986 = vmatprep.subr.bf16.mxu0 0
    %987 = vmatpush2.bf16.msra.mxu0 0
    %988 = vmatprep.subr.bf16.mxu0 0
    %989 = vmatpush2.bf16.msra.mxu0 0
    %990 = vmatprep.subr.bf16.mxu0 0
    %991 = vmatpush2.bf16.msra.mxu0 0
    %992 = vmatprep.subr.bf16.mxu0 0
    %993 = vmatpush2.bf16.msra.mxu0 0
    %994 = vmatprep.subr.bf16.mxu0 0
    %995 = vmatpush2.bf16.msra.mxu0 0
    %996 = vmatprep.subr.bf16.mxu0 0
    %997 = vmatpush2.bf16.msra.mxu0 0
    %998 = vmatprep.subr.bf16.mxu0 0
    %999 = vmatpush2.bf16.msra.mxu0 0
    %1000 = vmatprep.subr.bf16.mxu0 0
    %1001 = vmatpush2.bf16.msra.mxu0 0
    %1002 = vmatprep.mubr.bf16.mxu0 0
    %1003 = vmatmul.mubr.bf16.gmra.mxu0 %v966
    %v1004 = vpop.f32.mrf.mxu0
    %v1005 = vadd.f32 0.0, %v1004
    %v1006 = vpop.f32.mrf.mxu0
    %v1007 = vpop.f32.mrf.mxu0
    %v1008 = vpop.f32.mrf.mxu0
    %1009 = vdwg.mxu0
    %v1011 = vrot.slane %v671, 4
    %v1013 = vsel %vm175, %v1011, 0
    %v1015 = vsel %vm153, %v525, 0
    %1017 = vmatprep.subr.bf16.mxu0 0
    %1018 = vmatpush1.bf16.msra.mxu0 0
    %1019 = vmatprep.subr.bf16.mxu0 0
    %1020 = vmatpush1.bf16.msra.mxu0 0
    %1021 = vmatprep.subr.bf16.mxu0 0
    %1022 = vmatpush1.bf16.msra.mxu0 0
    %1023 = vmatprep.subr.bf16.mxu0 0
    %1024 = vmatpush1.bf16.msra.mxu0 0
    %1025 = vmatprep.subr.bf16.mxu0 0
    %1026 = vmatpush1.bf16.msra.mxu0 0
    %1027 = vmatprep.subr.bf16.mxu0 0
    %1028 = vmatpush1.bf16.msra.mxu0 0
    %1029 = vmatprep.subr.bf16.mxu0 0
    %1030 = vmatpush1.bf16.msra.mxu0 0
    %1031 = vmatprep.subr.bf16.mxu0 0
    %1032 = vmatpush1.bf16.msra.mxu0 %v1015
    %1033 = vmatprep.subr.bf16.mxu0 0
    %1034 = vmatpush2.bf16.msra.mxu0 0
    %1035 = vmatprep.subr.bf16.mxu0 0
    %1036 = vmatpush2.bf16.msra.mxu0 0
    %1037 = vmatprep.subr.bf16.mxu0 0
    %1038 = vmatpush2.bf16.msra.mxu0 0
    %1039 = vmatprep.subr.bf16.mxu0 0
    %1040 = vmatpush2.bf16.msra.mxu0 0
    %1041 = vmatprep.subr.bf16.mxu0 0
    %1042 = vmatpush2.bf16.msra.mxu0 0
    %1043 = vmatprep.subr.bf16.mxu0 0
    %1044 = vmatpush2.bf16.msra.mxu0 0
    %1045 = vmatprep.subr.bf16.mxu0 0
    %1046 = vmatpush2.bf16.msra.mxu0 0
    %1047 = vmatprep.subr.bf16.mxu0 0
    %1048 = vmatpush2.bf16.msra.mxu0 0
    %1049 = vmatprep.mubr.bf16.mxu0 0
    %1050 = vmatmul.mubr.bf16.gmra.mxu0 %v1013
    %v1051 = vpop.f32.mrf.mxu0
    %v1052 = vadd.f32 0.0, %v1051
    %v1053 = vpop.f32.mrf.mxu0
    %v1054 = vpop.f32.mrf.mxu0
    %v1055 = vpop.f32.mrf.mxu0
    %1056 = vdwg.mxu0
    %1058 = vrot.lane.b32.xlu0 %v960, 8
    %v1059 = vpop.permute.xlu0 %1058
    %1062 = vrot.lane.b32.xlu0 %v1005, 16
    %v1063 = vpop.permute.xlu0 %1062
    %1066 = vrot.lane.b32.xlu0 %v1052, 24
    %v1067 = vpop.permute.xlu0 %1066
    %v1069 = vsel %vm175, %v913, %v1059
    %v1070 = vsel %vm869, %v1069, %v1063
    %v1071 = vsel %vm871, %v1070, %v1067
    %v1072 = vpack.c.bf16 %v1071, %v872
    %v1074 = vlaneseq
    %v1075 = vshrl.u32 %v1074, 7
    %v1076 = vsub.s32 0, %v1075
    %v1077 = vrot.slane %v170, %v1076
    %v1083 = vunpack.c.l.b16 %v166
    %v1084 = vunpack.c.l.b16 %v167
    %v1085 = vunpack.c.l.b16 %v168
    %v1086 = vunpack.c.l.b16 %v169
    %v1087 = vpack.c.b16 %v1084, %v1083
    %v1088 = vpack.c.b16 %v1086, %v1085
    %vm1091 = vcmask 261120
    %v1093 = vsel %vm1091, %v1072, 0
    %1095 = vmatprep.subr.bf16.mxu0 0
    %1096 = vmatpush1.bf16.msra.mxu0 0
    %1097 = vmatprep.subr.bf16.mxu0 0
    %1098 = vmatpush1.bf16.msra.mxu0 0
    %1099 = vmatprep.subr.bf16.mxu0 0
    %1100 = vmatpush1.bf16.msra.mxu0 0
    %1101 = vmatprep.subr.bf16.mxu0 0
    %1102 = vmatpush1.bf16.msra.mxu0 0
    %1103 = vmatprep.subr.bf16.mxu0 0
    %1104 = vmatpush1.bf16.msra.mxu0 0
    %1105 = vmatprep.subr.bf16.mxu0 0
    %1106 = vmatpush1.bf16.msra.mxu0 0
    %1107 = vmatprep.subr.bf16.mxu0 0
    %1108 = vmatpush1.bf16.msra.mxu0 %v1088
    %1109 = vmatprep.subr.bf16.mxu0 0
    %1110 = vmatpush1.bf16.msra.mxu0 %v1087
    %1111 = vmatprep.subr.bf16.mxu0 0
    %1112 = vmatpush2.bf16.msra.mxu0 0
    %1113 = vmatprep.subr.bf16.mxu0 0
    %1114 = vmatpush2.bf16.msra.mxu0 0
    %1115 = vmatprep.subr.bf16.mxu0 0
    %1116 = vmatpush2.bf16.msra.mxu0 0
    %1117 = vmatprep.subr.bf16.mxu0 0
    %1118 = vmatpush2.bf16.msra.mxu0 0
    %1119 = vmatprep.subr.bf16.mxu0 0
    %1120 = vmatpush2.bf16.msra.mxu0 0
    %1121 = vmatprep.subr.bf16.mxu0 0
    %1122 = vmatpush2.bf16.msra.mxu0 0
    %1123 = vmatprep.subr.bf16.mxu0 0
    %1124 = vmatpush2.bf16.msra.mxu0 0
    %1125 = vmatprep.subr.bf16.mxu0 0
    %1126 = vmatpush2.bf16.msra.mxu0 0
    %1127 = vmatprep.mubr.bf16.mxu0 0
    %1128 = vmatmul.mubr.bf16.gmra.mxu0 %v1093
    %v1129 = vpop.f32.mrf.mxu0
    %v1130 = vadd.f32 %v1077, %v1129
    %v1131 = vpop.f32.mrf.mxu0
    %v1132 = vpop.f32.mrf.mxu0
    %v1133 = vadd.f32 %v1077, %v1132
    %v1134 = vpop.f32.mrf.mxu0
    %1135 = vdwg.mxu0
    %v1136 = vadd.f32 %v1130, %v138
    %v1137 = vadd.f32 %v1133, %v141
    %v1138 = vld [vmem:[%s6] sm:$0x1]
    %v1139 = vld [vmem:[%s7] sm:$0x1]
    %v1140 = vsel %vm1091, %v1136, 0.0
    %1141 = vadd.xlane.f32.xlu0 %v1140
    %v1142 = vpop.xlane.xlu0 %1141
    %v1143 = vsel %vm1091, %v1137, 0.0
    %1144 = vadd.xlane.f32.xlu0 %v1143
    %v1145 = vpop.xlane.xlu0 %1144
    %v1146 = vrcp.pop 32.0
    %v1147 = vmul.f32 %v1142, %v1146
    %v1148 = vmul.f32 %v1145, %v1146
    %v1149 = vsub.f32 %v1136, %v1147
    %v1150 = vsub.f32 %v1137, %v1148
    %v1151 = vmul.f32 %v1149, %v1149
    %v1152 = vmul.f32 %v1150, %v1150
    %v1153 = vsel %vm1091, %v1151, 0.0
    %1154 = vadd.xlane.f32.xlu0 %v1153
    %v1155 = vpop.xlane.xlu0 %1154
    %v1156 = vsel %vm1091, %v1152, 0.0
    %1157 = vadd.xlane.f32.xlu0 %v1156
    %v1158 = vpop.xlane.xlu0 %1157
    %v1159 = vmul.f32 %v1155, %v1146
    %v1160 = vmul.f32 %v1158, %v1146
    %v1161 = vadd.f32 %v1159, 1e-05
    %v1162 = vadd.f32 %v1160, 1e-05
    %v1163 = vrsqrt.pop %v1161
    %v1164 = vrsqrt.pop %v1162
    %v1165 = vmul.f32 %v1149, %v1163
    %v1166 = vmul.f32 %v1150, %v1164
    %v1168 = vlaneseq
    %v1169 = vshrl.u32 %v1168, 7
    %v1170 = vsub.s32 0, %v1169
    %v1171 = vrot.slane %v1138, %v1170
    %v1173 = vmul.f32 %v1165, %v1171
    %v1174 = vmul.f32 %v1166, %v1171
    %v1176 = vlaneseq
    %v1177 = vshrl.u32 %v1176, 7
    %v1178 = vsub.s32 0, %v1177
    %v1179 = vrot.slane %v1139, %v1178
    %v1181 = vadd.f32 %v1173, %v1179
    %v1182 = vadd.f32 %v1174, %v1179
    %v1183 = vpack.c.bf16 %v1182, %v1181
    %v1184 = vld [vmem:[%s8] sm:$0xf]
    %v1185 = vld [vmem:[%s8 + $0x4] sm:$0xf]
    %v1186 = vld [vmem:[%s8 + $0x8] sm:$0xf]
    %v1187 = vld [vmem:[%s8 + $0xc] sm:$0xf]
    %v1188 = vld [vmem:[%s9] sm:$0x1]
    %v1190 = vlaneseq
    %v1191 = vshrl.u32 %v1190, 7
    %v1192 = vsub.s32 0, %v1191
    %v1193 = vrot.slane %v1188, %v1192
    %v1199 = vunpack.c.l.b16 %v1184
    %v1200 = vunpack.c.l.b16 %v1185
    %v1201 = vunpack.c.l.b16 %v1186
    %v1202 = vunpack.c.l.b16 %v1187
    %v1203 = vpack.c.b16 %v1200, %v1199
    %v1204 = vpack.c.b16 %v1202, %v1201
    %v1208 = vsel %vm1091, %v1183, 0
    %1210 = vmatprep.subr.bf16.mxu0 0
    %1211 = vmatpush1.bf16.msra.mxu0 0
    %1212 = vmatprep.subr.bf16.mxu0 0
    %1213 = vmatpush1.bf16.msra.mxu0 0
    %1214 = vmatprep.subr.bf16.mxu0 0
    %1215 = vmatpush1.bf16.msra.mxu0 0
    %1216 = vmatprep.subr.bf16.mxu0 0
    %1217 = vmatpush1.bf16.msra.mxu0 0
    %1218 = vmatprep.subr.bf16.mxu0 0
    %1219 = vmatpush1.bf16.msra.mxu0 0
    %1220 = vmatprep.subr.bf16.mxu0 0
    %1221 = vmatpush1.bf16.msra.mxu0 0
    %1222 = vmatprep.subr.bf16.mxu0 0
    %1223 = vmatpush1.bf16.msra.mxu0 %v1204
    %1224 = vmatprep.subr.bf16.mxu0 0
    %1225 = vmatpush1.bf16.msra.mxu0 %v1203
    %1226 = vmatprep.subr.bf16.mxu0 0
    %1227 = vmatpush2.bf16.msra.mxu0 0
    %1228 = vmatprep.subr.bf16.mxu0 0
    %1229 = vmatpush2.bf16.msra.mxu0 0
    %1230 = vmatprep.subr.bf16.mxu0 0
    %1231 = vmatpush2.bf16.msra.mxu0 0
    %1232 = vmatprep.subr.bf16.mxu0 0
    %1233 = vmatpush2.bf16.msra.mxu0 0
    %1234 = vmatprep.subr.bf16.mxu0 0
    %1235 = vmatpush2.bf16.msra.mxu0 0
    %1236 = vmatprep.subr.bf16.mxu0 0
    %1237 = vmatpush2.bf16.msra.mxu0 0
    %1238 = vmatprep.subr.bf16.mxu0 0
    %1239 = vmatpush2.bf16.msra.mxu0 0
    %1240 = vmatprep.subr.bf16.mxu0 0
    %1241 = vmatpush2.bf16.msra.mxu0 0
    %1242 = vmatprep.mubr.bf16.mxu0 0
    %1243 = vmatmul.mubr.bf16.gmra.mxu0 %v1208
    %v1244 = vpop.f32.mrf.mxu0
    %v1245 = vadd.f32 %v1193, %v1244
    %v1246 = vpop.f32.mrf.mxu0
    %v1247 = vpop.f32.mrf.mxu0
    %v1248 = vadd.f32 %v1193, %v1247
    %v1249 = vpop.f32.mrf.mxu0
    %1250 = vdwg.mxu0
    %v1251 = vmax.f32 %v1245, 0.0
    %v1252 = vmax.f32 %v1248, 0.0
    %v1253 = vpack.c.bf16 %v1252, %v1251
    %v1254 = vld [vmem:[%s10] sm:$0xf]
    %v1255 = vld [vmem:[%s10 + $0x4] sm:$0xf]
    %v1256 = vld [vmem:[%s10 + $0x8] sm:$0xf]
    %v1257 = vld [vmem:[%s10 + $0xc] sm:$0xf]
    %v1258 = vld [vmem:[%s10 + $0x10] sm:$0xf]
    %v1259 = vld [vmem:[%s10 + $0x14] sm:$0xf]
    %v1260 = vld [vmem:[%s10 + $0x18] sm:$0xf]
    %v1261 = vld [vmem:[%s10 + $0x1c] sm:$0xf]
    %v1262 = vld [vmem:[%s10 + $0x20] sm:$0xf]
    %v1263 = vld [vmem:[%s10 + $0x24] sm:$0xf]
    %v1264 = vld [vmem:[%s10 + $0x28] sm:$0xf]
    %v1265 = vld [vmem:[%s10 + $0x2c] sm:$0xf]
    %v1266 = vld [vmem:[%s10 + $0x30] sm:$0xf]
    %v1267 = vld [vmem:[%s10 + $0x34] sm:$0xf]
    %v1268 = vld [vmem:[%s10 + $0x38] sm:$0xf]
    %v1269 = vld [vmem:[%s10 + $0x3c] sm:$0xf]
    %v1270 = vld [vmem:[%s11] sm:$0x1]
    %v1272 = vlaneseq
    %v1273 = vshrl.u32 %v1272, 7
    %v1274 = vsub.s32 0, %v1273
    %v1275 = vrot.slane %v1270, %v1274
    %v1293 = vunpack.c.l.b16 %v1254
    %v1294 = vunpack.c.l.b16 %v1255
    %v1295 = vunpack.c.l.b16 %v1256
    %v1296 = vunpack.c.l.b16 %v1257
    %v1297 = vunpack.c.l.b16 %v1258
    %v1298 = vunpack.c.l.b16 %v1259
    %v1299 = vunpack.c.l.b16 %v1260
    %v1300 = vunpack.c.l.b16 %v1261
    %v1301 = vunpack.c.l.b16 %v1262
    %v1302 = vunpack.c.l.b16 %v1263
    %v1303 = vunpack.c.l.b16 %v1264
    %v1304 = vunpack.c.l.b16 %v1265
    %v1305 = vunpack.c.l.b16 %v1266
    %v1306 = vunpack.c.l.b16 %v1267
    %v1307 = vunpack.c.l.b16 %v1268
    %v1308 = vunpack.c.l.b16 %v1269
    %v1309 = vpack.c.b16 %v1294, %v1293
    %v1310 = vpack.c.b16 %v1296, %v1295
    %v1311 = vpack.c.b16 %v1298, %v1297
    %v1312 = vpack.c.b16 %v1300, %v1299
    %v1313 = vpack.c.b16 %v1302, %v1301
    %v1314 = vpack.c.b16 %v1304, %v1303
    %v1315 = vpack.c.b16 %v1306, %v1305
    %v1316 = vpack.c.b16 %v1308, %v1307
    %1325 = vmatprep.subr.bf16.mxu0 0
    %1326 = vmatpush1.bf16.msra.mxu0 %v1316
    %1327 = vmatprep.subr.bf16.mxu0 0
    %1328 = vmatpush1.bf16.msra.mxu0 %v1315
    %1329 = vmatprep.subr.bf16.mxu0 0
    %1330 = vmatpush1.bf16.msra.mxu0 %v1314
    %1331 = vmatprep.subr.bf16.mxu0 0
    %1332 = vmatpush1.bf16.msra.mxu0 %v1313
    %1333 = vmatprep.subr.bf16.mxu0 0
    %1334 = vmatpush1.bf16.msra.mxu0 %v1312
    %1335 = vmatprep.subr.bf16.mxu0 0
    %1336 = vmatpush1.bf16.msra.mxu0 %v1311
    %1337 = vmatprep.subr.bf16.mxu0 0
    %1338 = vmatpush1.bf16.msra.mxu0 %v1310
    %1339 = vmatprep.subr.bf16.mxu0 0
    %1340 = vmatpush1.bf16.msra.mxu0 %v1309
    %1341 = vmatprep.subr.bf16.mxu0 0
    %1342 = vmatpush2.bf16.msra.mxu0 0
    %1343 = vmatprep.subr.bf16.mxu0 0
    %1344 = vmatpush2.bf16.msra.mxu0 0
    %1345 = vmatprep.subr.bf16.mxu0 0
    %1346 = vmatpush2.bf16.msra.mxu0 0
    %1347 = vmatprep.subr.bf16.mxu0 0
    %1348 = vmatpush2.bf16.msra.mxu0 0
    %1349 = vmatprep.subr.bf16.mxu0 0
    %1350 = vmatpush2.bf16.msra.mxu0 0
    %1351 = vmatprep.subr.bf16.mxu0 0
    %1352 = vmatpush2.bf16.msra.mxu0 0
    %1353 = vmatprep.subr.bf16.mxu0 0
    %1354 = vmatpush2.bf16.msra.mxu0 0
    %1355 = vmatprep.subr.bf16.mxu0 0
    %1356 = vmatpush2.bf16.msra.mxu0 0
    %1357 = vmatprep.mubr.bf16.mxu0 0
    %1358 = vmatmul.mubr.bf16.gmra.mxu0 %v1253
    %v1359 = vpop.f32.mrf.mxu0
    %v1360 = vadd.f32 %v1275, %v1359
    %v1361 = vpop.f32.mrf.mxu0
    %v1362 = vpop.f32.mrf.mxu0
    %v1363 = vadd.f32 %v1275, %v1362
    %v1364 = vpop.f32.mrf.mxu0
    %1365 = vdwg.mxu0
    %v1366 = vadd.f32 %v1360, %v1181
    %v1367 = vadd.f32 %v1363, %v1182
    %v1368 = vld [vmem:[%s12] sm:$0x1]
    %v1369 = vld [vmem:[%s13] sm:$0x1]
    %v1370 = vsel %vm1091, %v1366, 0.0
    %1371 = vadd.xlane.f32.xlu0 %v1370
    %v1372 = vpop.xlane.xlu0 %1371
    %v1373 = vsel %vm1091, %v1367, 0.0
    %1374 = vadd.xlane.f32.xlu0 %v1373
    %v1375 = vpop.xlane.xlu0 %1374
    %v1376 = vmul.f32 %v1372, %v1146
    %v1377 = vmul.f32 %v1375, %v1146
    %v1378 = vsub.f32 %v1366, %v1376
    %v1379 = vsub.f32 %v1367, %v1377
    %v1380 = vmul.f32 %v1378, %v1378
    %v1381 = vmul.f32 %v1379, %v1379
    %v1382 = vsel %vm1091, %v1380, 0.0
    %1383 = vadd.xlane.f32.xlu0 %v1382
    %v1384 = vpop.xlane.xlu0 %1383
    %v1385 = vsel %vm1091, %v1381, 0.0
    %1386 = vadd.xlane.f32.xlu0 %v1385
    %v1387 = vpop.xlane.xlu0 %1386
    %v1388 = vmul.f32 %v1384, %v1146
    %v1389 = vmul.f32 %v1387, %v1146
    %v1390 = vadd.f32 %v1388, 1e-05
    %v1391 = vadd.f32 %v1389, 1e-05
    %v1392 = vrsqrt.pop %v1390
    %v1393 = vrsqrt.pop %v1391
    %v1394 = vmul.f32 %v1378, %v1392
    %v1395 = vmul.f32 %v1379, %v1393
    %v1397 = vlaneseq
    %v1398 = vshrl.u32 %v1397, 7
    %v1399 = vsub.s32 0, %v1398
    %v1400 = vrot.slane %v1368, %v1399
    %v1402 = vmul.f32 %v1394, %v1400
    %v1403 = vmul.f32 %v1395, %v1400
    %v1405 = vlaneseq
    %v1406 = vshrl.u32 %v1405, 7
    %v1407 = vsub.s32 0, %v1406
    %v1408 = vrot.slane %v1369, %v1407
    %v1410 = vadd.f32 %v1402, %v1408
    %v1411 = vadd.f32 %v1403, %v1408
    %s1412 = scalar_lea.vmem %s4, 16
    %v1413 = vld [vmem:[%s1412] sm:$0xf]
    %v1414 = vld [vmem:[%s1412 + $0x4] sm:$0xf]
    %v1415 = vld [vmem:[%s1412 + $0x8] sm:$0xf]
    %v1416 = vld [vmem:[%s1412 + $0xc] sm:$0xf]
    %s1417 = scalar_lea.vmem %s5, 1
    %v1418 = vld [vmem:[%s1417] sm:$0x1]
    %v1419 = vpack.c.bf16 %v1411, %v1410
    %v1420 = vmul.f32 %v1410, 0.35355338
    %v1421 = vmul.f32 %v1411, 0.35355338
    %v1422 = vpack.c.bf16 %v1421, %v1420
    %v1424 = vsel %vm175, %v1422, 0
    %v1427 = vsel %vm175, %v1419, 0
    %1429 = vmatprep.subr.bf16.mxu0 0
    %1430 = vmatpush1.bf16.xpose.msra.mxu0 0
    %1431 = vmatprep.subr.bf16.mxu0 0
    %1432 = vmatpush1.bf16.xpose.msra.mxu0 0
    %1433 = vmatprep.subr.bf16.mxu0 0
    %1434 = vmatpush1.bf16.xpose.msra.mxu0 0
    %1435 = vmatprep.subr.bf16.mxu0 0
    %1436 = vmatpush1.bf16.xpose.msra.mxu0 0
    %1437 = vmatprep.subr.bf16.mxu0 0
    %1438 = vmatpush1.bf16.xpose.msra.mxu0 0
    %1439 = vmatprep.subr.bf16.mxu0 0
    %1440 = vmatpush1.bf16.xpose.msra.mxu0 0
    %1441 = vmatprep.subr.bf16.mxu0 0
    %1442 = vmatpush1.bf16.xpose.msra.mxu0 0
    %1443 = vmatprep.subr.bf16.mxu0 0
    %1444 = vmatpush1.bf16.xpose.msra.mxu0 %v1427
    %1445 = vmatprep.subr.bf16.mxu0 0
    %1446 = vmatpush2.bf16.xpose.msra.mxu0 0
    %1447 = vmatprep.subr.bf16.mxu0 0
    %1448 = vmatpush2.bf16.xpose.msra.mxu0 0
    %1449 = vmatprep.subr.bf16.mxu0 0
    %1450 = vmatpush2.bf16.xpose.msra.mxu0 0
    %1451 = vmatprep.subr.bf16.mxu0 0
    %1452 = vmatpush2.bf16.xpose.msra.mxu0 0
    %1453 = vmatprep.subr.bf16.mxu0 0
    %1454 = vmatpush2.bf16.xpose.msra.mxu0 0
    %1455 = vmatprep.subr.bf16.mxu0 0
    %1456 = vmatpush2.bf16.xpose.msra.mxu0 0
    %1457 = vmatprep.subr.bf16.mxu0 0
    %1458 = vmatpush2.bf16.xpose.msra.mxu0 0
    %1459 = vmatprep.subr.bf16.mxu0 0
    %1460 = vmatpush2.bf16.xpose.msra.mxu0 0
    %1461 = vmatprep.mubr.bf16.mxu0 0
    %1462 = vmatmul.mubr.bf16.gmra.mxu0 %v1424
    %v1463 = vpop.f32.mrf.mxu0
    %v1464 = vadd.f32 0.0, %v1463
    %v1465 = vpop.f32.mrf.mxu0
    %v1466 = vpop.f32.mrf.mxu0
    %v1467 = vpop.f32.mrf.mxu0
    %1468 = vdwg.mxu0
    %1470 = vrot.lane.b32.xlu0 %v1422, 120
    %v1471 = vpop.permute.xlu0 %1470
    %1473 = vrot.lane.b32.xlu0 %v1419, 120
    %v1474 = vpop.permute.xlu0 %1473
    %v1476 = vsel %vm175, %v1471, 0
    %v1479 = vsel %vm175, %v1474, 0
    %1481 = vmatprep.subr.bf16.mxu0 0
    %1482 = vmatpush1.bf16.xpose.msra.mxu0 0
    %1483 = vmatprep.subr.bf16.mxu0 0
    %1484 = vmatpush1.bf16.xpose.msra.mxu0 0
    %1485 = vmatprep.subr.bf16.mxu0 0
    %1486 = vmatpush1.bf16.xpose.msra.mxu0 0
    %1487 = vmatprep.subr.bf16.mxu0 0
    %1488 = vmatpush1.bf16.xpose.msra.mxu0 0
    %1489 = vmatprep.subr.bf16.mxu0 0
    %1490 = vmatpush1.bf16.xpose.msra.mxu0 0
    %1491 = vmatprep.subr.bf16.mxu0 0
    %1492 = vmatpush1.bf16.xpose.msra.mxu0 0
    %1493 = vmatprep.subr.bf16.mxu0 0
    %1494 = vmatpush1.bf16.xpose.msra.mxu0 0
    %1495 = vmatprep.subr.bf16.mxu0 0
    %1496 = vmatpush1.bf16.xpose.msra.mxu0 %v1479
    %1497 = vmatprep.subr.bf16.mxu0 0
    %1498 = vmatpush2.bf16.xpose.msra.mxu0 0
    %1499 = vmatprep.subr.bf16.mxu0 0
    %1500 = vmatpush2.bf16.xpose.msra.mxu0 0
    %1501 = vmatprep.subr.bf16.mxu0 0
    %1502 = vmatpush2.bf16.xpose.msra.mxu0 0
    %1503 = vmatprep.subr.bf16.mxu0 0
    %1504 = vmatpush2.bf16.xpose.msra.mxu0 0
    %1505 = vmatprep.subr.bf16.mxu0 0
    %1506 = vmatpush2.bf16.xpose.msra.mxu0 0
    %1507 = vmatprep.subr.bf16.mxu0 0
    %1508 = vmatpush2.bf16.xpose.msra.mxu0 0
    %1509 = vmatprep.subr.bf16.mxu0 0
    %1510 = vmatpush2.bf16.xpose.msra.mxu0 0
    %1511 = vmatprep.subr.bf16.mxu0 0
    %1512 = vmatpush2.bf16.xpose.msra.mxu0 0
    %1513 = vmatprep.mubr.bf16.mxu0 0
    %1514 = vmatmul.mubr.bf16.gmra.mxu0 %v1476
    %v1515 = vpop.f32.mrf.mxu0
    %v1516 = vadd.f32 0.0, %v1515
    %v1517 = vpop.f32.mrf.mxu0
    %v1518 = vpop.f32.mrf.mxu0
    %v1519 = vpop.f32.mrf.mxu0
    %1520 = vdwg.mxu0
    %1521 = vrot.lane.b32.xlu0 %v1422, 112
    %v1522 = vpop.permute.xlu0 %1521
    %1523 = vrot.lane.b32.xlu0 %v1419, 112
    %v1524 = vpop.permute.xlu0 %1523
    %v1526 = vsel %vm175, %v1522, 0
    %v1529 = vsel %vm175, %v1524, 0
    %1531 = vmatprep.subr.bf16.mxu0 0
    %1532 = vmatpush1.bf16.xpose.msra.mxu0 0
    %1533 = vmatprep.subr.bf16.mxu0 0
    %1534 = vmatpush1.bf16.xpose.msra.mxu0 0
    %1535 = vmatprep.subr.bf16.mxu0 0
    %1536 = vmatpush1.bf16.xpose.msra.mxu0 0
    %1537 = vmatprep.subr.bf16.mxu0 0
    %1538 = vmatpush1.bf16.xpose.msra.mxu0 0
    %1539 = vmatprep.subr.bf16.mxu0 0
    %1540 = vmatpush1.bf16.xpose.msra.mxu0 0
    %1541 = vmatprep.subr.bf16.mxu0 0
    %1542 = vmatpush1.bf16.xpose.msra.mxu0 0
    %1543 = vmatprep.subr.bf16.mxu0 0
    %1544 = vmatpush1.bf16.xpose.msra.mxu0 0
    %1545 = vmatprep.subr.bf16.mxu0 0
    %1546 = vmatpush1.bf16.xpose.msra.mxu0 %v1529
    %1547 = vmatprep.subr.bf16.mxu0 0
    %1548 = vmatpush2.bf16.xpose.msra.mxu0 0
    %1549 = vmatprep.subr.bf16.mxu0 0
    %1550 = vmatpush2.bf16.xpose.msra.mxu0 0
    %1551 = vmatprep.subr.bf16.mxu0 0
    %1552 = vmatpush2.bf16.xpose.msra.mxu0 0
    %1553 = vmatprep.subr.bf16.mxu0 0
    %1554 = vmatpush2.bf16.xpose.msra.mxu0 0
    %1555 = vmatprep.subr.bf16.mxu0 0
    %1556 = vmatpush2.bf16.xpose.msra.mxu0 0
    %1557 = vmatprep.subr.bf16.mxu0 0
    %1558 = vmatpush2.bf16.xpose.msra.mxu0 0
    %1559 = vmatprep.subr.bf16.mxu0 0
    %1560 = vmatpush2.bf16.xpose.msra.mxu0 0
    %1561 = vmatprep.subr.bf16.mxu0 0
    %1562 = vmatpush2.bf16.xpose.msra.mxu0 0
    %1563 = vmatprep.mubr.bf16.mxu0 0
    %1564 = vmatmul.mubr.bf16.gmra.mxu0 %v1526
    %v1565 = vpop.f32.mrf.mxu0
    %v1566 = vadd.f32 0.0, %v1565
    %v1567 = vpop.f32.mrf.mxu0
    %v1568 = vpop.f32.mrf.mxu0
    %v1569 = vpop.f32.mrf.mxu0
    %1570 = vdwg.mxu0
    %1571 = vrot.lane.b32.xlu0 %v1422, 104
    %v1572 = vpop.permute.xlu0 %1571
    %1573 = vrot.lane.b32.xlu0 %v1419, 104
    %v1574 = vpop.permute.xlu0 %1573
    %v1576 = vsel %vm175, %v1572, 0
    %v1579 = vsel %vm175, %v1574, 0
    %1581 = vmatprep.subr.bf16.mxu0 0
    %1582 = vmatpush1.bf16.xpose.msra.mxu0 0
    %1583 = vmatprep.subr.bf16.mxu0 0
    %1584 = vmatpush1.bf16.xpose.msra.mxu0 0
    %1585 = vmatprep.subr.bf16.mxu0 0
    %1586 = vmatpush1.bf16.xpose.msra.mxu0 0
    %1587 = vmatprep.subr.bf16.mxu0 0
    %1588 = vmatpush1.bf16.xpose.msra.mxu0 0
    %1589 = vmatprep.subr.bf16.mxu0 0
    %1590 = vmatpush1.bf16.xpose.msra.mxu0 0
    %1591 = vmatprep.subr.bf16.mxu0 0
    %1592 = vmatpush1.bf16.xpose.msra.mxu0 0
    %1593 = vmatprep.subr.bf16.mxu0 0
    %1594 = vmatpush1.bf16.xpose.msra.mxu0 0
    %1595 = vmatprep.subr.bf16.mxu0 0
    %1596 = vmatpush1.bf16.xpose.msra.mxu0 %v1579
    %1597 = vmatprep.subr.bf16.mxu0 0
    %1598 = vmatpush2.bf16.xpose.msra.mxu0 0
    %1599 = vmatprep.subr.bf16.mxu0 0
    %1600 = vmatpush2.bf16.xpose.msra.mxu0 0
    %1601 = vmatprep.subr.bf16.mxu0 0
    %1602 = vmatpush2.bf16.xpose.msra.mxu0 0
    %1603 = vmatprep.subr.bf16.mxu0 0
    %1604 = vmatpush2.bf16.xpose.msra.mxu0 0
    %1605 = vmatprep.subr.bf16.mxu0 0
    %1606 = vmatpush2.bf16.xpose.msra.mxu0 0
    %1607 = vmatprep.subr.bf16.mxu0 0
    %1608 = vmatpush2.bf16.xpose.msra.mxu0 0
    %1609 = vmatprep.subr.bf16.mxu0 0
    %1610 = vmatpush2.bf16.xpose.msra.mxu0 0
    %1611 = vmatprep.subr.bf16.mxu0 0
    %1612 = vmatpush2.bf16.xpose.msra.mxu0 0
    %1613 = vmatprep.mubr.bf16.mxu0 0
    %1614 = vmatmul.mubr.bf16.gmra.mxu0 %v1576
    %v1615 = vpop.f32.mrf.mxu0
    %v1616 = vadd.f32 0.0, %v1615
    %v1617 = vpop.f32.mrf.mxu0
    %v1618 = vpop.f32.mrf.mxu0
    %v1619 = vpop.f32.mrf.mxu0
    %1620 = vdwg.mxu0
    %v1621 = vrot.slane %v1422, 4
    %v1622 = vrot.slane %v1419, 4
    %v1624 = vsel %vm175, %v1621, 0
    %v1627 = vsel %vm175, %v1622, 0
    %1629 = vmatprep.subr.bf16.mxu0 0
    %1630 = vmatpush1.bf16.xpose.msra.mxu0 0
    %1631 = vmatprep.subr.bf16.mxu0 0
    %1632 = vmatpush1.bf16.xpose.msra.mxu0 0
    %1633 = vmatprep.subr.bf16.mxu0 0
    %1634 = vmatpush1.bf16.xpose.msra.mxu0 0
    %1635 = vmatprep.subr.bf16.mxu0 0
    %1636 = vmatpush1.bf16.xpose.msra.mxu0 0
    %1637 = vmatprep.subr.bf16.mxu0 0
    %1638 = vmatpush1.bf16.xpose.msra.mxu0 0
    %1639 = vmatprep.subr.bf16.mxu0 0
    %1640 = vmatpush1.bf16.xpose.msra.mxu0 0
    %1641 = vmatprep.subr.bf16.mxu0 0
    %1642 = vmatpush1.bf16.xpose.msra.mxu0 0
    %1643 = vmatprep.subr.bf16.mxu0 0
    %1644 = vmatpush1.bf16.xpose.msra.mxu0 %v1627
    %1645 = vmatprep.subr.bf16.mxu0 0
    %1646 = vmatpush2.bf16.xpose.msra.mxu0 0
    %1647 = vmatprep.subr.bf16.mxu0 0
    %1648 = vmatpush2.bf16.xpose.msra.mxu0 0
    %1649 = vmatprep.subr.bf16.mxu0 0
    %1650 = vmatpush2.bf16.xpose.msra.mxu0 0
    %1651 = vmatprep.subr.bf16.mxu0 0
    %1652 = vmatpush2.bf16.xpose.msra.mxu0 0
    %1653 = vmatprep.subr.bf16.mxu0 0
    %1654 = vmatpush2.bf16.xpose.msra.mxu0 0
    %1655 = vmatprep.subr.bf16.mxu0 0
    %1656 = vmatpush2.bf16.xpose.msra.mxu0 0
    %1657 = vmatprep.subr.bf16.mxu0 0
    %1658 = vmatpush2.bf16.xpose.msra.mxu0 0
    %1659 = vmatprep.subr.bf16.mxu0 0
    %1660 = vmatpush2.bf16.xpose.msra.mxu0 0
    %1661 = vmatprep.mubr.bf16.mxu0 0
    %1662 = vmatmul.mubr.bf16.gmra.mxu0 %v1624
    %v1663 = vpop.f32.mrf.mxu0
    %v1664 = vadd.f32 0.0, %v1663
    %v1665 = vpop.f32.mrf.mxu0
    %v1666 = vpop.f32.mrf.mxu0
    %v1667 = vpop.f32.mrf.mxu0
    %1668 = vdwg.mxu0
    %1669 = vrot.lane.b32.xlu0 %v1621, 120
    %v1670 = vpop.permute.xlu0 %1669
    %1671 = vrot.lane.b32.xlu0 %v1622, 120
    %v1672 = vpop.permute.xlu0 %1671
    %v1674 = vsel %vm175, %v1670, 0
    %v1677 = vsel %vm175, %v1672, 0
    %1679 = vmatprep.subr.bf16.mxu0 0
    %1680 = vmatpush1.bf16.xpose.msra.mxu0 0
    %1681 = vmatprep.subr.bf16.mxu0 0
    %1682 = vmatpush1.bf16.xpose.msra.mxu0 0
    %1683 = vmatprep.subr.bf16.mxu0 0
    %1684 = vmatpush1.bf16.xpose.msra.mxu0 0
    %1685 = vmatprep.subr.bf16.mxu0 0
    %1686 = vmatpush1.bf16.xpose.msra.mxu0 0
    %1687 = vmatprep.subr.bf16.mxu0 0
    %1688 = vmatpush1.bf16.xpose.msra.mxu0 0
    %1689 = vmatprep.subr.bf16.mxu0 0
    %1690 = vmatpush1.bf16.xpose.msra.mxu0 0
    %1691 = vmatprep.subr.bf16.mxu0 0
    %1692 = vmatpush1.bf16.xpose.msra.mxu0 0
    %1693 = vmatprep.subr.bf16.mxu0 0
    %1694 = vmatpush1.bf16.xpose.msra.mxu0 %v1677
    %1695 = vmatprep.subr.bf16.mxu0 0
    %1696 = vmatpush2.bf16.xpose.msra.mxu0 0
    %1697 = vmatprep.subr.bf16.mxu0 0
    %1698 = vmatpush2.bf16.xpose.msra.mxu0 0
    %1699 = vmatprep.subr.bf16.mxu0 0
    %1700 = vmatpush2.bf16.xpose.msra.mxu0 0
    %1701 = vmatprep.subr.bf16.mxu0 0
    %1702 = vmatpush2.bf16.xpose.msra.mxu0 0
    %1703 = vmatprep.subr.bf16.mxu0 0
    %1704 = vmatpush2.bf16.xpose.msra.mxu0 0
    %1705 = vmatprep.subr.bf16.mxu0 0
    %1706 = vmatpush2.bf16.xpose.msra.mxu0 0
    %1707 = vmatprep.subr.bf16.mxu0 0
    %1708 = vmatpush2.bf16.xpose.msra.mxu0 0
    %1709 = vmatprep.subr.bf16.mxu0 0
    %1710 = vmatpush2.bf16.xpose.msra.mxu0 0
    %1711 = vmatprep.mubr.bf16.mxu0 0
    %1712 = vmatmul.mubr.bf16.gmra.mxu0 %v1674
    %v1713 = vpop.f32.mrf.mxu0
    %v1714 = vadd.f32 0.0, %v1713
    %v1715 = vpop.f32.mrf.mxu0
    %v1716 = vpop.f32.mrf.mxu0
    %v1717 = vpop.f32.mrf.mxu0
    %1718 = vdwg.mxu0
    %1719 = vrot.lane.b32.xlu0 %v1621, 112
    %v1720 = vpop.permute.xlu0 %1719
    %1721 = vrot.lane.b32.xlu0 %v1622, 112
    %v1722 = vpop.permute.xlu0 %1721
    %v1724 = vsel %vm175, %v1720, 0
    %v1727 = vsel %vm175, %v1722, 0
    %1729 = vmatprep.subr.bf16.mxu0 0
    %1730 = vmatpush1.bf16.xpose.msra.mxu0 0
    %1731 = vmatprep.subr.bf16.mxu0 0
    %1732 = vmatpush1.bf16.xpose.msra.mxu0 0
    %1733 = vmatprep.subr.bf16.mxu0 0
    %1734 = vmatpush1.bf16.xpose.msra.mxu0 0
    %1735 = vmatprep.subr.bf16.mxu0 0
    %1736 = vmatpush1.bf16.xpose.msra.mxu0 0
    %1737 = vmatprep.subr.bf16.mxu0 0
    %1738 = vmatpush1.bf16.xpose.msra.mxu0 0
    %1739 = vmatprep.subr.bf16.mxu0 0
    %1740 = vmatpush1.bf16.xpose.msra.mxu0 0
    %1741 = vmatprep.subr.bf16.mxu0 0
    %1742 = vmatpush1.bf16.xpose.msra.mxu0 0
    %1743 = vmatprep.subr.bf16.mxu0 0
    %1744 = vmatpush1.bf16.xpose.msra.mxu0 %v1727
    %1745 = vmatprep.subr.bf16.mxu0 0
    %1746 = vmatpush2.bf16.xpose.msra.mxu0 0
    %1747 = vmatprep.subr.bf16.mxu0 0
    %1748 = vmatpush2.bf16.xpose.msra.mxu0 0
    %1749 = vmatprep.subr.bf16.mxu0 0
    %1750 = vmatpush2.bf16.xpose.msra.mxu0 0
    %1751 = vmatprep.subr.bf16.mxu0 0
    %1752 = vmatpush2.bf16.xpose.msra.mxu0 0
    %1753 = vmatprep.subr.bf16.mxu0 0
    %1754 = vmatpush2.bf16.xpose.msra.mxu0 0
    %1755 = vmatprep.subr.bf16.mxu0 0
    %1756 = vmatpush2.bf16.xpose.msra.mxu0 0
    %1757 = vmatprep.subr.bf16.mxu0 0
    %1758 = vmatpush2.bf16.xpose.msra.mxu0 0
    %1759 = vmatprep.subr.bf16.mxu0 0
    %1760 = vmatpush2.bf16.xpose.msra.mxu0 0
    %1761 = vmatprep.mubr.bf16.mxu0 0
    %1762 = vmatmul.mubr.bf16.gmra.mxu0 %v1724
    %v1763 = vpop.f32.mrf.mxu0
    %v1764 = vadd.f32 0.0, %v1763
    %v1765 = vpop.f32.mrf.mxu0
    %v1766 = vpop.f32.mrf.mxu0
    %v1767 = vpop.f32.mrf.mxu0
    %1768 = vdwg.mxu0
    %1769 = vrot.lane.b32.xlu0 %v1621, 104
    %v1770 = vpop.permute.xlu0 %1769
    %1771 = vrot.lane.b32.xlu0 %v1622, 104
    %v1772 = vpop.permute.xlu0 %1771
    %v1774 = vsel %vm175, %v1770, 0
    %v1777 = vsel %vm175, %v1772, 0
    %1779 = vmatprep.subr.bf16.mxu0 0
    %1780 = vmatpush1.bf16.xpose.msra.mxu0 0
    %1781 = vmatprep.subr.bf16.mxu0 0
    %1782 = vmatpush1.bf16.xpose.msra.mxu0 0
    %1783 = vmatprep.subr.bf16.mxu0 0
    %1784 = vmatpush1.bf16.xpose.msra.mxu0 0
    %1785 = vmatprep.subr.bf16.mxu0 0
    %1786 = vmatpush1.bf16.xpose.msra.mxu0 0
    %1787 = vmatprep.subr.bf16.mxu0 0
    %1788 = vmatpush1.bf16.xpose.msra.mxu0 0
    %1789 = vmatprep.subr.bf16.mxu0 0
    %1790 = vmatpush1.bf16.xpose.msra.mxu0 0
    %1791 = vmatprep.subr.bf16.mxu0 0
    %1792 = vmatpush1.bf16.xpose.msra.mxu0 0
    %1793 = vmatprep.subr.bf16.mxu0 0
    %1794 = vmatpush1.bf16.xpose.msra.mxu0 %v1777
    %1795 = vmatprep.subr.bf16.mxu0 0
    %1796 = vmatpush2.bf16.xpose.msra.mxu0 0
    %1797 = vmatprep.subr.bf16.mxu0 0
    %1798 = vmatpush2.bf16.xpose.msra.mxu0 0
    %1799 = vmatprep.subr.bf16.mxu0 0
    %1800 = vmatpush2.bf16.xpose.msra.mxu0 0
    %1801 = vmatprep.subr.bf16.mxu0 0
    %1802 = vmatpush2.bf16.xpose.msra.mxu0 0
    %1803 = vmatprep.subr.bf16.mxu0 0
    %1804 = vmatpush2.bf16.xpose.msra.mxu0 0
    %1805 = vmatprep.subr.bf16.mxu0 0
    %1806 = vmatpush2.bf16.xpose.msra.mxu0 0
    %1807 = vmatprep.subr.bf16.mxu0 0
    %1808 = vmatpush2.bf16.xpose.msra.mxu0 0
    %1809 = vmatprep.subr.bf16.mxu0 0
    %1810 = vmatpush2.bf16.xpose.msra.mxu0 0
    %1811 = vmatprep.mubr.bf16.mxu0 0
    %1812 = vmatmul.mubr.bf16.gmra.mxu0 %v1774
    %v1813 = vpop.f32.mrf.mxu0
    %v1814 = vadd.f32 0.0, %v1813
    %v1815 = vpop.f32.mrf.mxu0
    %v1816 = vpop.f32.mrf.mxu0
    %v1817 = vpop.f32.mrf.mxu0
    %1818 = vdwg.mxu0
    %v1819 = vadd.f32 %v1464, %v162
    %v1820 = vadd.f32 %v1516, %v163
    %v1821 = vadd.f32 %v1566, %v162
    %v1822 = vadd.f32 %v1616, %v163
    %v1823 = vadd.f32 %v1664, %v164
    %v1824 = vadd.f32 %v1714, %v165
    %v1825 = vadd.f32 %v1764, %v164
    %v1826 = vadd.f32 %v1814, %v165
    %v1827 = vsel %vm175, %v1819, -inf
    %1828 = vmax.xlane.f32.xlu0 %v1827
    %v1829 = vpop.xlane.xlu0 %1828
    %v1830 = vsel %vm175, %v1820, -inf
    %1831 = vmax.xlane.f32.xlu0 %v1830
    %v1832 = vpop.xlane.xlu0 %1831
    %v1833 = vsel %vm175, %v1821, -inf
    %1834 = vmax.xlane.f32.xlu0 %v1833
    %v1835 = vpop.xlane.xlu0 %1834
    %v1836 = vsel %vm175, %v1822, -inf
    %1837 = vmax.xlane.f32.xlu0 %v1836
    %v1838 = vpop.xlane.xlu0 %1837
    %v1839 = vsel %vm175, %v1823, -inf
    %1840 = vmax.xlane.f32.xlu0 %v1839
    %v1841 = vpop.xlane.xlu0 %1840
    %v1842 = vsel %vm175, %v1824, -inf
    %1843 = vmax.xlane.f32.xlu0 %v1842
    %v1844 = vpop.xlane.xlu0 %1843
    %v1845 = vsel %vm175, %v1825, -inf
    %1846 = vmax.xlane.f32.xlu0 %v1845
    %v1847 = vpop.xlane.xlu0 %1846
    %v1848 = vsel %vm175, %v1826, -inf
    %1849 = vmax.xlane.f32.xlu0 %v1848
    %v1850 = vpop.xlane.xlu0 %1849
    %v1851 = vsub.f32 %v1819, %v1829
    %v1852 = vsub.f32 %v1820, %v1832
    %v1853 = vsub.f32 %v1821, %v1835
    %v1854 = vsub.f32 %v1822, %v1838
    %v1855 = vsub.f32 %v1823, %v1841
    %v1856 = vsub.f32 %v1824, %v1844
    %v1857 = vsub.f32 %v1825, %v1847
    %v1858 = vsub.f32 %v1826, %v1850
    %v1859 = vmul.f32 %v1851, 1.442695
    %v1860 = vpow.pop %v1859
    %v1861 = vmul.f32 %v1852, 1.442695
    %v1862 = vpow.pop %v1861
    %v1863 = vmul.f32 %v1853, 1.442695
    %v1864 = vpow.pop %v1863
    %v1865 = vmul.f32 %v1854, 1.442695
    %v1866 = vpow.pop %v1865
    %v1867 = vmul.f32 %v1855, 1.442695
    %v1868 = vpow.pop %v1867
    %v1869 = vmul.f32 %v1856, 1.442695
    %v1870 = vpow.pop %v1869
    %v1871 = vmul.f32 %v1857, 1.442695
    %v1872 = vpow.pop %v1871
    %v1873 = vmul.f32 %v1858, 1.442695
    %v1874 = vpow.pop %v1873
    %v1875 = vsel %vm175, %v1860, 0.0
    %1876 = vadd.xlane.f32.xlu0 %v1875
    %v1877 = vpop.xlane.xlu0 %1876
    %v1878 = vsel %vm175, %v1862, 0.0
    %1879 = vadd.xlane.f32.xlu0 %v1878
    %v1880 = vpop.xlane.xlu0 %1879
    %v1881 = vsel %vm175, %v1864, 0.0
    %1882 = vadd.xlane.f32.xlu0 %v1881
    %v1883 = vpop.xlane.xlu0 %1882
    %v1884 = vsel %vm175, %v1866, 0.0
    %1885 = vadd.xlane.f32.xlu0 %v1884
    %v1886 = vpop.xlane.xlu0 %1885
    %v1887 = vsel %vm175, %v1868, 0.0
    %1888 = vadd.xlane.f32.xlu0 %v1887
    %v1889 = vpop.xlane.xlu0 %1888
    %v1890 = vsel %vm175, %v1870, 0.0
    %1891 = vadd.xlane.f32.xlu0 %v1890
    %v1892 = vpop.xlane.xlu0 %1891
    %v1893 = vsel %vm175, %v1872, 0.0
    %1894 = vadd.xlane.f32.xlu0 %v1893
    %v1895 = vpop.xlane.xlu0 %1894
    %v1896 = vsel %vm175, %v1874, 0.0
    %1897 = vadd.xlane.f32.xlu0 %v1896
    %v1898 = vpop.xlane.xlu0 %1897
    %v1899 = vrcp.pop %v1877
    %v1900 = vrcp.pop %v1880
    %v1901 = vrcp.pop %v1883
    %v1902 = vrcp.pop %v1886
    %v1903 = vrcp.pop %v1889
    %v1904 = vrcp.pop %v1892
    %v1905 = vrcp.pop %v1895
    %v1906 = vrcp.pop %v1898
    %v1907 = vmul.f32 %v1860, %v1899
    %v1908 = vmul.f32 %v1862, %v1900
    %v1909 = vmul.f32 %v1864, %v1901
    %v1910 = vmul.f32 %v1866, %v1902
    %v1911 = vmul.f32 %v1868, %v1903
    %v1912 = vmul.f32 %v1870, %v1904
    %v1913 = vmul.f32 %v1872, %v1905
    %v1914 = vmul.f32 %v1874, %v1906
    %v1915 = vpack.c.bf16 %v1908, %v1907
    %v1916 = vpack.c.bf16 %v1910, %v1909
    %v1917 = vpack.c.bf16 %v1912, %v1911
    %v1918 = vpack.c.bf16 %v1914, %v1913
    %v1920 = vsel %vm175, %v1915, 0
    %v1922 = vsel %vm153, %v1419, 0
    %1924 = vmatprep.subr.bf16.mxu0 0
    %1925 = vmatpush1.bf16.msra.mxu0 0
    %1926 = vmatprep.subr.bf16.mxu0 0
    %1927 = vmatpush1.bf16.msra.mxu0 0
    %1928 = vmatprep.subr.bf16.mxu0 0
    %1929 = vmatpush1.bf16.msra.mxu0 0
    %1930 = vmatprep.subr.bf16.mxu0 0
    %1931 = vmatpush1.bf16.msra.mxu0 0
    %1932 = vmatprep.subr.bf16.mxu0 0
    %1933 = vmatpush1.bf16.msra.mxu0 0
    %1934 = vmatprep.subr.bf16.mxu0 0
    %1935 = vmatpush1.bf16.msra.mxu0 0
    %1936 = vmatprep.subr.bf16.mxu0 0
    %1937 = vmatpush1.bf16.msra.mxu0 0
    %1938 = vmatprep.subr.bf16.mxu0 0
    %1939 = vmatpush1.bf16.msra.mxu0 %v1922
    %1940 = vmatprep.subr.bf16.mxu0 0
    %1941 = vmatpush2.bf16.msra.mxu0 0
    %1942 = vmatprep.subr.bf16.mxu0 0
    %1943 = vmatpush2.bf16.msra.mxu0 0
    %1944 = vmatprep.subr.bf16.mxu0 0
    %1945 = vmatpush2.bf16.msra.mxu0 0
    %1946 = vmatprep.subr.bf16.mxu0 0
    %1947 = vmatpush2.bf16.msra.mxu0 0
    %1948 = vmatprep.subr.bf16.mxu0 0
    %1949 = vmatpush2.bf16.msra.mxu0 0
    %1950 = vmatprep.subr.bf16.mxu0 0
    %1951 = vmatpush2.bf16.msra.mxu0 0
    %1952 = vmatprep.subr.bf16.mxu0 0
    %1953 = vmatpush2.bf16.msra.mxu0 0
    %1954 = vmatprep.subr.bf16.mxu0 0
    %1955 = vmatpush2.bf16.msra.mxu0 0
    %1956 = vmatprep.mubr.bf16.mxu0 0
    %1957 = vmatmul.mubr.bf16.gmra.mxu0 %v1920
    %v1958 = vpop.f32.mrf.mxu0
    %v1959 = vadd.f32 0.0, %v1958
    %v1960 = vpop.f32.mrf.mxu0
    %v1961 = vpop.f32.mrf.mxu0
    %v1962 = vpop.f32.mrf.mxu0
    %1963 = vdwg.mxu0
    %v1965 = vrot.slane %v1915, 4
    %v1967 = vsel %vm175, %v1965, 0
    %v1969 = vsel %vm153, %v1474, 0
    %1971 = vmatprep.subr.bf16.mxu0 0
    %1972 = vmatpush1.bf16.msra.mxu0 0
    %1973 = vmatprep.subr.bf16.mxu0 0
    %1974 = vmatpush1.bf16.msra.mxu0 0
    %1975 = vmatprep.subr.bf16.mxu0 0
    %1976 = vmatpush1.bf16.msra.mxu0 0
    %1977 = vmatprep.subr.bf16.mxu0 0
    %1978 = vmatpush1.bf16.msra.mxu0 0
    %1979 = vmatprep.subr.bf16.mxu0 0
    %1980 = vmatpush1.bf16.msra.mxu0 0
    %1981 = vmatprep.subr.bf16.mxu0 0
    %1982 = vmatpush1.bf16.msra.mxu0 0
    %1983 = vmatprep.subr.bf16.mxu0 0
    %1984 = vmatpush1.bf16.msra.mxu0 0
    %1985 = vmatprep.subr.bf16.mxu0 0
    %1986 = vmatpush1.bf16.msra.mxu0 %v1969
    %1987 = vmatprep.subr.bf16.mxu0 0
    %1988 = vmatpush2.bf16.msra.mxu0 0
    %1989 = vmatprep.subr.bf16.mxu0 0
    %1990 = vmatpush2.bf16.msra.mxu0 0
    %1991 = vmatprep.subr.bf16.mxu0 0
    %1992 = vmatpush2.bf16.msra.mxu0 0
    %1993 = vmatprep.subr.bf16.mxu0 0
    %1994 = vmatpush2.bf16.msra.mxu0 0
    %1995 = vmatprep.subr.bf16.mxu0 0
    %1996 = vmatpush2.bf16.msra.mxu0 0
    %1997 = vmatprep.subr.bf16.mxu0 0
    %1998 = vmatpush2.bf16.msra.mxu0 0
    %1999 = vmatprep.subr.bf16.mxu0 0
    %2000 = vmatpush2.bf16.msra.mxu0 0
    %2001 = vmatprep.subr.bf16.mxu0 0
    %2002 = vmatpush2.bf16.msra.mxu0 0
    %2003 = vmatprep.mubr.bf16.mxu0 0
    %2004 = vmatmul.mubr.bf16.gmra.mxu0 %v1967
    %v2005 = vpop.f32.mrf.mxu0
    %v2006 = vadd.f32 0.0, %v2005
    %v2007 = vpop.f32.mrf.mxu0
    %v2008 = vpop.f32.mrf.mxu0
    %v2009 = vpop.f32.mrf.mxu0
    %2010 = vdwg.mxu0
    %v2012 = vsel %vm175, %v1916, 0
    %v2014 = vsel %vm153, %v1524, 0
    %2016 = vmatprep.subr.bf16.mxu0 0
    %2017 = vmatpush1.bf16.msra.mxu0 0
    %2018 = vmatprep.subr.bf16.mxu0 0
    %2019 = vmatpush1.bf16.msra.mxu0 0
    %2020 = vmatprep.subr.bf16.mxu0 0
    %2021 = vmatpush1.bf16.msra.mxu0 0
    %2022 = vmatprep.subr.bf16.mxu0 0
    %2023 = vmatpush1.bf16.msra.mxu0 0
    %2024 = vmatprep.subr.bf16.mxu0 0
    %2025 = vmatpush1.bf16.msra.mxu0 0
    %2026 = vmatprep.subr.bf16.mxu0 0
    %2027 = vmatpush1.bf16.msra.mxu0 0
    %2028 = vmatprep.subr.bf16.mxu0 0
    %2029 = vmatpush1.bf16.msra.mxu0 0
    %2030 = vmatprep.subr.bf16.mxu0 0
    %2031 = vmatpush1.bf16.msra.mxu0 %v2014
    %2032 = vmatprep.subr.bf16.mxu0 0
    %2033 = vmatpush2.bf16.msra.mxu0 0
    %2034 = vmatprep.subr.bf16.mxu0 0
    %2035 = vmatpush2.bf16.msra.mxu0 0
    %2036 = vmatprep.subr.bf16.mxu0 0
    %2037 = vmatpush2.bf16.msra.mxu0 0
    %2038 = vmatprep.subr.bf16.mxu0 0
    %2039 = vmatpush2.bf16.msra.mxu0 0
    %2040 = vmatprep.subr.bf16.mxu0 0
    %2041 = vmatpush2.bf16.msra.mxu0 0
    %2042 = vmatprep.subr.bf16.mxu0 0
    %2043 = vmatpush2.bf16.msra.mxu0 0
    %2044 = vmatprep.subr.bf16.mxu0 0
    %2045 = vmatpush2.bf16.msra.mxu0 0
    %2046 = vmatprep.subr.bf16.mxu0 0
    %2047 = vmatpush2.bf16.msra.mxu0 0
    %2048 = vmatprep.mubr.bf16.mxu0 0
    %2049 = vmatmul.mubr.bf16.gmra.mxu0 %v2012
    %v2050 = vpop.f32.mrf.mxu0
    %v2051 = vadd.f32 0.0, %v2050
    %v2052 = vpop.f32.mrf.mxu0
    %v2053 = vpop.f32.mrf.mxu0
    %v2054 = vpop.f32.mrf.mxu0
    %2055 = vdwg.mxu0
    %v2057 = vrot.slane %v1916, 4
    %v2059 = vsel %vm175, %v2057, 0
    %v2061 = vsel %vm153, %v1574, 0
    %2063 = vmatprep.subr.bf16.mxu0 0
    %2064 = vmatpush1.bf16.msra.mxu0 0
    %2065 = vmatprep.subr.bf16.mxu0 0
    %2066 = vmatpush1.bf16.msra.mxu0 0
    %2067 = vmatprep.subr.bf16.mxu0 0
    %2068 = vmatpush1.bf16.msra.mxu0 0
    %2069 = vmatprep.subr.bf16.mxu0 0
    %2070 = vmatpush1.bf16.msra.mxu0 0
    %2071 = vmatprep.subr.bf16.mxu0 0
    %2072 = vmatpush1.bf16.msra.mxu0 0
    %2073 = vmatprep.subr.bf16.mxu0 0
    %2074 = vmatpush1.bf16.msra.mxu0 0
    %2075 = vmatprep.subr.bf16.mxu0 0
    %2076 = vmatpush1.bf16.msra.mxu0 0
    %2077 = vmatprep.subr.bf16.mxu0 0
    %2078 = vmatpush1.bf16.msra.mxu0 %v2061
    %2079 = vmatprep.subr.bf16.mxu0 0
    %2080 = vmatpush2.bf16.msra.mxu0 0
    %2081 = vmatprep.subr.bf16.mxu0 0
    %2082 = vmatpush2.bf16.msra.mxu0 0
    %2083 = vmatprep.subr.bf16.mxu0 0
    %2084 = vmatpush2.bf16.msra.mxu0 0
    %2085 = vmatprep.subr.bf16.mxu0 0
    %2086 = vmatpush2.bf16.msra.mxu0 0
    %2087 = vmatprep.subr.bf16.mxu0 0
    %2088 = vmatpush2.bf16.msra.mxu0 0
    %2089 = vmatprep.subr.bf16.mxu0 0
    %2090 = vmatpush2.bf16.msra.mxu0 0
    %2091 = vmatprep.subr.bf16.mxu0 0
    %2092 = vmatpush2.bf16.msra.mxu0 0
    %2093 = vmatprep.subr.bf16.mxu0 0
    %2094 = vmatpush2.bf16.msra.mxu0 0
    %2095 = vmatprep.mubr.bf16.mxu0 0
    %2096 = vmatmul.mubr.bf16.gmra.mxu0 %v2059
    %v2097 = vpop.f32.mrf.mxu0
    %v2098 = vadd.f32 0.0, %v2097
    %v2099 = vpop.f32.mrf.mxu0
    %v2100 = vpop.f32.mrf.mxu0
    %v2101 = vpop.f32.mrf.mxu0
    %2102 = vdwg.mxu0
    %2104 = vrot.lane.b32.xlu0 %v2006, 8
    %v2105 = vpop.permute.xlu0 %2104
    %2108 = vrot.lane.b32.xlu0 %v2051, 16
    %v2109 = vpop.permute.xlu0 %2108
    %2112 = vrot.lane.b32.xlu0 %v2098, 24
    %v2113 = vpop.permute.xlu0 %2112
    %v2115 = vsel %vm175, %v1959, %v2105
    %v2116 = vsel %vm869, %v2115, %v2109
    %v2117 = vsel %vm871, %v2116, %v2113
    %v2119 = vsel %vm175, %v1917, 0
    %v2121 = vsel %vm153, %v1622, 0
    %2123 = vmatprep.subr.bf16.mxu0 0
    %2124 = vmatpush1.bf16.msra.mxu0 0
    %2125 = vmatprep.subr.bf16.mxu0 0
    %2126 = vmatpush1.bf16.msra.mxu0 0
    %2127 = vmatprep.subr.bf16.mxu0 0
    %2128 = vmatpush1.bf16.msra.mxu0 0
    %2129 = vmatprep.subr.bf16.mxu0 0
    %2130 = vmatpush1.bf16.msra.mxu0 0
    %2131 = vmatprep.subr.bf16.mxu0 0
    %2132 = vmatpush1.bf16.msra.mxu0 0
    %2133 = vmatprep.subr.bf16.mxu0 0
    %2134 = vmatpush1.bf16.msra.mxu0 0
    %2135 = vmatprep.subr.bf16.mxu0 0
    %2136 = vmatpush1.bf16.msra.mxu0 0
    %2137 = vmatprep.subr.bf16.mxu0 0
    %2138 = vmatpush1.bf16.msra.mxu0 %v2121
    %2139 = vmatprep.subr.bf16.mxu0 0
    %2140 = vmatpush2.bf16.msra.mxu0 0
    %2141 = vmatprep.subr.bf16.mxu0 0
    %2142 = vmatpush2.bf16.msra.mxu0 0
    %2143 = vmatprep.subr.bf16.mxu0 0
    %2144 = vmatpush2.bf16.msra.mxu0 0
    %2145 = vmatprep.subr.bf16.mxu0 0
    %2146 = vmatpush2.bf16.msra.mxu0 0
    %2147 = vmatprep.subr.bf16.mxu0 0
    %2148 = vmatpush2.bf16.msra.mxu0 0
    %2149 = vmatprep.subr.bf16.mxu0 0
    %2150 = vmatpush2.bf16.msra.mxu0 0
    %2151 = vmatprep.subr.bf16.mxu0 0
    %2152 = vmatpush2.bf16.msra.mxu0 0
    %2153 = vmatprep.subr.bf16.mxu0 0
    %2154 = vmatpush2.bf16.msra.mxu0 0
    %2155 = vmatprep.mubr.bf16.mxu0 0
    %2156 = vmatmul.mubr.bf16.gmra.mxu0 %v2119
    %v2157 = vpop.f32.mrf.mxu0
    %v2158 = vadd.f32 0.0, %v2157
    %v2159 = vpop.f32.mrf.mxu0
    %v2160 = vpop.f32.mrf.mxu0
    %v2161 = vpop.f32.mrf.mxu0
    %2162 = vdwg.mxu0
    %v2164 = vrot.slane %v1917, 4
    %v2166 = vsel %vm175, %v2164, 0
    %v2168 = vsel %vm153, %v1672, 0
    %2170 = vmatprep.subr.bf16.mxu0 0
    %2171 = vmatpush1.bf16.msra.mxu0 0
    %2172 = vmatprep.subr.bf16.mxu0 0
    %2173 = vmatpush1.bf16.msra.mxu0 0
    %2174 = vmatprep.subr.bf16.mxu0 0
    %2175 = vmatpush1.bf16.msra.mxu0 0
    %2176 = vmatprep.subr.bf16.mxu0 0
    %2177 = vmatpush1.bf16.msra.mxu0 0
    %2178 = vmatprep.subr.bf16.mxu0 0
    %2179 = vmatpush1.bf16.msra.mxu0 0
    %2180 = vmatprep.subr.bf16.mxu0 0
    %2181 = vmatpush1.bf16.msra.mxu0 0
    %2182 = vmatprep.subr.bf16.mxu0 0
    %2183 = vmatpush1.bf16.msra.mxu0 0
    %2184 = vmatprep.subr.bf16.mxu0 0
    %2185 = vmatpush1.bf16.msra.mxu0 %v2168
    %2186 = vmatprep.subr.bf16.mxu0 0
    %2187 = vmatpush2.bf16.msra.mxu0 0
    %2188 = vmatprep.subr.bf16.mxu0 0
    %2189 = vmatpush2.bf16.msra.mxu0 0
    %2190 = vmatprep.subr.bf16.mxu0 0
    %2191 = vmatpush2.bf16.msra.mxu0 0
    %2192 = vmatprep.subr.bf16.mxu0 0
    %2193 = vmatpush2.bf16.msra.mxu0 0
    %2194 = vmatprep.subr.bf16.mxu0 0
    %2195 = vmatpush2.bf16.msra.mxu0 0
    %2196 = vmatprep.subr.bf16.mxu0 0
    %2197 = vmatpush2.bf16.msra.mxu0 0
    %2198 = vmatprep.subr.bf16.mxu0 0
    %2199 = vmatpush2.bf16.msra.mxu0 0
    %2200 = vmatprep.subr.bf16.mxu0 0
    %2201 = vmatpush2.bf16.msra.mxu0 0
    %2202 = vmatprep.mubr.bf16.mxu0 0
    %2203 = vmatmul.mubr.bf16.gmra.mxu0 %v2166
    %v2204 = vpop.f32.mrf.mxu0
    %v2205 = vadd.f32 0.0, %v2204
    %v2206 = vpop.f32.mrf.mxu0
    %v2207 = vpop.f32.mrf.mxu0
    %v2208 = vpop.f32.mrf.mxu0
    %2209 = vdwg.mxu0
    %v2211 = vsel %vm175, %v1918, 0
    %v2213 = vsel %vm153, %v1722, 0
    %2215 = vmatprep.subr.bf16.mxu0 0
    %2216 = vmatpush1.bf16.msra.mxu0 0
    %2217 = vmatprep.subr.bf16.mxu0 0
    %2218 = vmatpush1.bf16.msra.mxu0 0
    %2219 = vmatprep.subr.bf16.mxu0 0
    %2220 = vmatpush1.bf16.msra.mxu0 0
    %2221 = vmatprep.subr.bf16.mxu0 0
    %2222 = vmatpush1.bf16.msra.mxu0 0
    %2223 = vmatprep.subr.bf16.mxu0 0
    %2224 = vmatpush1.bf16.msra.mxu0 0
    %2225 = vmatprep.subr.bf16.mxu0 0
    %2226 = vmatpush1.bf16.msra.mxu0 0
    %2227 = vmatprep.subr.bf16.mxu0 0
    %2228 = vmatpush1.bf16.msra.mxu0 0
    %2229 = vmatprep.subr.bf16.mxu0 0
    %2230 = vmatpush1.bf16.msra.mxu0 %v2213
    %2231 = vmatprep.subr.bf16.mxu0 0
    %2232 = vmatpush2.bf16.msra.mxu0 0
    %2233 = vmatprep.subr.bf16.mxu0 0
    %2234 = vmatpush2.bf16.msra.mxu0 0
    %2235 = vmatprep.subr.bf16.mxu0 0
    %2236 = vmatpush2.bf16.msra.mxu0 0
    %2237 = vmatprep.subr.bf16.mxu0 0
    %2238 = vmatpush2.bf16.msra.mxu0 0
    %2239 = vmatprep.subr.bf16.mxu0 0
    %2240 = vmatpush2.bf16.msra.mxu0 0
    %2241 = vmatprep.subr.bf16.mxu0 0
    %2242 = vmatpush2.bf16.msra.mxu0 0
    %2243 = vmatprep.subr.bf16.mxu0 0
    %2244 = vmatpush2.bf16.msra.mxu0 0
    %2245 = vmatprep.subr.bf16.mxu0 0
    %2246 = vmatpush2.bf16.msra.mxu0 0
    %2247 = vmatprep.mubr.bf16.mxu0 0
    %2248 = vmatmul.mubr.bf16.gmra.mxu0 %v2211
    %v2249 = vpop.f32.mrf.mxu0
    %v2250 = vadd.f32 0.0, %v2249
    %v2251 = vpop.f32.mrf.mxu0
    %v2252 = vpop.f32.mrf.mxu0
    %v2253 = vpop.f32.mrf.mxu0
    %2254 = vdwg.mxu0
    %v2256 = vrot.slane %v1918, 4
    %v2258 = vsel %vm175, %v2256, 0
    %v2260 = vsel %vm153, %v1772, 0
    %2262 = vmatprep.subr.bf16.mxu0 0
    %2263 = vmatpush1.bf16.msra.mxu0 0
    %2264 = vmatprep.subr.bf16.mxu0 0
    %2265 = vmatpush1.bf16.msra.mxu0 0
    %2266 = vmatprep.subr.bf16.mxu0 0
    %2267 = vmatpush1.bf16.msra.mxu0 0
    %2268 = vmatprep.subr.bf16.mxu0 0
    %2269 = vmatpush1.bf16.msra.mxu0 0
    %2270 = vmatprep.subr.bf16.mxu0 0
    %2271 = vmatpush1.bf16.msra.mxu0 0
    %2272 = vmatprep.subr.bf16.mxu0 0
    %2273 = vmatpush1.bf16.msra.mxu0 0
    %2274 = vmatprep.subr.bf16.mxu0 0
    %2275 = vmatpush1.bf16.msra.mxu0 0
    %2276 = vmatprep.subr.bf16.mxu0 0
    %2277 = vmatpush1.bf16.msra.mxu0 %v2260
    %2278 = vmatprep.subr.bf16.mxu0 0
    %2279 = vmatpush2.bf16.msra.mxu0 0
    %2280 = vmatprep.subr.bf16.mxu0 0
    %2281 = vmatpush2.bf16.msra.mxu0 0
    %2282 = vmatprep.subr.bf16.mxu0 0
    %2283 = vmatpush2.bf16.msra.mxu0 0
    %2284 = vmatprep.subr.bf16.mxu0 0
    %2285 = vmatpush2.bf16.msra.mxu0 0
    %2286 = vmatprep.subr.bf16.mxu0 0
    %2287 = vmatpush2.bf16.msra.mxu0 0
    %2288 = vmatprep.subr.bf16.mxu0 0
    %2289 = vmatpush2.bf16.msra.mxu0 0
    %2290 = vmatprep.subr.bf16.mxu0 0
    %2291 = vmatpush2.bf16.msra.mxu0 0
    %2292 = vmatprep.subr.bf16.mxu0 0
    %2293 = vmatpush2.bf16.msra.mxu0 0
    %2294 = vmatprep.mubr.bf16.mxu0 0
    %2295 = vmatmul.mubr.bf16.gmra.mxu0 %v2258
    %v2296 = vpop.f32.mrf.mxu0
    %v2297 = vadd.f32 0.0, %v2296
    %v2298 = vpop.f32.mrf.mxu0
    %v2299 = vpop.f32.mrf.mxu0
    %v2300 = vpop.f32.mrf.mxu0
    %2301 = vdwg.mxu0
    %2303 = vrot.lane.b32.xlu0 %v2205, 8
    %v2304 = vpop.permute.xlu0 %2303
    %2307 = vrot.lane.b32.xlu0 %v2250, 16
    %v2308 = vpop.permute.xlu0 %2307
    %2311 = vrot.lane.b32.xlu0 %v2297, 24
    %v2312 = vpop.permute.xlu0 %2311
    %v2314 = vsel %vm175, %v2158, %v2304
    %v2315 = vsel %vm869, %v2314, %v2308
    %v2316 = vsel %vm871, %v2315, %v2312
    %v2317 = vpack.c.bf16 %v2316, %v2117
    %v2319 = vlaneseq
    %v2320 = vshrl.u32 %v2319, 7
    %v2321 = vsub.s32 0, %v2320
    %v2322 = vrot.slane %v1418, %v2321
    %v2328 = vunpack.c.l.b16 %v1413
    %v2329 = vunpack.c.l.b16 %v1414
    %v2330 = vunpack.c.l.b16 %v1415
    %v2331 = vunpack.c.l.b16 %v1416
    %v2332 = vpack.c.b16 %v2329, %v2328
    %v2333 = vpack.c.b16 %v2331, %v2330
    %v2337 = vsel %vm1091, %v2317, 0
    %2339 = vmatprep.subr.bf16.mxu0 0
    %2340 = vmatpush1.bf16.msra.mxu0 0
    %2341 = vmatprep.subr.bf16.mxu0 0
    %2342 = vmatpush1.bf16.msra.mxu0 0
    %2343 = vmatprep.subr.bf16.mxu0 0
    %2344 = vmatpush1.bf16.msra.mxu0 0
    %2345 = vmatprep.subr.bf16.mxu0 0
    %2346 = vmatpush1.bf16.msra.mxu0 0
    %2347 = vmatprep.subr.bf16.mxu0 0
    %2348 = vmatpush1.bf16.msra.mxu0 0
    %2349 = vmatprep.subr.bf16.mxu0 0
    %2350 = vmatpush1.bf16.msra.mxu0 0
    %2351 = vmatprep.subr.bf16.mxu0 0
    %2352 = vmatpush1.bf16.msra.mxu0 %v2333
    %2353 = vmatprep.subr.bf16.mxu0 0
    %2354 = vmatpush1.bf16.msra.mxu0 %v2332
    %2355 = vmatprep.subr.bf16.mxu0 0
    %2356 = vmatpush2.bf16.msra.mxu0 0
    %2357 = vmatprep.subr.bf16.mxu0 0
    %2358 = vmatpush2.bf16.msra.mxu0 0
    %2359 = vmatprep.subr.bf16.mxu0 0
    %2360 = vmatpush2.bf16.msra.mxu0 0
    %2361 = vmatprep.subr.bf16.mxu0 0
    %2362 = vmatpush2.bf16.msra.mxu0 0
    %2363 = vmatprep.subr.bf16.mxu0 0
    %2364 = vmatpush2.bf16.msra.mxu0 0
    %2365 = vmatprep.subr.bf16.mxu0 0
    %2366 = vmatpush2.bf16.msra.mxu0 0
    %2367 = vmatprep.subr.bf16.mxu0 0
    %2368 = vmatpush2.bf16.msra.mxu0 0
    %2369 = vmatprep.subr.bf16.mxu0 0
    %2370 = vmatpush2.bf16.msra.mxu0 0
    %2371 = vmatprep.mubr.bf16.mxu0 0
    %2372 = vmatmul.mubr.bf16.gmra.mxu0 %v2337
    %v2373 = vpop.f32.mrf.mxu0
    %v2374 = vadd.f32 %v2322, %v2373
    %v2375 = vpop.f32.mrf.mxu0
    %v2376 = vpop.f32.mrf.mxu0
    %v2377 = vadd.f32 %v2322, %v2376
    %v2378 = vpop.f32.mrf.mxu0
    %2379 = vdwg.mxu0
    %v2380 = vadd.f32 %v2374, %v1410
    %v2381 = vadd.f32 %v2377, %v1411
    %s2382 = scalar_lea.vmem %s6, 1
    %v2383 = vld [vmem:[%s2382] sm:$0x1]
    %s2384 = scalar_lea.vmem %s7, 1
    %v2385 = vld [vmem:[%s2384] sm:$0x1]
    %v2386 = vsel %vm1091, %v2380, 0.0
    %2387 = vadd.xlane.f32.xlu0 %v2386
    %v2388 = vpop.xlane.xlu0 %2387
    %v2389 = vsel %vm1091, %v2381, 0.0
    %2390 = vadd.xlane.f32.xlu0 %v2389
    %v2391 = vpop.xlane.xlu0 %2390
    %v2392 = vmul.f32 %v2388, %v1146
    %v2393 = vmul.f32 %v2391, %v1146
    %v2394 = vsub.f32 %v2380, %v2392
    %v2395 = vsub.f32 %v2381, %v2393
    %v2396 = vmul.f32 %v2394, %v2394
    %v2397 = vmul.f32 %v2395, %v2395
    %v2398 = vsel %vm1091, %v2396, 0.0
    %2399 = vadd.xlane.f32.xlu0 %v2398
    %v2400 = vpop.xlane.xlu0 %2399
    %v2401 = vsel %vm1091, %v2397, 0.0
    %2402 = vadd.xlane.f32.xlu0 %v2401
    %v2403 = vpop.xlane.xlu0 %2402
    %v2404 = vmul.f32 %v2400, %v1146
    %v2405 = vmul.f32 %v2403, %v1146
    %v2406 = vadd.f32 %v2404, 1e-05
    %v2407 = vadd.f32 %v2405, 1e-05
    %v2408 = vrsqrt.pop %v2406
    %v2409 = vrsqrt.pop %v2407
    %v2410 = vmul.f32 %v2394, %v2408
    %v2411 = vmul.f32 %v2395, %v2409
    %v2413 = vlaneseq
    %v2414 = vshrl.u32 %v2413, 7
    %v2415 = vsub.s32 0, %v2414
    %v2416 = vrot.slane %v2383, %v2415
    %v2418 = vmul.f32 %v2410, %v2416
    %v2419 = vmul.f32 %v2411, %v2416
    %v2421 = vlaneseq
    %v2422 = vshrl.u32 %v2421, 7
    %v2423 = vsub.s32 0, %v2422
    %v2424 = vrot.slane %v2385, %v2423
    %v2426 = vadd.f32 %v2418, %v2424
    %v2427 = vadd.f32 %v2419, %v2424
    %v2428 = vpack.c.bf16 %v2427, %v2426
    %s2429 = scalar_lea.vmem %s8, 16
    %v2430 = vld [vmem:[%s2429] sm:$0xf]
    %v2431 = vld [vmem:[%s2429 + $0x4] sm:$0xf]
    %v2432 = vld [vmem:[%s2429 + $0x8] sm:$0xf]
    %v2433 = vld [vmem:[%s2429 + $0xc] sm:$0xf]
    %s2434 = scalar_lea.vmem %s9, 1
    %v2435 = vld [vmem:[%s2434] sm:$0x1]
    %v2437 = vlaneseq
    %v2438 = vshrl.u32 %v2437, 7
    %v2439 = vsub.s32 0, %v2438
    %v2440 = vrot.slane %v2435, %v2439
    %v2446 = vunpack.c.l.b16 %v2430
    %v2447 = vunpack.c.l.b16 %v2431
    %v2448 = vunpack.c.l.b16 %v2432
    %v2449 = vunpack.c.l.b16 %v2433
    %v2450 = vpack.c.b16 %v2447, %v2446
    %v2451 = vpack.c.b16 %v2449, %v2448
    %v2455 = vsel %vm1091, %v2428, 0
    %2457 = vmatprep.subr.bf16.mxu0 0
    %2458 = vmatpush1.bf16.msra.mxu0 0
    %2459 = vmatprep.subr.bf16.mxu0 0
    %2460 = vmatpush1.bf16.msra.mxu0 0
    %2461 = vmatprep.subr.bf16.mxu0 0
    %2462 = vmatpush1.bf16.msra.mxu0 0
    %2463 = vmatprep.subr.bf16.mxu0 0
    %2464 = vmatpush1.bf16.msra.mxu0 0
    %2465 = vmatprep.subr.bf16.mxu0 0
    %2466 = vmatpush1.bf16.msra.mxu0 0
    %2467 = vmatprep.subr.bf16.mxu0 0
    %2468 = vmatpush1.bf16.msra.mxu0 0
    %2469 = vmatprep.subr.bf16.mxu0 0
    %2470 = vmatpush1.bf16.msra.mxu0 %v2451
    %2471 = vmatprep.subr.bf16.mxu0 0
    %2472 = vmatpush1.bf16.msra.mxu0 %v2450
    %2473 = vmatprep.subr.bf16.mxu0 0
    %2474 = vmatpush2.bf16.msra.mxu0 0
    %2475 = vmatprep.subr.bf16.mxu0 0
    %2476 = vmatpush2.bf16.msra.mxu0 0
    %2477 = vmatprep.subr.bf16.mxu0 0
    %2478 = vmatpush2.bf16.msra.mxu0 0
    %2479 = vmatprep.subr.bf16.mxu0 0
    %2480 = vmatpush2.bf16.msra.mxu0 0
    %2481 = vmatprep.subr.bf16.mxu0 0
    %2482 = vmatpush2.bf16.msra.mxu0 0
    %2483 = vmatprep.subr.bf16.mxu0 0
    %2484 = vmatpush2.bf16.msra.mxu0 0
    %2485 = vmatprep.subr.bf16.mxu0 0
    %2486 = vmatpush2.bf16.msra.mxu0 0
    %2487 = vmatprep.subr.bf16.mxu0 0
    %2488 = vmatpush2.bf16.msra.mxu0 0
    %2489 = vmatprep.mubr.bf16.mxu0 0
    %2490 = vmatmul.mubr.bf16.gmra.mxu0 %v2455
    %v2491 = vpop.f32.mrf.mxu0
    %v2492 = vadd.f32 %v2440, %v2491
    %v2493 = vpop.f32.mrf.mxu0
    %v2494 = vpop.f32.mrf.mxu0
    %v2495 = vadd.f32 %v2440, %v2494
    %v2496 = vpop.f32.mrf.mxu0
    %2497 = vdwg.mxu0
    %v2498 = vmax.f32 %v2492, 0.0
    %v2499 = vmax.f32 %v2495, 0.0
    %v2500 = vpack.c.bf16 %v2499, %v2498
    %s2501 = scalar_lea.vmem %s10, 64
    %v2502 = vld [vmem:[%s2501] sm:$0xf]
    %v2503 = vld [vmem:[%s2501 + $0x4] sm:$0xf]
    %v2504 = vld [vmem:[%s2501 + $0x8] sm:$0xf]
    %v2505 = vld [vmem:[%s2501 + $0xc] sm:$0xf]
    %v2506 = vld [vmem:[%s2501 + $0x10] sm:$0xf]
    %v2507 = vld [vmem:[%s2501 + $0x14] sm:$0xf]
    %v2508 = vld [vmem:[%s2501 + $0x18] sm:$0xf]
    %v2509 = vld [vmem:[%s2501 + $0x1c] sm:$0xf]
    %v2510 = vld [vmem:[%s2501 + $0x20] sm:$0xf]
    %v2511 = vld [vmem:[%s2501 + $0x24] sm:$0xf]
    %v2512 = vld [vmem:[%s2501 + $0x28] sm:$0xf]
    %v2513 = vld [vmem:[%s2501 + $0x2c] sm:$0xf]
    %v2514 = vld [vmem:[%s2501 + $0x30] sm:$0xf]
    %v2515 = vld [vmem:[%s2501 + $0x34] sm:$0xf]
    %v2516 = vld [vmem:[%s2501 + $0x38] sm:$0xf]
    %v2517 = vld [vmem:[%s2501 + $0x3c] sm:$0xf]
    %s2518 = scalar_lea.vmem %s11, 1
    %v2519 = vld [vmem:[%s2518] sm:$0x1]
    %v2521 = vlaneseq
    %v2522 = vshrl.u32 %v2521, 7
    %v2523 = vsub.s32 0, %v2522
    %v2524 = vrot.slane %v2519, %v2523
    %v2542 = vunpack.c.l.b16 %v2502
    %v2543 = vunpack.c.l.b16 %v2503
    %v2544 = vunpack.c.l.b16 %v2504
    %v2545 = vunpack.c.l.b16 %v2505
    %v2546 = vunpack.c.l.b16 %v2506
    %v2547 = vunpack.c.l.b16 %v2507
    %v2548 = vunpack.c.l.b16 %v2508
    %v2549 = vunpack.c.l.b16 %v2509
    %v2550 = vunpack.c.l.b16 %v2510
    %v2551 = vunpack.c.l.b16 %v2511
    %v2552 = vunpack.c.l.b16 %v2512
    %v2553 = vunpack.c.l.b16 %v2513
    %v2554 = vunpack.c.l.b16 %v2514
    %v2555 = vunpack.c.l.b16 %v2515
    %v2556 = vunpack.c.l.b16 %v2516
    %v2557 = vunpack.c.l.b16 %v2517
    %v2558 = vpack.c.b16 %v2543, %v2542
    %v2559 = vpack.c.b16 %v2545, %v2544
    %v2560 = vpack.c.b16 %v2547, %v2546
    %v2561 = vpack.c.b16 %v2549, %v2548
    %v2562 = vpack.c.b16 %v2551, %v2550
    %v2563 = vpack.c.b16 %v2553, %v2552
    %v2564 = vpack.c.b16 %v2555, %v2554
    %v2565 = vpack.c.b16 %v2557, %v2556
    %2574 = vmatprep.subr.bf16.mxu0 0
    %2575 = vmatpush1.bf16.msra.mxu0 %v2565
    %2576 = vmatprep.subr.bf16.mxu0 0
    %2577 = vmatpush1.bf16.msra.mxu0 %v2564
    %2578 = vmatprep.subr.bf16.mxu0 0
    %2579 = vmatpush1.bf16.msra.mxu0 %v2563
    %2580 = vmatprep.subr.bf16.mxu0 0
    %2581 = vmatpush1.bf16.msra.mxu0 %v2562
    %2582 = vmatprep.subr.bf16.mxu0 0
    %2583 = vmatpush1.bf16.msra.mxu0 %v2561
    %2584 = vmatprep.subr.bf16.mxu0 0
    %2585 = vmatpush1.bf16.msra.mxu0 %v2560
    %2586 = vmatprep.subr.bf16.mxu0 0
    %2587 = vmatpush1.bf16.msra.mxu0 %v2559
    %2588 = vmatprep.subr.bf16.mxu0 0
    %2589 = vmatpush1.bf16.msra.mxu0 %v2558
    %2590 = vmatprep.subr.bf16.mxu0 0
    %2591 = vmatpush2.bf16.msra.mxu0 0
    %2592 = vmatprep.subr.bf16.mxu0 0
    %2593 = vmatpush2.bf16.msra.mxu0 0
    %2594 = vmatprep.subr.bf16.mxu0 0
    %2595 = vmatpush2.bf16.msra.mxu0 0
    %2596 = vmatprep.subr.bf16.mxu0 0
    %2597 = vmatpush2.bf16.msra.mxu0 0
    %2598 = vmatprep.subr.bf16.mxu0 0
    %2599 = vmatpush2.bf16.msra.mxu0 0
    %2600 = vmatprep.subr.bf16.mxu0 0
    %2601 = vmatpush2.bf16.msra.mxu0 0
    %2602 = vmatprep.subr.bf16.mxu0 0
    %2603 = vmatpush2.bf16.msra.mxu0 0
    %2604 = vmatprep.subr.bf16.mxu0 0
    %2605 = vmatpush2.bf16.msra.mxu0 0
    %2606 = vmatprep.mubr.bf16.mxu0 0
    %2607 = vmatmul.mubr.bf16.gmra.mxu0 %v2500
    %v2608 = vpop.f32.mrf.mxu0
    %v2609 = vadd.f32 %v2524, %v2608
    %v2610 = vpop.f32.mrf.mxu0
    %v2611 = vpop.f32.mrf.mxu0
    %v2612 = vadd.f32 %v2524, %v2611
    %v2613 = vpop.f32.mrf.mxu0
    %2614 = vdwg.mxu0
    %v2615 = vadd.f32 %v2609, %v2426
    %v2616 = vadd.f32 %v2612, %v2427
    %s2617 = scalar_lea.vmem %s12, 1
    %v2618 = vld [vmem:[%s2617] sm:$0x1]
    %s2619 = scalar_lea.vmem %s13, 1
    %v2620 = vld [vmem:[%s2619] sm:$0x1]
    %v2621 = vsel %vm1091, %v2615, 0.0
    %2622 = vadd.xlane.f32.xlu0 %v2621
    %v2623 = vpop.xlane.xlu0 %2622
    %v2624 = vsel %vm1091, %v2616, 0.0
    %2625 = vadd.xlane.f32.xlu0 %v2624
    %v2626 = vpop.xlane.xlu0 %2625
    %v2627 = vmul.f32 %v2623, %v1146
    %v2628 = vmul.f32 %v2626, %v1146
    %v2629 = vsub.f32 %v2615, %v2627
    %v2630 = vsub.f32 %v2616, %v2628
    %v2631 = vmul.f32 %v2629, %v2629
    %v2632 = vmul.f32 %v2630, %v2630
    %v2633 = vsel %vm1091, %v2631, 0.0
    %2634 = vadd.xlane.f32.xlu0 %v2633
    %v2635 = vpop.xlane.xlu0 %2634
    %v2636 = vsel %vm1091, %v2632, 0.0
    %2637 = vadd.xlane.f32.xlu0 %v2636
    %v2638 = vpop.xlane.xlu0 %2637
    %v2639 = vmul.f32 %v2635, %v1146
    %v2640 = vmul.f32 %v2638, %v1146
    %v2641 = vadd.f32 %v2639, 1e-05
    %v2642 = vadd.f32 %v2640, 1e-05
    %v2643 = vrsqrt.pop %v2641
    %v2644 = vrsqrt.pop %v2642
    %v2645 = vmul.f32 %v2629, %v2643
    %v2646 = vmul.f32 %v2630, %v2644
    %v2648 = vlaneseq
    %v2649 = vshrl.u32 %v2648, 7
    %v2650 = vsub.s32 0, %v2649
    %v2651 = vrot.slane %v2618, %v2650
    %v2653 = vmul.f32 %v2645, %v2651
    %v2654 = vmul.f32 %v2646, %v2651
    %v2656 = vlaneseq
    %v2657 = vshrl.u32 %v2656, 7
    %v2658 = vsub.s32 0, %v2657
    %v2659 = vrot.slane %v2620, %v2658
    %v2661 = vadd.f32 %v2653, %v2659
    %v2662 = vadd.f32 %v2654, %v2659
    %2663 = vst.msk [vmem:[#allocation2] sm:$0xff] %vm1091, %v2661
    %2664 = vst.msk [vmem:[#allocation2 + $0x8] sm:$0xff] %vm1091, %v2662
    // Predicated region
    $region58: #{encoder_forward.1} parent=1 // pred_check
      _
    $region59: #{encoder_forward.1} parent=1 // pred_check_branch
      %2666 = sbr.rel (0) target = $region61
    $region60: #{encoder_forward.1} parent=1 // pred_region
      %s2668 = ssub.s32 256, 256
      %2669 = vsyncadd [#allocation3], %s2668
      %s2670 = sshll.u32 [#allocation2], 4
      %s2671 = int_to_ptr.vmem [resolvable:$true] %s2670
      %2676 = dma.vmem_to_hbm [thread:$0]  %s2671, 256, %s14, [#allocation3], 128, 128, 8
    $region61: #{encoder_forward.1} parent=1 // pred_fallthru
      _
    // Predicated region
    $region62: #{encoder_forward.1} parent=1 // pred_check
      _
    $region63: #{encoder_forward.1} parent=1 // pred_check_branch
      %2678 = sbr.rel (0) target = $region65
    $region64: #{encoder_forward.1} parent=1 // pred_region
      %2679 = dma.done [#allocation3], 256
    $region65: #{encoder_forward.1} parent=1 // pred_fallthru
      _
    %2680 = vsyncpa [#allocation3], 1

</llo_original>
